<compile_context>
chip_gen: v7x
topology: tpu7x:2x2x1
jax: 0.10.0
libtpu: 0.0.40
codegen_flags: <defaults>
</compile_context>

<pallas_src>
import jax
import jax.numpy as jnp
from jax.experimental import pallas as pl
from jax.experimental.pallas import tpu as pltpu


def _transformer_mlp_kernel(
    # ---- inputs -------------------------------------------------------------------------
    ids_ref,              # (B*L, 1) int32 token ids, row = b*L + l
    emb_ref,              # (VPAD, D) f32  zero-padded embedding table
    wqkv_ref, bqkv_ref,   # (D, 3D), (1, 3D)  fused Q|K|V projection
    hsum_ref,             # (D, H)  per-head lane-group sum matrix * scale
    hexp_ref,             # (H, D)  per-head lane-group broadcast matrix
    wo_ref, bo_ref,       # (D, D), (1, D)
    g1_ref, be1_ref,      # layernorm1 (1, D)
    w1f_ref, b1f_ref,     # FF-up chunk  (D, FC) bf16 / (1, FC) f32      [grid-blocked]
    w2f_ref,              # FF-down chunk (FC, D) bf16                    [grid-blocked]
    b2f_ref,              # (1, D) f32
    g2_ref, be2_ref,      # layernorm2 (1, D)
    wm1_hbm,              # (L*D, 512) bf16  -- stays in HBM, manually prefetched
    bm1_ref,              # (1, 512) f32
    wm2_hbm,              # (512, 256) bf16  -- stays in HBM, manually prefetched
    bm2_ref,              # (1, 256) f32
    wm3_ref, bm3_ref,     # (256, C) f32, (1, C) f32
    # ---- outputs ------------------------------------------------------------------------
    out_ref,              # (B, C) f32
    # ---- scratch ------------------------------------------------------------------------
    h1_sc,                # (B*L, D) f32  post-LN1 activations (resident across FF chunks)
    ffacc_sc,             # (B*L, D) f32  FF-down accumulator
    y_sc,                 # (B*L, D) f32  post-LN2 activations
    wm1_sc,               # (L*D, 512) bf16  prefetch target
    wm2_sc,               # (512, 256) bf16  prefetch target
    dma_sems,             # (2,) DMA semaphores
):
    eps = 1e-5
    k = pl.program_id(0)
    nk = pl.num_programs(0)

    BL = ids_ref.shape[0]
    VPAD, D = emb_ref.shape
    H = hexp_ref.shape[0]
    LD, N1 = wm1_sc.shape
    L = LD // D
    B = BL // L

    # ---------------- step 0: prefetch MLP-head weights, embedding + attention + LN1 -----
    @pl.when(k == 0)
    def _prologue():
        # Kick off the MLP-head weight DMAs; they complete under all the FF-chunk compute
        # and are only waited on at the last grid step.
        pltpu.make_async_copy(wm1_hbm, wm1_sc, dma_sems.at[0]).start()
        pltpu.make_async_copy(wm2_hbm, wm2_sc, dma_sems.at[1]).start()

        # Embedding gather fused in-kernel as a one-hot MXU matmul (exact: 0/1 selectors).
        onehot = (ids_ref[...] ==
                  jax.lax.broadcasted_iota(jnp.int32, (BL, VPAD), 1)).astype(jnp.float32)
        xf = jnp.dot(onehot, emb_ref[...],
                     preferred_element_type=jnp.float32)                        # (B*L, D)

        # Fused QKV projection, then static lane slices.
        qkv = jnp.dot(xf, wqkv_ref[...],
                      preferred_element_type=jnp.float32) + bqkv_ref[...]       # (B*L, 3D)
        q = qkv[:, 0:D].reshape(B, L, D)
        kk = qkv[:, D:2 * D].reshape(B, L, D)
        v = qkv[:, 2 * D:3 * D].reshape(B, L, D)

        # Attention over the *batch* axis (batch_first=False semantics), vectorized over
        # (l, h); per-head reduce / broadcast as two tiny constant matmuls on the MXU.
        p = q[:, None, :, :] * kk[None, :, :, :]                                # (B, B, L, D)
        scores = jnp.dot(p.reshape(B * B * L, D), hsum_ref[...],
                         preferred_element_type=jnp.float32
                         ).reshape(B, B, L, H)                                  # (B, B, L, H)
        m = jnp.max(scores, axis=1, keepdims=True)
        ex = jnp.exp(scores - m)
        den = jnp.sum(ex, axis=1, keepdims=True)
        w = ex / den                                                            # exact softmax
        wexp = jnp.dot(w.reshape(B * B * L, H), hexp_ref[...],
                       preferred_element_type=jnp.float32
                       ).reshape(B, B, L, D)                                    # head broadcast
        ctx = jnp.sum(wexp * v[None, :, :, :], axis=1)                          # (B, L, D)
        attn = jnp.dot(ctx.reshape(BL, D), wo_ref[...],
                       preferred_element_type=jnp.float32) + bo_ref[...]        # (B*L, D)

        # Residual + LayerNorm 1 (post-norm encoder layer).
        h1 = xf + attn
        mu = jnp.mean(h1, axis=-1, keepdims=True)
        var = jnp.mean(jnp.square(h1 - mu), axis=-1, keepdims=True)
        h1_sc[...] = (h1 - mu) * jax.lax.rsqrt(var + eps) * g1_ref[...] + be1_ref[...]
        ffacc_sc[...] = jnp.zeros_like(ffacc_sc)

    # ---------------- every step: one FF chunk (bf16 MXU operands, f32 accumulate) -------
    h1 = h1_sc[...]
    t = jnp.dot(h1.astype(jnp.bfloat16), w1f_ref[...],
                preferred_element_type=jnp.float32) + b1f_ref[...]
    t = jnp.maximum(t, 0.0)
    ffacc_sc[...] += jnp.dot(t.astype(jnp.bfloat16), w2f_ref[...],
                             preferred_element_type=jnp.float32)

    # ---------------- last step: LN2 + flatten-free MLP head + sigmoid -------------------
    @pl.when(k == nk - 1)
    def _epilogue():
        pltpu.make_async_copy(wm1_hbm, wm1_sc, dma_sems.at[0]).wait()
        pltpu.make_async_copy(wm2_hbm, wm2_sc, dma_sems.at[1]).wait()

        h2 = h1_sc[...] + ffacc_sc[...] + b2f_ref[...]
        mu = jnp.mean(h2, axis=-1, keepdims=True)
        var = jnp.mean(jnp.square(h2 - mu), axis=-1, keepdims=True)
        y_sc[...] = (h2 - mu) * jax.lax.rsqrt(var + eps) * g2_ref[...] + be2_ref[...]

        # MLP layer 1 without building a (B, L*D) slab: accumulate L small matmuls,
        # reading rows b*L + l (b = 0..B-1) with a strided sublane load.
        z = jnp.zeros((B, N1), jnp.float32)
        for l in range(L):
            rows = y_sc[pl.ds(l, B, stride=L), :]                               # (B, D)
            z = z + jnp.dot(rows.astype(jnp.bfloat16),
                            wm1_sc[l * D:(l + 1) * D, :],
                            preferred_element_type=jnp.float32)
        z = jnp.maximum(z + bm1_ref[...], 0.0)
        z = jnp.dot(z.astype(jnp.bfloat16), wm2_sc[...],
                    preferred_element_type=jnp.float32) + bm2_ref[...]
        z = jnp.maximum(z, 0.0)
        z = jnp.dot(z, wm3_ref[...], preferred_element_type=jnp.float32) + bm3_ref[...]
        out_ref[...] = jax.nn.sigmoid(z)                                        # (B, C)


def prepare_params(p, *, num_heads):
    """One-time (parameter-load time) conversion into kernel-ready tensors:
    fused QKV, per-head sum/broadcast matrices, zero-padded embedding table,
    reshaped biases and bf16 casts for the large matmul weights."""
    f32, bf16 = jnp.float32, jnp.bfloat16
    D = p["wq"].shape[0]
    H = num_heads
    HD = D // H
    V = p["embedding"].shape[0]
    VPAD = ((V + 127) // 128) * 128
    scale = float(HD) ** -0.5
    eye_h = jnp.eye(H, dtype=f32)
    emb_pad = jnp.zeros((VPAD, D), f32).at[:V, :].set(p["embedding"].astype(f32))
    row = lambda a: a.reshape(1, -1).astype(f32)
    return {
        "emb": emb_pad,
        "wqkv": jnp.concatenate([p["wq"], p["wk"], p["wv"]], axis=1).astype(f32),
        "bqkv": jnp.concatenate([p["bq"], p["bk"], p["bv"]]).reshape(1, -1).astype(f32),
        "hsum": jnp.repeat(eye_h, HD, axis=0) * scale,       # (D, H): sums each head's lanes
        "hexp": jnp.repeat(eye_h, HD, axis=1),                # (H, D): broadcasts over lanes
        "wo": p["wo"].astype(f32), "bo": row(p["bo"]),
        "g1": row(p["g1"]), "be1": row(p["be1"]),
        "w1f": p["w1f"].astype(bf16), "b1f": row(p["b1f"]),
        "w2f": p["w2f"].astype(bf16), "b2f": row(p["b2f"]),
        "g2": row(p["g2"]), "be2": row(p["be2"]),
        "wm1": p["wm1"].astype(bf16), "bm1": row(p["bm1"]),
        "wm2": p["wm2"].astype(bf16), "bm2": row(p["bm2"]),
        "wm3": p["wm3"].astype(f32), "bm3": row(p["bm3"]),
    }


def transformer_mlp_forward(x_tokens, kp, *, ff_chunk=512):
    B, L = x_tokens.shape
    D = kp["wo"].shape[0]
    FF = kp["w1f"].shape[1]
    C = kp["wm3"].shape[1]
    assert FF % ff_chunk == 0
    nc = FF // ff_chunk

    ids = x_tokens.reshape(B * L, 1).astype(jnp.int32)

    def full(a):                     # whole-array block, loaded once (constant block index)
        zeros = (0,) * a.ndim
        return pl.BlockSpec(a.shape, lambda k: zeros)

    grid_spec = pltpu.PrefetchScalarGridSpec(
        num_scalar_prefetch=0,
        grid=(nc,),                  # FF chunks: reduction/carry axis -> "arbitrary"
        in_specs=[
            full(ids), full(kp["emb"]),
            full(kp["wqkv"]), full(kp["bqkv"]),
            full(kp["hsum"]), full(kp["hexp"]),
            full(kp["wo"]), full(kp["bo"]),
            full(kp["g1"]), full(kp["be1"]),
            pl.BlockSpec((D, ff_chunk), lambda k: (0, k)),     # w1f chunk (pipelined DMA)
            pl.BlockSpec((1, ff_chunk), lambda k: (0, k)),     # b1f chunk
            pl.BlockSpec((ff_chunk, D), lambda k: (k, 0)),     # w2f chunk (pipelined DMA)
            full(kp["b2f"]), full(kp["g2"]), full(kp["be2"]),
            pl.BlockSpec(memory_space=pl.ANY),                 # wm1: HBM, manual prefetch
            full(kp["bm1"]),
            pl.BlockSpec(memory_space=pl.ANY),                 # wm2: HBM, manual prefetch
            full(kp["bm2"]),
            full(kp["wm3"]), full(kp["bm3"]),
        ],
        out_specs=pl.BlockSpec((B, C), lambda k: (0, 0)),
        scratch_shapes=[
            pltpu.VMEM((B * L, D), jnp.float32),               # h1
            pltpu.VMEM((B * L, D), jnp.float32),               # FF accumulator
            pltpu.VMEM((B * L, D), jnp.float32),               # y (post-LN2)
            pltpu.VMEM(kp["wm1"].shape, jnp.bfloat16),         # wm1 prefetch buffer
            pltpu.VMEM(kp["wm2"].shape, jnp.bfloat16),         # wm2 prefetch buffer
            pltpu.SemaphoreType.DMA((2,)),
        ],
    )

    return pl.pallas_call(
        _transformer_mlp_kernel,
        out_shape=jax.ShapeDtypeStruct((B, C), jnp.float32),
        grid_spec=grid_spec,
        compiler_params=pltpu.CompilerParams(
            dimension_semantics=("arbitrary",)),
    )(ids, kp["emb"], kp["wqkv"], kp["bqkv"], kp["hsum"], kp["hexp"],
      kp["wo"], kp["bo"], kp["g1"], kp["be1"],
      kp["w1f"], kp["b1f"], kp["w2f"], kp["b2f"], kp["g2"], kp["be2"],
      kp["wm1"], kp["bm1"], kp["wm2"], kp["bm2"], kp["wm3"], kp["bm3"])


def reference_forward(x_tokens, p, *, num_heads):
    """Pure-JAX reference reproducing the PyTorch module's forward (eval mode)."""
    eps = 1e-5
    e = jnp.take(p["embedding"], x_tokens, axis=0)                    # (B, L, D)
    B, L, D = e.shape
    H = num_heads
    HD = D // H
    q = e @ p["wq"] + p["bq"]
    k = e @ p["wk"] + p["bk"]
    v = e @ p["wv"] + p["bv"]
    qh = q.reshape(B, L, H, HD)
    kh = k.reshape(B, L, H, HD)
    vh = v.reshape(B, L, H, HD)
    # batch_first=False -> attention over axis 0 (the batch axis), per position l.
    scores = jnp.einsum("slhd,tlhd->lhst", qh, kh) * (float(HD) ** -0.5)
    a = jax.nn.softmax(scores, axis=-1)
    ctx = jnp.einsum("lhst,tlhd->slhd", a, vh).reshape(B, L, D)
    attn = ctx @ p["wo"] + p["bo"]

    def ln(x, g, b):
        mu = jnp.mean(x, axis=-1, keepdims=True)
        var = jnp.mean(jnp.square(x - mu), axis=-1, keepdims=True)
        return (x - mu) * jax.lax.rsqrt(var + eps) * g + b

    h1 = ln(e + attn, p["g1"], p["be1"])
    ff = jnp.maximum(h1 @ p["w1f"] + p["b1f"], 0.0) @ p["w2f"] + p["b2f"]
    y = ln(h1 + ff, p["g2"], p["be2"])
    flat = y.reshape(B, L * D)
    z = jnp.maximum(flat @ p["wm1"] + p["bm1"], 0.0)
    z = jnp.maximum(z @ p["wm2"] + p["bm2"], 0.0)
    z = z @ p["wm3"] + p["bm3"]
    return jax.nn.sigmoid(z)


def init_params(key, *, vocab_size, embed_dim, max_length, num_heads, dim_ff, num_classes):
    D, L, FF, C = embed_dim, max_length, dim_ff, num_classes
    ks = jax.random.split(key, 24)
    n = lambda k, shp, s: jax.random.normal(k, shp, jnp.float32) * s
    return {
        "embedding": n(ks[0], (vocab_size, D), 1.0),
        "wq": n(ks[1], (D, D), 0.15), "bq": n(ks[2], (D,), 0.02),
        "wk": n(ks[3], (D, D), 0.15), "bk": n(ks[4], (D,), 0.02),
        "wv": n(ks[5], (D, D), 0.15), "bv": n(ks[6], (D,), 0.02),
        "wo": n(ks[7], (D, D), 0.15), "bo": n(ks[8], (D,), 0.02),
        "g1": 1.0 + n(ks[9], (D,), 0.02), "be1": n(ks[10], (D,), 0.02),
        "w1f": n(ks[11], (D, FF), 0.08), "b1f": n(ks[12], (FF,), 0.02),
        "w2f": n(ks[13], (FF, D), 0.02), "b2f": n(ks[14], (D,), 0.02),
        "g2": 1.0 + n(ks[15], (D,), 0.02), "be2": n(ks[16], (D,), 0.02),
        "wm1": n(ks[17], (L * D, 512), 0.05), "bm1": n(ks[18], (512,), 0.02),
        "wm2": n(ks[19], (512, 256), 0.05), "bm2": n(ks[20], (256,), 0.02),
        "wm3": n(ks[21], (256, C), 0.05), "bm3": n(ks[22], (C,), 0.02),
    }


if __name__ == "__main__":
    # Small shapes consistent with the module: vocab=50, embedding_dim=32, max_length=8,
    # num_heads=4, num_classes=6.  dim_feedforward keeps PyTorch's default (2048).
    VOCAB, D, L, H, C, FF, B = 50, 32, 8, 4, 6, 2048, 2
    key = jax.random.PRNGKey(0)
    pkey, xkey = jax.random.split(key)
    params = init_params(pkey, vocab_size=VOCAB, embed_dim=D, max_length=L,
                         num_heads=H, dim_ff=FF, num_classes=C)
    x = jax.random.randint(xkey, (B, L), 0, VOCAB, dtype=jnp.int32)

    kparams = prepare_params(params, num_heads=H)        # one-time, not per forward call
    fwd = jax.jit(transformer_mlp_forward)
    out = jax.block_until_ready(fwd(x, kparams))

    ref = reference_forward(x, params, num_heads=H)
    assert out.shape == (B, C)
    # bf16 MXU operands on the FF / MLP-head matmuls (f32 accumulate) -> documented
    # accuracy tradeoff vs the all-f32 reference; tolerance reflects that.
    assert jnp.allclose(out, ref, atol=5e-3, rtol=5e-3), "kernel output mismatch vs JAX reference"
    print("KERNEL_OK")
</pallas_src>

<mosaic_0001>
module attributes {stable_mosaic.version = 11 : i64} {
  func.func @_transformer_mlp_kernel(%arg0: i32, %arg1: memref<16x1xi32, #tpu.memory_space<vmem>>, %arg2: memref<128x32xf32, #tpu.memory_space<vmem>>, %arg3: memref<32x96xf32, #tpu.memory_space<vmem>>, %arg4: memref<1x96xf32, #tpu.memory_space<vmem>>, %arg5: memref<32x4xf32, #tpu.memory_space<vmem>>, %arg6: memref<4x32xf32, #tpu.memory_space<vmem>>, %arg7: memref<32x32xf32, #tpu.memory_space<vmem>>, %arg8: memref<1x32xf32, #tpu.memory_space<vmem>>, %arg9: memref<1x32xf32, #tpu.memory_space<vmem>>, %arg10: memref<1x32xf32, #tpu.memory_space<vmem>>, %arg11: memref<32x512xbf16, #tpu.memory_space<vmem>>, %arg12: memref<1x512xf32, #tpu.memory_space<vmem>>, %arg13: memref<512x32xbf16, #tpu.memory_space<vmem>>, %arg14: memref<1x32xf32, #tpu.memory_space<vmem>>, %arg15: memref<1x32xf32, #tpu.memory_space<vmem>>, %arg16: memref<1x32xf32, #tpu.memory_space<vmem>>, %arg17: memref<256x512xbf16, #tpu.memory_space<any>>, %arg18: memref<1x512xf32, #tpu.memory_space<vmem>>, %arg19: memref<512x256xbf16, #tpu.memory_space<any>>, %arg20: memref<1x256xf32, #tpu.memory_space<vmem>>, %arg21: memref<256x6xf32, #tpu.memory_space<vmem>>, %arg22: memref<1x6xf32, #tpu.memory_space<vmem>>, %arg23: memref<2x6xf32, #tpu.memory_space<vmem>>, %arg24: memref<16x32xf32, #tpu.memory_space<vmem>>, %arg25: memref<16x32xf32, #tpu.memory_space<vmem>>, %arg26: memref<16x32xf32, #tpu.memory_space<vmem>>, %arg27: memref<256x512xbf16, #tpu.memory_space<vmem>>, %arg28: memref<512x256xbf16, #tpu.memory_space<vmem>>, %arg29: memref<2x!tpu.dma_semaphore, #tpu.memory_space<semaphore_mem>>) attributes {dimension_semantics = [#tpu.dimension_semantics<arbitrary>], iteration_bounds = array<i64: 4>, scalar_prefetch = 0 : i64, scratch_operands = 6 : i64, tpu.core_type = #tpu.core_type<tc>, window_params = [{pipeline_mode = #tpu.pipeline_mode<synchronous>, transform_indices = @transform_0, window_bounds = array<i64: 16, 1>}, {pipeline_mode = #tpu.pipeline_mode<synchronous>, transform_indices = @transform_1, window_bounds = array<i64: 128, 32>}, {pipeline_mode = #tpu.pipeline_mode<synchronous>, transform_indices = @transform_2, window_bounds = array<i64: 32, 96>}, {pipeline_mode = #tpu.pipeline_mode<synchronous>, transform_indices = @transform_3, window_bounds = array<i64: 1, 96>}, {pipeline_mode = #tpu.pipeline_mode<synchronous>, transform_indices = @transform_4, window_bounds = array<i64: 32, 4>}, {pipeline_mode = #tpu.pipeline_mode<synchronous>, transform_indices = @transform_5, window_bounds = array<i64: 4, 32>}, {pipeline_mode = #tpu.pipeline_mode<synchronous>, transform_indices = @transform_6, window_bounds = array<i64: 32, 32>}, {pipeline_mode = #tpu.pipeline_mode<synchronous>, transform_indices = @transform_7, window_bounds = array<i64: 1, 32>}, {pipeline_mode = #tpu.pipeline_mode<synchronous>, transform_indices = @transform_8, window_bounds = array<i64: 1, 32>}, {pipeline_mode = #tpu.pipeline_mode<synchronous>, transform_indices = @transform_9, window_bounds = array<i64: 1, 32>}, {transform_indices = @transform_10, window_bounds = array<i64: 32, 512>}, {transform_indices = @transform_11, window_bounds = array<i64: 1, 512>}, {transform_indices = @transform_12, window_bounds = array<i64: 512, 32>}, {pipeline_mode = #tpu.pipeline_mode<synchronous>, transform_indices = @transform_13, window_bounds = array<i64: 1, 32>}, {pipeline_mode = #tpu.pipeline_mode<synchronous>, transform_indices = @transform_14, window_bounds = array<i64: 1, 32>}, {pipeline_mode = #tpu.pipeline_mode<synchronous>, transform_indices = @transform_15, window_bounds = array<i64: 1, 32>}, {}, {pipeline_mode = #tpu.pipeline_mode<synchronous>, transform_indices = @transform_17, window_bounds = array<i64: 1, 512>}, {}, {pipeline_mode = #tpu.pipeline_mode<synchronous>, transform_indices = @transform_19, window_bounds = array<i64: 1, 256>}, {pipeline_mode = #tpu.pipeline_mode<synchronous>, transform_indices = @transform_20, window_bounds = array<i64: 256, 6>}, {pipeline_mode = #tpu.pipeline_mode<synchronous>, transform_indices = @transform_21, window_bounds = array<i64: 1, 6>}, {pipeline_mode = #tpu.pipeline_mode<synchronous>, transform_indices = @transform_22, window_bounds = array<i64: 2, 6>}]} {
    %c0_i32 = arith.constant 0 : i32
    %0 = arith.cmpi eq, %arg0, %c0_i32 : i32
    %1 = arith.extui %0 : i1 to i32
    %c0_i32_0 = arith.constant 0 : i32
    %2 = arith.cmpi ne, %1, %c0_i32_0 : i32
    scf.if %2 {
      %c0_i32_15 = arith.constant 0 : i32
      %21 = tpu.memref_slice %arg29[%c0_i32_15] : memref<2x!tpu.dma_semaphore, #tpu.memory_space<semaphore_mem>> -> memref<1x!tpu.dma_semaphore, #tpu.memory_space<semaphore_mem>>
      %22 = tpu.memref_squeeze %21 : memref<1x!tpu.dma_semaphore, #tpu.memory_space<semaphore_mem>> -> memref<!tpu.dma_semaphore, #tpu.memory_space<semaphore_mem>>
      tpu.enqueue_dma source(%arg17 : memref<256x512xbf16, #tpu.memory_space<any>>) target(%arg27 : memref<256x512xbf16, #tpu.memory_space<vmem>>) target_semaphore(%22 : memref<!tpu.dma_semaphore, #tpu.memory_space<semaphore_mem>>)
      %c1_i32 = arith.constant 1 : i32
      %23 = tpu.memref_slice %arg29[%c1_i32] : memref<2x!tpu.dma_semaphore, #tpu.memory_space<semaphore_mem>> -> memref<1x!tpu.dma_semaphore, #tpu.memory_space<semaphore_mem>>
      %24 = tpu.memref_squeeze %23 : memref<1x!tpu.dma_semaphore, #tpu.memory_space<semaphore_mem>> -> memref<!tpu.dma_semaphore, #tpu.memory_space<semaphore_mem>>
      tpu.enqueue_dma source(%arg19 : memref<512x256xbf16, #tpu.memory_space<any>>) target(%arg28 : memref<512x256xbf16, #tpu.memory_space<vmem>>) target_semaphore(%24 : memref<!tpu.dma_semaphore, #tpu.memory_space<semaphore_mem>>)
      %c0_16 = arith.constant 0 : index
      %c0_17 = arith.constant 0 : index
      %25 = vector.load %arg1[%c0_16, %c0_17] : memref<16x1xi32, #tpu.memory_space<vmem>>, vector<16x1xi32>
      %26 = tpu.iota {dimensions = array<i32: 1>} : vector<16x128xi32>
      %27 = vector.broadcast %25 : vector<16x1xi32> to vector<16x128xi32>
      %28 = arith.cmpi eq, %27, %26 : vector<16x128xi32>
      %29 = arith.extui %28 : vector<16x128xi1> to vector<16x128xi32>
      %30 = arith.sitofp %29 : vector<16x128xi32> to vector<16x128xf32>
      %c0_18 = arith.constant 0 : index
      %c0_19 = arith.constant 0 : index
      %31 = vector.load %arg2[%c0_18, %c0_19] : memref<128x32xf32, #tpu.memory_space<vmem>>, vector<128x32xf32>
      %cst_20 = arith.constant dense<0.000000e+00> : vector<16x32xf32>
      %32 = tpu.matmul %30, %31, %cst_20 {dimension_numbers = #tpu.dot_dimension_numbers<[1], [0], [0], [1], [0, 0, 1, 1], [], []>} : vector<16x128xf32>, vector<128x32xf32>, vector<16x32xf32> -> vector<16x32xf32>
      %c0_21 = arith.constant 0 : index
      %c0_22 = arith.constant 0 : index
      %33 = vector.load %arg3[%c0_21, %c0_22] : memref<32x96xf32, #tpu.memory_space<vmem>>, vector<32x96xf32>
      %cst_23 = arith.constant dense<0.000000e+00> : vector<16x96xf32>
      %34 = tpu.matmul %32, %33, %cst_23 {dimension_numbers = #tpu.dot_dimension_numbers<[1], [0], [0], [1], [0, 0, 1, 1], [], []>} : vector<16x32xf32>, vector<32x96xf32>, vector<16x96xf32> -> vector<16x96xf32>
      %c0_24 = arith.constant 0 : index
      %c0_25 = arith.constant 0 : index
      %35 = vector.load %arg4[%c0_24, %c0_25] : memref<1x96xf32, #tpu.memory_space<vmem>>, vector<1x96xf32>
      %36 = vector.broadcast %35 : vector<1x96xf32> to vector<16x96xf32>
      %37 = arith.addf %34, %36 : vector<16x96xf32>
      %38 = vector.extract_strided_slice %37 {offsets = [0, 0], sizes = [16, 32], strides = [1, 1]} : vector<16x96xf32> to vector<16x32xf32>
      %39 = vector.shape_cast %38 : vector<16x32xf32> to vector<2x8x32xf32>
      %40 = vector.extract_strided_slice %37 {offsets = [0, 32], sizes = [16, 32], strides = [1, 1]} : vector<16x96xf32> to vector<16x32xf32>
      %41 = vector.shape_cast %40 : vector<16x32xf32> to vector<2x8x32xf32>
      %42 = vector.extract_strided_slice %37 {offsets = [0, 64], sizes = [16, 32], strides = [1, 1]} : vector<16x96xf32> to vector<16x32xf32>
      %43 = vector.shape_cast %42 : vector<16x32xf32> to vector<2x8x32xf32>
      %44 = vector.shape_cast %39 : vector<2x8x32xf32> to vector<2x1x8x32xf32>
      %45 = vector.shape_cast %41 : vector<2x8x32xf32> to vector<1x2x8x32xf32>
      %46 = vector.broadcast %44 : vector<2x1x8x32xf32> to vector<2x2x8x32xf32>
      %47 = vector.broadcast %45 : vector<1x2x8x32xf32> to vector<2x2x8x32xf32>
      %48 = arith.mulf %46, %47 : vector<2x2x8x32xf32>
      %49 = vector.shape_cast %48 : vector<2x2x8x32xf32> to vector<32x32xf32>
      %c0_26 = arith.constant 0 : index
      %c0_27 = arith.constant 0 : index
      %50 = vector.load %arg5[%c0_26, %c0_27] : memref<32x4xf32, #tpu.memory_space<vmem>>, vector<32x4xf32>
      %cst_28 = arith.constant dense<0.000000e+00> : vector<32x4xf32>
      %51 = tpu.matmul %49, %50, %cst_28 {dimension_numbers = #tpu.dot_dimension_numbers<[1], [0], [0], [1], [0, 0, 1, 1], [], []>} : vector<32x32xf32>, vector<32x4xf32>, vector<32x4xf32> -> vector<32x4xf32>
      %52 = vector.shape_cast %51 : vector<32x4xf32> to vector<2x2x8x4xf32>
      %cst_29 = arith.constant dense<0xFF800000> : vector<2x8x4xf32>
      %53 = vector.multi_reduction <maximumf>, %52, %cst_29 [1] : vector<2x2x8x4xf32> to vector<2x8x4xf32>
      %54 = vector.shape_cast %53 : vector<2x8x4xf32> to vector<2x1x8x4xf32>
      %55 = vector.broadcast %54 : vector<2x1x8x4xf32> to vector<2x2x8x4xf32>
      %56 = arith.subf %52, %55 : vector<2x2x8x4xf32>
      %57 = math.exp %56 : vector<2x2x8x4xf32>
      %cst_30 = arith.constant dense<0.000000e+00> : vector<2x8x4xf32>
      %58 = vector.multi_reduction <add>, %57, %cst_30 [1] : vector<2x2x8x4xf32> to vector<2x8x4xf32>
      %59 = vector.shape_cast %58 : vector<2x8x4xf32> to vector<2x1x8x4xf32>
      %60 = vector.broadcast %59 : vector<2x1x8x4xf32> to vector<2x2x8x4xf32>
      %61 = arith.divf %57, %60 : vector<2x2x8x4xf32>
      %62 = vector.shape_cast %61 : vector<2x2x8x4xf32> to vector<32x4xf32>
      %c0_31 = arith.constant 0 : index
      %c0_32 = arith.constant 0 : index
      %63 = vector.load %arg6[%c0_31, %c0_32] : memref<4x32xf32, #tpu.memory_space<vmem>>, vector<4x32xf32>
      %cst_33 = arith.constant dense<0.000000e+00> : vector<32x32xf32>
      %64 = tpu.matmul %62, %63, %cst_33 {dimension_numbers = #tpu.dot_dimension_numbers<[1], [0], [0], [1], [0, 0, 1, 1], [], []>} : vector<32x4xf32>, vector<4x32xf32>, vector<32x32xf32> -> vector<32x32xf32>
      %65 = vector.shape_cast %64 : vector<32x32xf32> to vector<2x2x8x32xf32>
      %66 = vector.shape_cast %43 : vector<2x8x32xf32> to vector<1x2x8x32xf32>
      %67 = vector.broadcast %66 : vector<1x2x8x32xf32> to vector<2x2x8x32xf32>
      %68 = arith.mulf %65, %67 : vector<2x2x8x32xf32>
      %cst_34 = arith.constant dense<0.000000e+00> : vector<2x8x32xf32>
      %69 = vector.multi_reduction <add>, %68, %cst_34 [1] : vector<2x2x8x32xf32> to vector<2x8x32xf32>
      %70 = vector.shape_cast %69 : vector<2x8x32xf32> to vector<16x32xf32>
      %c0_35 = arith.constant 0 : index
      %c0_36 = arith.constant 0 : index
      %71 = vector.load %arg7[%c0_35, %c0_36] : memref<32x32xf32, #tpu.memory_space<vmem>>, vector<32x32xf32>
      %cst_37 = arith.constant dense<0.000000e+00> : vector<16x32xf32>
      %72 = tpu.matmul %70, %71, %cst_37 {dimension_numbers = #tpu.dot_dimension_numbers<[1], [0], [0], [1], [0, 0, 1, 1], [], []>} : vector<16x32xf32>, vector<32x32xf32>, vector<16x32xf32> -> vector<16x32xf32>
      %c0_38 = arith.constant 0 : index
      %c0_39 = arith.constant 0 : index
      %73 = vector.load %arg8[%c0_38, %c0_39] : memref<1x32xf32, #tpu.memory_space<vmem>>, vector<1x32xf32>
      %74 = vector.broadcast %73 : vector<1x32xf32> to vector<16x32xf32>
      %75 = arith.addf %72, %74 : vector<16x32xf32>
      %76 = arith.addf %32, %75 : vector<16x32xf32>
      %cst_40 = arith.constant dense<0.000000e+00> : vector<16xf32>
      %77 = vector.multi_reduction <add>, %76, %cst_40 [1] : vector<16x32xf32> to vector<16xf32>
      %78 = vector.shape_cast %77 : vector<16xf32> to vector<16x1xf32>
      %cst_41 = arith.constant 3.200000e+01 : f32
      %79 = vector.broadcast %cst_41 : f32 to vector<16x1xf32>
      %80 = arith.divf %78, %79 : vector<16x1xf32>
      %81 = vector.broadcast %80 : vector<16x1xf32> to vector<16x32xf32>
      %82 = arith.subf %76, %81 : vector<16x32xf32>
      %83 = arith.mulf %82, %82 : vector<16x32xf32>
      %cst_42 = arith.constant dense<0.000000e+00> : vector<16xf32>
      %84 = vector.multi_reduction <add>, %83, %cst_42 [1] : vector<16x32xf32> to vector<16xf32>
      %85 = vector.shape_cast %84 : vector<16xf32> to vector<16x1xf32>
      %cst_43 = arith.constant 3.200000e+01 : f32
      %86 = vector.broadcast %cst_43 : f32 to vector<16x1xf32>
      %87 = arith.divf %85, %86 : vector<16x1xf32>
      %88 = vector.broadcast %80 : vector<16x1xf32> to vector<16x32xf32>
      %89 = arith.subf %76, %88 : vector<16x32xf32>
      %cst_44 = arith.constant 9.99999974E-6 : f32
      %90 = vector.broadcast %cst_44 : f32 to vector<16x1xf32>
      %91 = arith.addf %87, %90 : vector<16x1xf32>
      %92 = math.rsqrt %91 : vector<16x1xf32>
      %93 = vector.broadcast %92 : vector<16x1xf32> to vector<16x32xf32>
      %94 = arith.mulf %89, %93 : vector<16x32xf32>
      %c0_45 = arith.constant 0 : index
      %c0_46 = arith.constant 0 : index
      %95 = vector.load %arg9[%c0_45, %c0_46] : memref<1x32xf32, #tpu.memory_space<vmem>>, vector<1x32xf32>
      %96 = vector.broadcast %95 : vector<1x32xf32> to vector<16x32xf32>
      %97 = arith.mulf %94, %96 : vector<16x32xf32>
      %c0_47 = arith.constant 0 : index
      %c0_48 = arith.constant 0 : index
      %98 = vector.load %arg10[%c0_47, %c0_48] : memref<1x32xf32, #tpu.memory_space<vmem>>, vector<1x32xf32>
      %99 = vector.broadcast %98 : vector<1x32xf32> to vector<16x32xf32>
      %100 = arith.addf %97, %99 : vector<16x32xf32>
      %c0_49 = arith.constant 0 : index
      %c0_50 = arith.constant 0 : index
      %101 = vector.load %arg24[%c0_49, %c0_50] : memref<16x32xf32, #tpu.memory_space<vmem>>, vector<16x32xf32>
      tpu.vector_store %arg24[%c0_49, %c0_50], %100 {strides = array<i32>} : memref<16x32xf32, #tpu.memory_space<vmem>>, vector<16x32xf32>,
      %cst_51 = arith.constant 0.000000e+00 : f32
      %102 = vector.broadcast %cst_51 : f32 to vector<16x32xf32>
      %c0_52 = arith.constant 0 : index
      %c0_53 = arith.constant 0 : index
      %103 = vector.load %arg25[%c0_52, %c0_53] : memref<16x32xf32, #tpu.memory_space<vmem>>, vector<16x32xf32>
      tpu.vector_store %arg25[%c0_52, %c0_53], %102 {strides = array<i32>} : memref<16x32xf32, #tpu.memory_space<vmem>>, vector<16x32xf32>,
    } else {
    }
    %c0 = arith.constant 0 : index
    %c0_1 = arith.constant 0 : index
    %3 = vector.load %arg24[%c0, %c0_1] : memref<16x32xf32, #tpu.memory_space<vmem>>, vector<16x32xf32>
    %4 = arith.truncf %3 : vector<16x32xf32> to vector<16x32xbf16>
    %c0_2 = arith.constant 0 : index
    %c0_3 = arith.constant 0 : index
    %5 = vector.load %arg11[%c0_2, %c0_3] : memref<32x512xbf16, #tpu.memory_space<vmem>>, vector<32x512xbf16>
    %cst = arith.constant dense<0.000000e+00> : vector<16x512xf32>
    %6 = tpu.matmul %4, %5, %cst {dimension_numbers = #tpu.dot_dimension_numbers<[1], [0], [0], [1], [0, 0, 1, 1], [], []>} : vector<16x32xbf16>, vector<32x512xbf16>, vector<16x512xf32> -> vector<16x512xf32>
    %c0_4 = arith.constant 0 : index
    %c0_5 = arith.constant 0 : index
    %7 = vector.load %arg12[%c0_4, %c0_5] : memref<1x512xf32, #tpu.memory_space<vmem>>, vector<1x512xf32>
    %8 = vector.broadcast %7 : vector<1x512xf32> to vector<16x512xf32>
    %9 = arith.addf %6, %8 : vector<16x512xf32>
    %cst_6 = arith.constant 0.000000e+00 : f32
    %10 = vector.broadcast %cst_6 : f32 to vector<16x512xf32>
    %11 = arith.maximumf %9, %10 : vector<16x512xf32>
    %c0_7 = arith.constant 0 : index
    %c0_8 = arith.constant 0 : index
    %12 = vector.load %arg25[%c0_7, %c0_8] : memref<16x32xf32, #tpu.memory_space<vmem>>, vector<16x32xf32>
    %13 = arith.truncf %11 : vector<16x512xf32> to vector<16x512xbf16>
    %c0_9 = arith.constant 0 : index
    %c0_10 = arith.constant 0 : index
    %14 = vector.load %arg13[%c0_9, %c0_10] : memref<512x32xbf16, #tpu.memory_space<vmem>>, vector<512x32xbf16>
    %cst_11 = arith.constant dense<0.000000e+00> : vector<16x32xf32>
    %15 = tpu.matmul %13, %14, %cst_11 {dimension_numbers = #tpu.dot_dimension_numbers<[1], [0], [0], [1], [0, 0, 1, 1], [], []>} : vector<16x512xbf16>, vector<512x32xbf16>, vector<16x32xf32> -> vector<16x32xf32>
    %16 = arith.addf %12, %15 : vector<16x32xf32>
    %c0_12 = arith.constant 0 : index
    %c0_13 = arith.constant 0 : index
    %17 = vector.load %arg25[%c0_12, %c0_13] : memref<16x32xf32, #tpu.memory_space<vmem>>, vector<16x32xf32>
    tpu.vector_store %arg25[%c0_12, %c0_13], %16 {strides = array<i32>} : memref<16x32xf32, #tpu.memory_space<vmem>>, vector<16x32xf32>,
    %c3_i32 = arith.constant 3 : i32
    %18 = arith.cmpi eq, %arg0, %c3_i32 : i32
    %19 = arith.extui %18 : i1 to i32
    %c0_i32_14 = arith.constant 0 : i32
    %20 = arith.cmpi ne, %19, %c0_i32_14 : i32
    scf.if %20 {
      %c0_i32_15 = arith.constant 0 : i32
      %21 = tpu.memref_slice %arg29[%c0_i32_15] : memref<2x!tpu.dma_semaphore, #tpu.memory_space<semaphore_mem>> -> memref<1x!tpu.dma_semaphore, #tpu.memory_space<semaphore_mem>>
      %22 = tpu.memref_squeeze %21 : memref<1x!tpu.dma_semaphore, #tpu.memory_space<semaphore_mem>> -> memref<!tpu.dma_semaphore, #tpu.memory_space<semaphore_mem>>
      tpu.wait_dma2 semaphore(%22 : memref<!tpu.dma_semaphore, #tpu.memory_space<semaphore_mem>>) src(%arg17 : memref<256x512xbf16, #tpu.memory_space<any>>) dst(%arg27 : memref<256x512xbf16, #tpu.memory_space<vmem>>)
      %c1_i32 = arith.constant 1 : i32
      %23 = tpu.memref_slice %arg29[%c1_i32] : memref<2x!tpu.dma_semaphore, #tpu.memory_space<semaphore_mem>> -> memref<1x!tpu.dma_semaphore, #tpu.memory_space<semaphore_mem>>
      %24 = tpu.memref_squeeze %23 : memref<1x!tpu.dma_semaphore, #tpu.memory_space<semaphore_mem>> -> memref<!tpu.dma_semaphore, #tpu.memory_space<semaphore_mem>>
      tpu.wait_dma2 semaphore(%24 : memref<!tpu.dma_semaphore, #tpu.memory_space<semaphore_mem>>) src(%arg19 : memref<512x256xbf16, #tpu.memory_space<any>>) dst(%arg28 : memref<512x256xbf16, #tpu.memory_space<vmem>>)
      %c0_16 = arith.constant 0 : index
      %c0_17 = arith.constant 0 : index
      %25 = vector.load %arg24[%c0_16, %c0_17] : memref<16x32xf32, #tpu.memory_space<vmem>>, vector<16x32xf32>
      %c0_18 = arith.constant 0 : index
      %c0_19 = arith.constant 0 : index
      %26 = vector.load %arg25[%c0_18, %c0_19] : memref<16x32xf32, #tpu.memory_space<vmem>>, vector<16x32xf32>
      %27 = arith.addf %25, %26 : vector<16x32xf32>
      %c0_20 = arith.constant 0 : index
      %c0_21 = arith.constant 0 : index
      %28 = vector.load %arg14[%c0_20, %c0_21] : memref<1x32xf32, #tpu.memory_space<vmem>>, vector<1x32xf32>
      %29 = vector.broadcast %28 : vector<1x32xf32> to vector<16x32xf32>
      %30 = arith.addf %27, %29 : vector<16x32xf32>
      %cst_22 = arith.constant dense<0.000000e+00> : vector<16xf32>
      %31 = vector.multi_reduction <add>, %30, %cst_22 [1] : vector<16x32xf32> to vector<16xf32>
      %32 = vector.shape_cast %31 : vector<16xf32> to vector<16x1xf32>
      %cst_23 = arith.constant 3.200000e+01 : f32
      %33 = vector.broadcast %cst_23 : f32 to vector<16x1xf32>
      %34 = arith.divf %32, %33 : vector<16x1xf32>
      %35 = vector.broadcast %34 : vector<16x1xf32> to vector<16x32xf32>
      %36 = arith.subf %30, %35 : vector<16x32xf32>
      %37 = arith.mulf %36, %36 : vector<16x32xf32>
      %cst_24 = arith.constant dense<0.000000e+00> : vector<16xf32>
      %38 = vector.multi_reduction <add>, %37, %cst_24 [1] : vector<16x32xf32> to vector<16xf32>
      %39 = vector.shape_cast %38 : vector<16xf32> to vector<16x1xf32>
      %cst_25 = arith.constant 3.200000e+01 : f32
      %40 = vector.broadcast %cst_25 : f32 to vector<16x1xf32>
      %41 = arith.divf %39, %40 : vector<16x1xf32>
      %42 = vector.broadcast %34 : vector<16x1xf32> to vector<16x32xf32>
      %43 = arith.subf %30, %42 : vector<16x32xf32>
      %cst_26 = arith.constant 9.99999974E-6 : f32
      %44 = vector.broadcast %cst_26 : f32 to vector<16x1xf32>
      %45 = arith.addf %41, %44 : vector<16x1xf32>
      %46 = math.rsqrt %45 : vector<16x1xf32>
      %47 = vector.broadcast %46 : vector<16x1xf32> to vector<16x32xf32>
      %48 = arith.mulf %43, %47 : vector<16x32xf32>
      %c0_27 = arith.constant 0 : index
      %c0_28 = arith.constant 0 : index
      %49 = vector.load %arg15[%c0_27, %c0_28] : memref<1x32xf32, #tpu.memory_space<vmem>>, vector<1x32xf32>
      %50 = vector.broadcast %49 : vector<1x32xf32> to vector<16x32xf32>
      %51 = arith.mulf %48, %50 : vector<16x32xf32>
      %c0_29 = arith.constant 0 : index
      %c0_30 = arith.constant 0 : index
      %52 = vector.load %arg16[%c0_29, %c0_30] : memref<1x32xf32, #tpu.memory_space<vmem>>, vector<1x32xf32>
      %53 = vector.broadcast %52 : vector<1x32xf32> to vector<16x32xf32>
      %54 = arith.addf %51, %53 : vector<16x32xf32>
      %c0_31 = arith.constant 0 : index
      %c0_32 = arith.constant 0 : index
      %55 = vector.load %arg26[%c0_31, %c0_32] : memref<16x32xf32, #tpu.memory_space<vmem>>, vector<16x32xf32>
      tpu.vector_store %arg26[%c0_31, %c0_32], %54 {strides = array<i32>} : memref<16x32xf32, #tpu.memory_space<vmem>>, vector<16x32xf32>,
      %cst_33 = arith.constant 0.000000e+00 : f32
      %56 = vector.broadcast %cst_33 : f32 to vector<2x512xf32>
      %c0_34 = arith.constant 0 : index
      %c0_35 = arith.constant 0 : index
      %57 = tpu.strided_load %arg26[%c0_34, %c0_35] {strides = array<i32: 8, 1>} : memref<16x32xf32, #tpu.memory_space<vmem>>, vector<2x32xf32>
      %58 = arith.truncf %57 : vector<2x32xf32> to vector<2x32xbf16>
      %c0_36 = arith.constant 0 : index
      %c0_37 = arith.constant 0 : index
      %59 = vector.load %arg27[%c0_36, %c0_37] : memref<256x512xbf16, #tpu.memory_space<vmem>>, vector<32x512xbf16>
      %cst_38 = arith.constant dense<0.000000e+00> : vector<2x512xf32>
      %60 = tpu.matmul %58, %59, %cst_38 {dimension_numbers = #tpu.dot_dimension_numbers<[1], [0], [0], [1], [0, 0, 1, 1], [], []>} : vector<2x32xbf16>, vector<32x512xbf16>, vector<2x512xf32> -> vector<2x512xf32>
      %61 = arith.addf %56, %60 : vector<2x512xf32>
      %c1 = arith.constant 1 : index
      %c0_39 = arith.constant 0 : index
      %62 = tpu.strided_load %arg26[%c1, %c0_39] {strides = array<i32: 8, 1>} : memref<16x32xf32, #tpu.memory_space<vmem>>, vector<2x32xf32>
      %63 = arith.truncf %62 : vector<2x32xf32> to vector<2x32xbf16>
      %c32 = arith.constant 32 : index
      %c0_40 = arith.constant 0 : index
      %64 = vector.load %arg27[%c32, %c0_40] : memref<256x512xbf16, #tpu.memory_space<vmem>>, vector<32x512xbf16>
      %cst_41 = arith.constant dense<0.000000e+00> : vector<2x512xf32>
      %65 = tpu.matmul %63, %64, %cst_41 {dimension_numbers = #tpu.dot_dimension_numbers<[1], [0], [0], [1], [0, 0, 1, 1], [], []>} : vector<2x32xbf16>, vector<32x512xbf16>, vector<2x512xf32> -> vector<2x512xf32>
      %66 = arith.addf %61, %65 : vector<2x512xf32>
      %c2 = arith.constant 2 : index
      %c0_42 = arith.constant 0 : index
      %67 = tpu.strided_load %arg26[%c2, %c0_42] {strides = array<i32: 8, 1>} : memref<16x32xf32, #tpu.memory_space<vmem>>, vector<2x32xf32>
      %68 = arith.truncf %67 : vector<2x32xf32> to vector<2x32xbf16>
      %c64 = arith.constant 64 : index
      %c0_43 = arith.constant 0 : index
      %69 = vector.load %arg27[%c64, %c0_43] : memref<256x512xbf16, #tpu.memory_space<vmem>>, vector<32x512xbf16>
      %cst_44 = arith.constant dense<0.000000e+00> : vector<2x512xf32>
      %70 = tpu.matmul %68, %69, %cst_44 {dimension_numbers = #tpu.dot_dimension_numbers<[1], [0], [0], [1], [0, 0, 1, 1], [], []>} : vector<2x32xbf16>, vector<32x512xbf16>, vector<2x512xf32> -> vector<2x512xf32>
      %71 = arith.addf %66, %70 : vector<2x512xf32>
      %c3 = arith.constant 3 : index
      %c0_45 = arith.constant 0 : index
      %72 = tpu.strided_load %arg26[%c3, %c0_45] {strides = array<i32: 8, 1>} : memref<16x32xf32, #tpu.memory_space<vmem>>, vector<2x32xf32>
      %73 = arith.truncf %72 : vector<2x32xf32> to vector<2x32xbf16>
      %c96 = arith.constant 96 : index
      %c0_46 = arith.constant 0 : index
      %74 = vector.load %arg27[%c96, %c0_46] : memref<256x512xbf16, #tpu.memory_space<vmem>>, vector<32x512xbf16>
      %cst_47 = arith.constant dense<0.000000e+00> : vector<2x512xf32>
      %75 = tpu.matmul %73, %74, %cst_47 {dimension_numbers = #tpu.dot_dimension_numbers<[1], [0], [0], [1], [0, 0, 1, 1], [], []>} : vector<2x32xbf16>, vector<32x512xbf16>, vector<2x512xf32> -> vector<2x512xf32>
      %76 = arith.addf %71, %75 : vector<2x512xf32>
      %c4 = arith.constant 4 : index
      %c0_48 = arith.constant 0 : index
      %77 = tpu.strided_load %arg26[%c4, %c0_48] {strides = array<i32: 8, 1>} : memref<16x32xf32, #tpu.memory_space<vmem>>, vector<2x32xf32>
      %78 = arith.truncf %77 : vector<2x32xf32> to vector<2x32xbf16>
      %c128 = arith.constant 128 : index
      %c0_49 = arith.constant 0 : index
      %79 = vector.load %arg27[%c128, %c0_49] : memref<256x512xbf16, #tpu.memory_space<vmem>>, vector<32x512xbf16>
      %cst_50 = arith.constant dense<0.000000e+00> : vector<2x512xf32>
      %80 = tpu.matmul %78, %79, %cst_50 {dimension_numbers = #tpu.dot_dimension_numbers<[1], [0], [0], [1], [0, 0, 1, 1], [], []>} : vector<2x32xbf16>, vector<32x512xbf16>, vector<2x512xf32> -> vector<2x512xf32>
      %81 = arith.addf %76, %80 : vector<2x512xf32>
      %c5 = arith.constant 5 : index
      %c0_51 = arith.constant 0 : index
      %82 = tpu.strided_load %arg26[%c5, %c0_51] {strides = array<i32: 8, 1>} : memref<16x32xf32, #tpu.memory_space<vmem>>, vector<2x32xf32>
      %83 = arith.truncf %82 : vector<2x32xf32> to vector<2x32xbf16>
      %c160 = arith.constant 160 : index
      %c0_52 = arith.constant 0 : index
      %84 = vector.load %arg27[%c160, %c0_52] : memref<256x512xbf16, #tpu.memory_space<vmem>>, vector<32x512xbf16>
      %cst_53 = arith.constant dense<0.000000e+00> : vector<2x512xf32>
      %85 = tpu.matmul %83, %84, %cst_53 {dimension_numbers = #tpu.dot_dimension_numbers<[1], [0], [0], [1], [0, 0, 1, 1], [], []>} : vector<2x32xbf16>, vector<32x512xbf16>, vector<2x512xf32> -> vector<2x512xf32>
      %86 = arith.addf %81, %85 : vector<2x512xf32>
      %c6 = arith.constant 6 : index
      %c0_54 = arith.constant 0 : index
      %87 = tpu.strided_load %arg26[%c6, %c0_54] {strides = array<i32: 8, 1>} : memref<16x32xf32, #tpu.memory_space<vmem>>, vector<2x32xf32>
      %88 = arith.truncf %87 : vector<2x32xf32> to vector<2x32xbf16>
      %c192 = arith.constant 192 : index
      %c0_55 = arith.constant 0 : index
      %89 = vector.load %arg27[%c192, %c0_55] : memref<256x512xbf16, #tpu.memory_space<vmem>>, vector<32x512xbf16>
      %cst_56 = arith.constant dense<0.000000e+00> : vector<2x512xf32>
      %90 = tpu.matmul %88, %89, %cst_56 {dimension_numbers = #tpu.dot_dimension_numbers<[1], [0], [0], [1], [0, 0, 1, 1], [], []>} : vector<2x32xbf16>, vector<32x512xbf16>, vector<2x512xf32> -> vector<2x512xf32>
      %91 = arith.addf %86, %90 : vector<2x512xf32>
      %c7 = arith.constant 7 : index
      %c0_57 = arith.constant 0 : index
      %92 = tpu.strided_load %arg26[%c7, %c0_57] {strides = array<i32: 8, 1>} : memref<16x32xf32, #tpu.memory_space<vmem>>, vector<2x32xf32>
      %93 = arith.truncf %92 : vector<2x32xf32> to vector<2x32xbf16>
      %c224 = arith.constant 224 : index
      %c0_58 = arith.constant 0 : index
      %94 = vector.load %arg27[%c224, %c0_58] : memref<256x512xbf16, #tpu.memory_space<vmem>>, vector<32x512xbf16>
      %cst_59 = arith.constant dense<0.000000e+00> : vector<2x512xf32>
      %95 = tpu.matmul %93, %94, %cst_59 {dimension_numbers = #tpu.dot_dimension_numbers<[1], [0], [0], [1], [0, 0, 1, 1], [], []>} : vector<2x32xbf16>, vector<32x512xbf16>, vector<2x512xf32> -> vector<2x512xf32>
      %96 = arith.addf %91, %95 : vector<2x512xf32>
      %c0_60 = arith.constant 0 : index
      %c0_61 = arith.constant 0 : index
      %97 = vector.load %arg18[%c0_60, %c0_61] : memref<1x512xf32, #tpu.memory_space<vmem>>, vector<1x512xf32>
      %98 = vector.broadcast %97 : vector<1x512xf32> to vector<2x512xf32>
      %99 = arith.addf %96, %98 : vector<2x512xf32>
      %cst_62 = arith.constant 0.000000e+00 : f32
      %100 = vector.broadcast %cst_62 : f32 to vector<2x512xf32>
      %101 = arith.maximumf %99, %100 : vector<2x512xf32>
      %102 = arith.truncf %101 : vector<2x512xf32> to vector<2x512xbf16>
      %c0_63 = arith.constant 0 : index
      %c0_64 = arith.constant 0 : index
      %103 = vector.load %arg28[%c0_63, %c0_64] : memref<512x256xbf16, #tpu.memory_space<vmem>>, vector<512x256xbf16>
      %cst_65 = arith.constant dense<0.000000e+00> : vector<2x256xf32>
      %104 = tpu.matmul %102, %103, %cst_65 {dimension_numbers = #tpu.dot_dimension_numbers<[1], [0], [0], [1], [0, 0, 1, 1], [], []>} : vector<2x512xbf16>, vector<512x256xbf16>, vector<2x256xf32> -> vector<2x256xf32>
      %c0_66 = arith.constant 0 : index
      %c0_67 = arith.constant 0 : index
      %105 = vector.load %arg20[%c0_66, %c0_67] : memref<1x256xf32, #tpu.memory_space<vmem>>, vector<1x256xf32>
      %106 = vector.broadcast %105 : vector<1x256xf32> to vector<2x256xf32>
      %107 = arith.addf %104, %106 : vector<2x256xf32>
      %cst_68 = arith.constant 0.000000e+00 : f32
      %108 = vector.broadcast %cst_68 : f32 to vector<2x256xf32>
      %109 = arith.maximumf %107, %108 : vector<2x256xf32>
      %c0_69 = arith.constant 0 : index
      %c0_70 = arith.constant 0 : index
      %110 = vector.load %arg21[%c0_69, %c0_70] : memref<256x6xf32, #tpu.memory_space<vmem>>, vector<256x6xf32>
      %cst_71 = arith.constant dense<0.000000e+00> : vector<2x6xf32>
      %111 = tpu.matmul %109, %110, %cst_71 {dimension_numbers = #tpu.dot_dimension_numbers<[1], [0], [0], [1], [0, 0, 1, 1], [], []>} : vector<2x256xf32>, vector<256x6xf32>, vector<2x6xf32> -> vector<2x6xf32>
      %c0_72 = arith.constant 0 : index
      %c0_73 = arith.constant 0 : index
      %112 = vector.load %arg22[%c0_72, %c0_73] : memref<1x6xf32, #tpu.memory_space<vmem>>, vector<1x6xf32>
      %113 = vector.broadcast %112 : vector<1x6xf32> to vector<2x6xf32>
      %114 = arith.addf %111, %113 : vector<2x6xf32>
      %115 = arith.negf %114 : vector<2x6xf32>
      %116 = math.exp %115 : vector<2x6xf32>
      %cst_74 = arith.constant 1.000000e+00 : f32
      %117 = vector.broadcast %cst_74 : f32 to vector<2x6xf32>
      %118 = arith.addf %117, %116 : vector<2x6xf32>
      %119 = arith.divf %117, %118 : vector<2x6xf32>
      %c0_75 = arith.constant 0 : index
      %c0_76 = arith.constant 0 : index
      %120 = vector.load %arg23[%c0_75, %c0_76] : memref<2x6xf32, #tpu.memory_space<vmem>>, vector<2x6xf32>
      tpu.vector_store %arg23[%c0_75, %c0_76], %119 {strides = array<i32>} : memref<2x6xf32, #tpu.memory_space<vmem>>, vector<2x6xf32>,
    } else {
    }
    return
  }
  func.func @transform_0(%arg0: i32) -> (i32, i32) {
    %c0_i32 = arith.constant 0 : i32
    %c0_i32_0 = arith.constant 0 : i32
    %c0_i32_1 = arith.constant 0 : i32
    return %c0_i32, %c0_i32_0 : i32, i32
  }
  func.func @transform_1(%arg0: i32) -> (i32, i32) {
    %c0_i32 = arith.constant 0 : i32
    %c0_i32_0 = arith.constant 0 : i32
    %c0_i32_1 = arith.constant 0 : i32
    return %c0_i32, %c0_i32_0 : i32, i32
  }
  func.func @transform_2(%arg0: i32) -> (i32, i32) {
    %c0_i32 = arith.constant 0 : i32
    %c0_i32_0 = arith.constant 0 : i32
    %c0_i32_1 = arith.constant 0 : i32
    return %c0_i32, %c0_i32_0 : i32, i32
  }
  func.func @transform_3(%arg0: i32) -> (i32, i32) {
    %c0_i32 = arith.constant 0 : i32
    %c0_i32_0 = arith.constant 0 : i32
    %c0_i32_1 = arith.constant 0 : i32
    return %c0_i32, %c0_i32_0 : i32, i32
  }
  func.func @transform_4(%arg0: i32) -> (i32, i32) {
    %c0_i32 = arith.constant 0 : i32
    %c0_i32_0 = arith.constant 0 : i32
    %c0_i32_1 = arith.constant 0 : i32
    return %c0_i32, %c0_i32_0 : i32, i32
  }
  func.func @transform_5(%arg0: i32) -> (i32, i32) {
    %c0_i32 = arith.constant 0 : i32
    %c0_i32_0 = arith.constant 0 : i32
    %c0_i32_1 = arith.constant 0 : i32
    return %c0_i32, %c0_i32_0 : i32, i32
  }
  func.func @transform_6(%arg0: i32) -> (i32, i32) {
    %c0_i32 = arith.constant 0 : i32
    %c0_i32_0 = arith.constant 0 : i32
    %c0_i32_1 = arith.constant 0 : i32
    return %c0_i32, %c0_i32_0 : i32, i32
  }
  func.func @transform_7(%arg0: i32) -> (i32, i32) {
    %c0_i32 = arith.constant 0 : i32
    %c0_i32_0 = arith.constant 0 : i32
    %c0_i32_1 = arith.constant 0 : i32
    return %c0_i32, %c0_i32_0 : i32, i32
  }
  func.func @transform_8(%arg0: i32) -> (i32, i32) {
    %c0_i32 = arith.constant 0 : i32
    %c0_i32_0 = arith.constant 0 : i32
    %c0_i32_1 = arith.constant 0 : i32
    return %c0_i32, %c0_i32_0 : i32, i32
  }
  func.func @transform_9(%arg0: i32) -> (i32, i32) {
    %c0_i32 = arith.constant 0 : i32
    %c0_i32_0 = arith.constant 0 : i32
    %c0_i32_1 = arith.constant 0 : i32
    return %c0_i32, %c0_i32_0 : i32, i32
  }
  func.func @transform_10(%arg0: i32) -> (i32, i32) {
    %c0_i32 = arith.constant 0 : i32
    %c0_i32_0 = arith.constant 0 : i32
    return %c0_i32, %arg0 : i32, i32
  }
  func.func @transform_11(%arg0: i32) -> (i32, i32) {
    %c0_i32 = arith.constant 0 : i32
    %c0_i32_0 = arith.constant 0 : i32
    return %c0_i32, %arg0 : i32, i32
  }
  func.func @transform_12(%arg0: i32) -> (i32, i32) {
    %c0_i32 = arith.constant 0 : i32
    %c0_i32_0 = arith.constant 0 : i32
    return %arg0, %c0_i32 : i32, i32
  }
  func.func @transform_13(%arg0: i32) -> (i32, i32) {
    %c0_i32 = arith.constant 0 : i32
    %c0_i32_0 = arith.constant 0 : i32
    %c0_i32_1 = arith.constant 0 : i32
    return %c0_i32, %c0_i32_0 : i32, i32
  }
  func.func @transform_14(%arg0: i32) -> (i32, i32) {
    %c0_i32 = arith.constant 0 : i32
    %c0_i32_0 = arith.constant 0 : i32
    %c0_i32_1 = arith.constant 0 : i32
    return %c0_i32, %c0_i32_0 : i32, i32
  }
  func.func @transform_15(%arg0: i32) -> (i32, i32) {
    %c0_i32 = arith.constant 0 : i32
    %c0_i32_0 = arith.constant 0 : i32
    %c0_i32_1 = arith.constant 0 : i32
    return %c0_i32, %c0_i32_0 : i32, i32
  }
  func.func @transform_17(%arg0: i32) -> (i32, i32) {
    %c0_i32 = arith.constant 0 : i32
    %c0_i32_0 = arith.constant 0 : i32
    %c0_i32_1 = arith.constant 0 : i32
    return %c0_i32, %c0_i32_0 : i32, i32
  }
  func.func @transform_19(%arg0: i32) -> (i32, i32) {
    %c0_i32 = arith.constant 0 : i32
    %c0_i32_0 = arith.constant 0 : i32
    %c0_i32_1 = arith.constant 0 : i32
    return %c0_i32, %c0_i32_0 : i32, i32
  }
  func.func @transform_20(%arg0: i32) -> (i32, i32) {
    %c0_i32 = arith.constant 0 : i32
    %c0_i32_0 = arith.constant 0 : i32
    %c0_i32_1 = arith.constant 0 : i32
    return %c0_i32, %c0_i32_0 : i32, i32
  }
  func.func @transform_21(%arg0: i32) -> (i32, i32) {
    %c0_i32 = arith.constant 0 : i32
    %c0_i32_0 = arith.constant 0 : i32
    %c0_i32_1 = arith.constant 0 : i32
    return %c0_i32, %c0_i32_0 : i32, i32
  }
  func.func @transform_22(%arg0: i32) -> (i32, i32) {
    %c0_i32 = arith.constant 0 : i32
    %c0_i32_0 = arith.constant 0 : i32
    %c0_i32_1 = arith.constant 0 : i32
    return %c0_i32, %c0_i32_0 : i32, i32
  }
}

</mosaic_0001>

<llo_original>
// kernel: transformer_mlp_forward.1
$region0: #{transformer_mlp_forward.1}
  #allocation0 [shape = 'u32[]', space=smem, size = 0x4, offset = 0x4, fixed_abs, tag = 'smem constant byte address 0x4 - core index']
  #allocation1 [shape = 'u32[144,128]{1,0:T(1,128)}', space=vmem, size = 0x12000, scoped, tag = 'internal scratch']
  #allocation2 [shape = 'f32[16,32]{1,0:T(8,128)}', space=vmem, size = 0x2000, scoped, tag = 'scratch operand']
  #allocation3 [shape = 'f32[16,32]{1,0:T(8,128)}', space=vmem, size = 0x2000, scoped, tag = 'scratch operand']
  #allocation4 [shape = 'f32[16,32]{1,0:T(8,128)}', space=vmem, size = 0x2000, scoped, tag = 'scratch operand']
  #allocation5 [shape = 'bf16[256,512]{1,0:T(16,128)(2,1)}', space=vmem, size = 0x40000, scoped, tag = 'scratch operand']
  #allocation6 [shape = 'bf16[512,256]{1,0:T(16,128)(2,1)}', space=vmem, size = 0x40000, scoped, tag = 'scratch operand']
  #allocation7 [shape = 's32[2]{0}', space=sflag, size = 0x8, scoped, tag = 'scratch operand']
  #allocation11 [shape = 's32[]', space=sflag, size = 0x4, offset = 0, fixed_abs, tag = 'sflag constant byte address 0x0 - dummy sync flag']
  #allocation12 [shape = 's32[]', space=sflag, size = 0x4, offset = 0, fixed_abs, tag = 'sflag constant byte address 0x0 - dummy sync flag']
  %s0 = inlined_call_operand.vmem [shape: s32[16,1], index: 0, kind: input, shape index: {}]
  %s1 = inlined_call_operand.vmem [shape: f32[128,32], index: 1, kind: input, shape index: {}]
  %s2 = inlined_call_operand.vmem [shape: f32[32,96], index: 2, kind: input, shape index: {}]
  %s3 = inlined_call_operand.vmem [shape: f32[1,96], index: 3, kind: input, shape index: {}]
  %s4 = inlined_call_operand.vmem [shape: f32[32,4], index: 4, kind: input, shape index: {}]
  %s5 = inlined_call_operand.vmem [shape: f32[4,32], index: 5, kind: input, shape index: {}]
  %s6 = inlined_call_operand.vmem [shape: f32[32,32], index: 6, kind: input, shape index: {}]
  %s7 = inlined_call_operand.vmem [shape: f32[1,32], index: 7, kind: input, shape index: {}]
  %s8 = inlined_call_operand.vmem [shape: f32[1,32], index: 8, kind: input, shape index: {}]
  %s9 = inlined_call_operand.vmem [shape: f32[1,32], index: 9, kind: input, shape index: {}]
  %s10 = inlined_call_operand.vmem [shape: bf16[32,2048], index: 10, kind: input, shape index: {}]
  %s11 = inlined_call_operand.vmem [shape: f32[1,2048], index: 11, kind: input, shape index: {}]
  %s12 = inlined_call_operand.vmem [shape: bf16[2048,32], index: 12, kind: input, shape index: {}]
  %s13 = inlined_call_operand.vmem [shape: f32[1,32], index: 13, kind: input, shape index: {}]
  %s14 = inlined_call_operand.vmem [shape: f32[1,32], index: 14, kind: input, shape index: {}]
  %s15 = inlined_call_operand.vmem [shape: f32[1,32], index: 15, kind: input, shape index: {}]
  %s16 = inlined_call_operand.vmem [shape: bf16[256,512], index: 16, kind: input, shape index: {}]
  %s17 = inlined_call_operand.vmem [shape: f32[1,512], index: 17, kind: input, shape index: {}]
  %s18 = inlined_call_operand.vmem [shape: bf16[512,256], index: 18, kind: input, shape index: {}]
  %s19 = inlined_call_operand.vmem [shape: f32[1,256], index: 19, kind: input, shape index: {}]
  %s20 = inlined_call_operand.vmem [shape: f32[256,6], index: 20, kind: input, shape index: {}]
  %s21 = inlined_call_operand.vmem [shape: f32[1,6], index: 21, kind: input, shape index: {}]
  %s22 = inlined_call_operand.hbm [shape: f32[2,6], index: 22, kind: output, shape index: {}]
  %s23 = sld [smem:[#allocation0]]
  $region218: #{transformer_mlp_forward.1} parent=0
    _
  %s25 = ssub.s32 1, %s23
  %s26 = scalar_select 0, %s25, %s23
  $region1: #{transformer_mlp_forward.1} parent=0
    #allocation8 [shape = 'u8[65536]{0}', space=vmem, size = 0x10000, scoped, tag = 'input window, operand 10']
    #allocation9 [shape = 'u8[1024]{0}', space=vmem, size = 0x400, scoped, tag = 'output window, operand 0, single buffered']
    #allocation10 [shape = 's32[2]{0}', space=sflag, size = 0x8, scoped, tag = 'scoped memory for transformer_mlp_forward.1']
    %27 = vsyncpa [#allocation10], 0
    loop: start=0, step=1, limit=6
    $region2: #{transformer_mlp_forward.1} parent=1 // loop_pre_header
      _
    $region3: #{transformer_mlp_forward.1} parent=1 // loop_header
      %s29 = sphi 0, %s33
      %p30 = scmp.ge.s32.totalorder %s29, 6
      %s37 = sphi 0, %s37
      %s39 = sphi 0, %s37
      %s40 = sphi 0, %s39
      %s54 = sphi 0, %s40
      %s58 = sphi 0, %s58
      %s60 = sphi 0, %s58
      %s61 = sphi 0, %s60
      %s75 = sphi 0, %s61
      %s79 = sphi 0, %s79
      %s81 = sphi 0, %s79
      %s82 = sphi 0, %s81
      %s96 = sphi 0, %s82
      %s100 = sphi 0, %s100
      %s102 = sphi 0, %s100
      %s103 = sphi 0, %s102
      %s117 = sphi 0, %s103
      %s121 = sphi 0, %s121
      %s123 = sphi 0, %s121
      %s124 = sphi 0, %s123
      %s138 = sphi 0, %s124
      %s142 = sphi 0, %s142
      %s144 = sphi 0, %s142
      %s145 = sphi 0, %s144
      %s159 = sphi 0, %s145
      %s163 = sphi 0, %s163
      %s165 = sphi 0, %s163
      %s166 = sphi 0, %s165
      %s180 = sphi 0, %s166
      %s184 = sphi 0, %s184
      %s186 = sphi 0, %s184
      %s187 = sphi 0, %s186
      %s201 = sphi 0, %s187
      %s205 = sphi 0, %s205
      %s207 = sphi 0, %s205
      %s208 = sphi 0, %s207
      %s222 = sphi 0, %s208
      %s226 = sphi 0, %s226
      %s228 = sphi 0, %s226
      %s229 = sphi 0, %s228
      %s243 = sphi 0, %s229
      %s249 = sphi 0, %s251
      %s252 = sphi 0, %s249
      %s253 = sphi 0, %s252
      %s269 = sphi 0, %s253
      %s275 = sphi 0, %s277
      %s278 = sphi 0, %s275
      %s279 = sphi 0, %s278
      %s295 = sphi 0, %s279
      %s301 = sphi 0, %s303
      %s304 = sphi 0, %s301
      %s305 = sphi 0, %s304
      %s321 = sphi 0, %s305
      %s325 = sphi 0, %s325
      %s327 = sphi 0, %s325
      %s328 = sphi 0, %s327
      %s342 = sphi 0, %s328
      %s346 = sphi 0, %s346
      %s348 = sphi 0, %s346
      %s349 = sphi 0, %s348
      %s363 = sphi 0, %s349
      %s367 = sphi 0, %s367
      %s369 = sphi 0, %s367
      %s370 = sphi 0, %s369
      %s384 = sphi 0, %s370
      %s388 = sphi 0, %s388
      %s390 = sphi 0, %s388
      %s391 = sphi 0, %s390
      %s405 = sphi 0, %s391
      %s409 = sphi 0, %s409
      %s411 = sphi 0, %s409
      %s412 = sphi 0, %s411
      %s426 = sphi 0, %s412
      %s430 = sphi 0, %s430
      %s432 = sphi 0, %s430
      %s433 = sphi 0, %s432
      %s447 = sphi 0, %s433
      %s451 = sphi 0, %s451
      %s453 = sphi 0, %s451
      %s454 = sphi 0, %s453
      %s468 = sphi 0, %s454
      %s472 = sphi 0, %s472
      %s474 = sphi 0, %s472
      %s475 = sphi 0, %s474
      %s489 = sphi 0, %s475
    $region4: #{transformer_mlp_forward.1} parent=1 // loop_header_branch
      %32 = sbr.rel (%p30) target = $region8
    $region5: #{transformer_mlp_forward.1} parent=1 // loop_body
      %s34 = ssub.s32 %s29, 1
      %s35 = ssub.s32 %s29, 2
      %s36 = sadd.s32 %s29, 1
      %s38 = sadd.s32 %s37, 1
      %p41 = scmp.eq.s32.totalorder %s29, 3
      %p42 = scmp.ne.s32.totalorder %s37, %s39
      %p43 = scmp.eq.s32.totalorder %s29, 0
      %p44 = por %p42, %p43
      %p45 = scmp.ne.s32.totalorder %s37, %s39
      %p46 = scmp.eq.s32.totalorder %s34, 3
      %p47 = por %p45, %p46
      %p48 = scmp.ne.s32.totalorder %s39, %s40
      %p49 = scmp.eq.s32.totalorder %s34, 0
      %p50 = por %p48, %p49
      %p51 = scmp.ne.s32.totalorder %s39, %s40
      %p52 = scmp.eq.s32.totalorder %s35, 3
      %p53 = por %p51, %p52
      %p55 = scmp.ne.s32.totalorder %s40, %s54
      %p56 = scmp.eq.s32.totalorder %s35, 0
      %p57 = por %p55, %p56
      %s59 = sadd.s32 %s58, 1
      %p62 = scmp.eq.s32.totalorder %s29, 3
      %p63 = scmp.ne.s32.totalorder %s58, %s60
      %p64 = scmp.eq.s32.totalorder %s29, 0
      %p65 = por %p63, %p64
      %p66 = scmp.ne.s32.totalorder %s58, %s60
      %p67 = scmp.eq.s32.totalorder %s34, 3
      %p68 = por %p66, %p67
      %p69 = scmp.ne.s32.totalorder %s60, %s61
      %p70 = scmp.eq.s32.totalorder %s34, 0
      %p71 = por %p69, %p70
      %p72 = scmp.ne.s32.totalorder %s60, %s61
      %p73 = scmp.eq.s32.totalorder %s35, 3
      %p74 = por %p72, %p73
      %p76 = scmp.ne.s32.totalorder %s61, %s75
      %p77 = scmp.eq.s32.totalorder %s35, 0
      %p78 = por %p76, %p77
      %s80 = sadd.s32 %s79, 1
      %p83 = scmp.eq.s32.totalorder %s29, 3
      %p84 = scmp.ne.s32.totalorder %s79, %s81
      %p85 = scmp.eq.s32.totalorder %s29, 0
      %p86 = por %p84, %p85
      %p87 = scmp.ne.s32.totalorder %s79, %s81
      %p88 = scmp.eq.s32.totalorder %s34, 3
      %p89 = por %p87, %p88
      %p90 = scmp.ne.s32.totalorder %s81, %s82
      %p91 = scmp.eq.s32.totalorder %s34, 0
      %p92 = por %p90, %p91
      %p93 = scmp.ne.s32.totalorder %s81, %s82
      %p94 = scmp.eq.s32.totalorder %s35, 3
      %p95 = por %p93, %p94
      %p97 = scmp.ne.s32.totalorder %s82, %s96
      %p98 = scmp.eq.s32.totalorder %s35, 0
      %p99 = por %p97, %p98
      %s101 = sadd.s32 %s100, 1
      %p104 = scmp.eq.s32.totalorder %s29, 3
      %p105 = scmp.ne.s32.totalorder %s100, %s102
      %p106 = scmp.eq.s32.totalorder %s29, 0
      %p107 = por %p105, %p106
      %p108 = scmp.ne.s32.totalorder %s100, %s102
      %p109 = scmp.eq.s32.totalorder %s34, 3
      %p110 = por %p108, %p109
      %p111 = scmp.ne.s32.totalorder %s102, %s103
      %p112 = scmp.eq.s32.totalorder %s34, 0
      %p113 = por %p111, %p112
      %p114 = scmp.ne.s32.totalorder %s102, %s103
      %p115 = scmp.eq.s32.totalorder %s35, 3
      %p116 = por %p114, %p115
      %p118 = scmp.ne.s32.totalorder %s103, %s117
      %p119 = scmp.eq.s32.totalorder %s35, 0
      %p120 = por %p118, %p119
      %s122 = sadd.s32 %s121, 1
      %p125 = scmp.eq.s32.totalorder %s29, 3
      %p126 = scmp.ne.s32.totalorder %s121, %s123
      %p127 = scmp.eq.s32.totalorder %s29, 0
      %p128 = por %p126, %p127
      %p129 = scmp.ne.s32.totalorder %s121, %s123
      %p130 = scmp.eq.s32.totalorder %s34, 3
      %p131 = por %p129, %p130
      %p132 = scmp.ne.s32.totalorder %s123, %s124
      %p133 = scmp.eq.s32.totalorder %s34, 0
      %p134 = por %p132, %p133
      %p135 = scmp.ne.s32.totalorder %s123, %s124
      %p136 = scmp.eq.s32.totalorder %s35, 3
      %p137 = por %p135, %p136
      %p139 = scmp.ne.s32.totalorder %s124, %s138
      %p140 = scmp.eq.s32.totalorder %s35, 0
      %p141 = por %p139, %p140
      %s143 = sadd.s32 %s142, 1
      %p146 = scmp.eq.s32.totalorder %s29, 3
      %p147 = scmp.ne.s32.totalorder %s142, %s144
      %p148 = scmp.eq.s32.totalorder %s29, 0
      %p149 = por %p147, %p148
      %p150 = scmp.ne.s32.totalorder %s142, %s144
      %p151 = scmp.eq.s32.totalorder %s34, 3
      %p152 = por %p150, %p151
      %p153 = scmp.ne.s32.totalorder %s144, %s145
      %p154 = scmp.eq.s32.totalorder %s34, 0
      %p155 = por %p153, %p154
      %p156 = scmp.ne.s32.totalorder %s144, %s145
      %p157 = scmp.eq.s32.totalorder %s35, 3
      %p158 = por %p156, %p157
      %p160 = scmp.ne.s32.totalorder %s145, %s159
      %p161 = scmp.eq.s32.totalorder %s35, 0
      %p162 = por %p160, %p161
      %s164 = sadd.s32 %s163, 1
      %p167 = scmp.eq.s32.totalorder %s29, 3
      %p168 = scmp.ne.s32.totalorder %s163, %s165
      %p169 = scmp.eq.s32.totalorder %s29, 0
      %p170 = por %p168, %p169
      %p171 = scmp.ne.s32.totalorder %s163, %s165
      %p172 = scmp.eq.s32.totalorder %s34, 3
      %p173 = por %p171, %p172
      %p174 = scmp.ne.s32.totalorder %s165, %s166
      %p175 = scmp.eq.s32.totalorder %s34, 0
      %p176 = por %p174, %p175
      %p177 = scmp.ne.s32.totalorder %s165, %s166
      %p178 = scmp.eq.s32.totalorder %s35, 3
      %p179 = por %p177, %p178
      %p181 = scmp.ne.s32.totalorder %s166, %s180
      %p182 = scmp.eq.s32.totalorder %s35, 0
      %p183 = por %p181, %p182
      %s185 = sadd.s32 %s184, 1
      %p188 = scmp.eq.s32.totalorder %s29, 3
      %p189 = scmp.ne.s32.totalorder %s184, %s186
      %p190 = scmp.eq.s32.totalorder %s29, 0
      %p191 = por %p189, %p190
      %p192 = scmp.ne.s32.totalorder %s184, %s186
      %p193 = scmp.eq.s32.totalorder %s34, 3
      %p194 = por %p192, %p193
      %p195 = scmp.ne.s32.totalorder %s186, %s187
      %p196 = scmp.eq.s32.totalorder %s34, 0
      %p197 = por %p195, %p196
      %p198 = scmp.ne.s32.totalorder %s186, %s187
      %p199 = scmp.eq.s32.totalorder %s35, 3
      %p200 = por %p198, %p199
      %p202 = scmp.ne.s32.totalorder %s187, %s201
      %p203 = scmp.eq.s32.totalorder %s35, 0
      %p204 = por %p202, %p203
      %s206 = sadd.s32 %s205, 1
      %p209 = scmp.eq.s32.totalorder %s29, 3
      %p210 = scmp.ne.s32.totalorder %s205, %s207
      %p211 = scmp.eq.s32.totalorder %s29, 0
      %p212 = por %p210, %p211
      %p213 = scmp.ne.s32.totalorder %s205, %s207
      %p214 = scmp.eq.s32.totalorder %s34, 3
      %p215 = por %p213, %p214
      %p216 = scmp.ne.s32.totalorder %s207, %s208
      %p217 = scmp.eq.s32.totalorder %s34, 0
      %p218 = por %p216, %p217
      %p219 = scmp.ne.s32.totalorder %s207, %s208
      %p220 = scmp.eq.s32.totalorder %s35, 3
      %p221 = por %p219, %p220
      %p223 = scmp.ne.s32.totalorder %s208, %s222
      %p224 = scmp.eq.s32.totalorder %s35, 0
      %p225 = por %p223, %p224
      %s227 = sadd.s32 %s226, 1
      %p230 = scmp.eq.s32.totalorder %s29, 3
      %p231 = scmp.ne.s32.totalorder %s226, %s228
      %p232 = scmp.eq.s32.totalorder %s29, 0
      %p233 = por %p231, %p232
      %p234 = scmp.ne.s32.totalorder %s226, %s228
      %p235 = scmp.eq.s32.totalorder %s34, 3
      %p236 = por %p234, %p235
      %p237 = scmp.ne.s32.totalorder %s228, %s229
      %p238 = scmp.eq.s32.totalorder %s34, 0
      %p239 = por %p237, %p238
      %p240 = scmp.ne.s32.totalorder %s228, %s229
      %p241 = scmp.eq.s32.totalorder %s35, 3
      %p242 = por %p240, %p241
      %p244 = scmp.ne.s32.totalorder %s229, %s243
      %p245 = scmp.eq.s32.totalorder %s35, 0
      %p246 = por %p244, %p245
      %s247 = ssub.s32 %s29, %s36
      %p248 = scmp.eq.s32.totalorder %s247, 0
      %s250 = sadd.s32 %s249, 1
      %s251 = scalar_select %p248, %s249, %s250
      %p254 = pneg %p248
      %p255 = scmp.eq.s32.totalorder %s29, 3
      %p256 = por %p254, %p255
      %p257 = scmp.ne.s32.totalorder %s249, %s252
      %p258 = scmp.eq.s32.totalorder %s29, 0
      %p259 = por %p257, %p258
      %p260 = scmp.ne.s32.totalorder %s249, %s252
      %p261 = scmp.eq.s32.totalorder %s34, 3
      %p262 = por %p260, %p261
      %p263 = scmp.ne.s32.totalorder %s252, %s253
      %p264 = scmp.eq.s32.totalorder %s34, 0
      %p265 = por %p263, %p264
      %p266 = scmp.ne.s32.totalorder %s252, %s253
      %p267 = scmp.eq.s32.totalorder %s35, 3
      %p268 = por %p266, %p267
      %p270 = scmp.ne.s32.totalorder %s253, %s269
      %p271 = scmp.eq.s32.totalorder %s35, 0
      %p272 = por %p270, %p271
      %s273 = ssub.s32 %s29, %s36
      %p274 = scmp.eq.s32.totalorder %s273, 0
      %s276 = sadd.s32 %s275, 1
      %s277 = scalar_select %p274, %s275, %s276
      %p280 = pneg %p274
      %p281 = scmp.eq.s32.totalorder %s29, 3
      %p282 = por %p280, %p281
      %p283 = scmp.ne.s32.totalorder %s275, %s278
      %p284 = scmp.eq.s32.totalorder %s29, 0
      %p285 = por %p283, %p284
      %p286 = scmp.ne.s32.totalorder %s275, %s278
      %p287 = scmp.eq.s32.totalorder %s34, 3
      %p288 = por %p286, %p287
      %p289 = scmp.ne.s32.totalorder %s278, %s279
      %p290 = scmp.eq.s32.totalorder %s34, 0
      %p291 = por %p289, %p290
      %p292 = scmp.ne.s32.totalorder %s278, %s279
      %p293 = scmp.eq.s32.totalorder %s35, 3
      %p294 = por %p292, %p293
      %p296 = scmp.ne.s32.totalorder %s279, %s295
      %p297 = scmp.eq.s32.totalorder %s35, 0
      %p298 = por %p296, %p297
      %s299 = ssub.s32 %s29, %s36
      %p300 = scmp.eq.s32.totalorder %s299, 0
      %s302 = sadd.s32 %s301, 1
      %s303 = scalar_select %p300, %s301, %s302
      %p306 = pneg %p300
      %p307 = scmp.eq.s32.totalorder %s29, 3
      %p308 = por %p306, %p307
      %p309 = scmp.ne.s32.totalorder %s301, %s304
      %p310 = scmp.eq.s32.totalorder %s29, 0
      %p311 = por %p309, %p310
      %p312 = scmp.ne.s32.totalorder %s301, %s304
      %p313 = scmp.eq.s32.totalorder %s34, 3
      %p314 = por %p312, %p313
      %p315 = scmp.ne.s32.totalorder %s304, %s305
      %p316 = scmp.eq.s32.totalorder %s34, 0
      %p317 = por %p315, %p316
      %p318 = scmp.ne.s32.totalorder %s304, %s305
      %p319 = scmp.eq.s32.totalorder %s35, 3
      %p320 = por %p318, %p319
      %p322 = scmp.ne.s32.totalorder %s305, %s321
      %p323 = scmp.eq.s32.totalorder %s35, 0
      %p324 = por %p322, %p323
      %s326 = sadd.s32 %s325, 1
      %p329 = scmp.eq.s32.totalorder %s29, 3
      %p330 = scmp.ne.s32.totalorder %s325, %s327
      %p331 = scmp.eq.s32.totalorder %s29, 0
      %p332 = por %p330, %p331
      %p333 = scmp.ne.s32.totalorder %s325, %s327
      %p334 = scmp.eq.s32.totalorder %s34, 3
      %p335 = por %p333, %p334
      %p336 = scmp.ne.s32.totalorder %s327, %s328
      %p337 = scmp.eq.s32.totalorder %s34, 0
      %p338 = por %p336, %p337
      %p339 = scmp.ne.s32.totalorder %s327, %s328
      %p340 = scmp.eq.s32.totalorder %s35, 3
      %p341 = por %p339, %p340
      %p343 = scmp.ne.s32.totalorder %s328, %s342
      %p344 = scmp.eq.s32.totalorder %s35, 0
      %p345 = por %p343, %p344
      %s347 = sadd.s32 %s346, 1
      %p350 = scmp.eq.s32.totalorder %s29, 3
      %p351 = scmp.ne.s32.totalorder %s346, %s348
      %p352 = scmp.eq.s32.totalorder %s29, 0
      %p353 = por %p351, %p352
      %p354 = scmp.ne.s32.totalorder %s346, %s348
      %p355 = scmp.eq.s32.totalorder %s34, 3
      %p356 = por %p354, %p355
      %p357 = scmp.ne.s32.totalorder %s348, %s349
      %p358 = scmp.eq.s32.totalorder %s34, 0
      %p359 = por %p357, %p358
      %p360 = scmp.ne.s32.totalorder %s348, %s349
      %p361 = scmp.eq.s32.totalorder %s35, 3
      %p362 = por %p360, %p361
      %p364 = scmp.ne.s32.totalorder %s349, %s363
      %p365 = scmp.eq.s32.totalorder %s35, 0
      %p366 = por %p364, %p365
      %s368 = sadd.s32 %s367, 1
      %p371 = scmp.eq.s32.totalorder %s29, 3
      %p372 = scmp.ne.s32.totalorder %s367, %s369
      %p373 = scmp.eq.s32.totalorder %s29, 0
      %p374 = por %p372, %p373
      %p375 = scmp.ne.s32.totalorder %s367, %s369
      %p376 = scmp.eq.s32.totalorder %s34, 3
      %p377 = por %p375, %p376
      %p378 = scmp.ne.s32.totalorder %s369, %s370
      %p379 = scmp.eq.s32.totalorder %s34, 0
      %p380 = por %p378, %p379
      %p381 = scmp.ne.s32.totalorder %s369, %s370
      %p382 = scmp.eq.s32.totalorder %s35, 3
      %p383 = por %p381, %p382
      %p385 = scmp.ne.s32.totalorder %s370, %s384
      %p386 = scmp.eq.s32.totalorder %s35, 0
      %p387 = por %p385, %p386
      %s389 = sadd.s32 %s388, 1
      %p392 = scmp.eq.s32.totalorder %s29, 3
      %p393 = scmp.ne.s32.totalorder %s388, %s390
      %p394 = scmp.eq.s32.totalorder %s29, 0
      %p395 = por %p393, %p394
      %p396 = scmp.ne.s32.totalorder %s388, %s390
      %p397 = scmp.eq.s32.totalorder %s34, 3
      %p398 = por %p396, %p397
      %p399 = scmp.ne.s32.totalorder %s390, %s391
      %p400 = scmp.eq.s32.totalorder %s34, 0
      %p401 = por %p399, %p400
      %p402 = scmp.ne.s32.totalorder %s390, %s391
      %p403 = scmp.eq.s32.totalorder %s35, 3
      %p404 = por %p402, %p403
      %p406 = scmp.ne.s32.totalorder %s391, %s405
      %p407 = scmp.eq.s32.totalorder %s35, 0
      %p408 = por %p406, %p407
      %s410 = sadd.s32 %s409, 1
      %p413 = scmp.eq.s32.totalorder %s29, 3
      %p414 = scmp.ne.s32.totalorder %s409, %s411
      %p415 = scmp.eq.s32.totalorder %s29, 0
      %p416 = por %p414, %p415
      %p417 = scmp.ne.s32.totalorder %s409, %s411
      %p418 = scmp.eq.s32.totalorder %s34, 3
      %p419 = por %p417, %p418
      %p420 = scmp.ne.s32.totalorder %s411, %s412
      %p421 = scmp.eq.s32.totalorder %s34, 0
      %p422 = por %p420, %p421
      %p423 = scmp.ne.s32.totalorder %s411, %s412
      %p424 = scmp.eq.s32.totalorder %s35, 3
      %p425 = por %p423, %p424
      %p427 = scmp.ne.s32.totalorder %s412, %s426
      %p428 = scmp.eq.s32.totalorder %s35, 0
      %p429 = por %p427, %p428
      %s431 = sadd.s32 %s430, 1
      %p434 = scmp.eq.s32.totalorder %s29, 3
      %p435 = scmp.ne.s32.totalorder %s430, %s432
      %p436 = scmp.eq.s32.totalorder %s29, 0
      %p437 = por %p435, %p436
      %p438 = scmp.ne.s32.totalorder %s430, %s432
      %p439 = scmp.eq.s32.totalorder %s34, 3
      %p440 = por %p438, %p439
      %p441 = scmp.ne.s32.totalorder %s432, %s433
      %p442 = scmp.eq.s32.totalorder %s34, 0
      %p443 = por %p441, %p442
      %p444 = scmp.ne.s32.totalorder %s432, %s433
      %p445 = scmp.eq.s32.totalorder %s35, 3
      %p446 = por %p444, %p445
      %p448 = scmp.ne.s32.totalorder %s433, %s447
      %p449 = scmp.eq.s32.totalorder %s35, 0
      %p450 = por %p448, %p449
      %s452 = sadd.s32 %s451, 1
      %p455 = scmp.eq.s32.totalorder %s29, 3
      %p456 = scmp.ne.s32.totalorder %s451, %s453
      %p457 = scmp.eq.s32.totalorder %s29, 0
      %p458 = por %p456, %p457
      %p459 = scmp.ne.s32.totalorder %s451, %s453
      %p460 = scmp.eq.s32.totalorder %s34, 3
      %p461 = por %p459, %p460
      %p462 = scmp.ne.s32.totalorder %s453, %s454
      %p463 = scmp.eq.s32.totalorder %s34, 0
      %p464 = por %p462, %p463
      %p465 = scmp.ne.s32.totalorder %s453, %s454
      %p466 = scmp.eq.s32.totalorder %s35, 3
      %p467 = por %p465, %p466
      %p469 = scmp.ne.s32.totalorder %s454, %s468
      %p470 = scmp.eq.s32.totalorder %s35, 0
      %p471 = por %p469, %p470
      %s473 = sadd.s32 %s472, 1
      %p476 = scmp.eq.s32.totalorder %s29, 3
      %p477 = scmp.ne.s32.totalorder %s472, %s474
      %p478 = scmp.eq.s32.totalorder %s29, 0
      %p479 = por %p477, %p478
      %p480 = scmp.ne.s32.totalorder %s472, %s474
      %p481 = scmp.eq.s32.totalorder %s34, 3
      %p482 = por %p480, %p481
      %p483 = scmp.ne.s32.totalorder %s474, %s475
      %p484 = scmp.eq.s32.totalorder %s34, 0
      %p485 = por %p483, %p484
      %p486 = scmp.ne.s32.totalorder %s474, %s475
      %p487 = scmp.eq.s32.totalorder %s35, 3
      %p488 = por %p486, %p487
      %p490 = scmp.ne.s32.totalorder %s475, %s489
      %p491 = scmp.eq.s32.totalorder %s35, 0
      %p492 = por %p490, %p491
      %p493 = scmp.le.s32.totalorder 1, %s29
      %p494 = scmp.lt.s32.totalorder %s29, 5
      %p495 = pnand %p493, %p494
      %p496 = pneg %p495
      // Predicated region
      $region9: #{transformer_mlp_forward.1} parent=5 // pred_check
        _
      $region10: #{transformer_mlp_forward.1} parent=5 // pred_check_branch
        %498 = sbr.rel (%p495) target = $region12
      $region11: #{transformer_mlp_forward.1} parent=5 // pred_region
        %s499 = ssub.s32 %s29, 1
        // Predicated region
        $region13: #{transformer_mlp_forward.1} parent=11 // pred_check
          %p500 = pneg %p50
        $region14: #{transformer_mlp_forward.1} parent=11 // pred_check_branch
          %502 = sbr.rel (%p500) target = $region16
        $region15: #{transformer_mlp_forward.1} parent=11 // pred_region
          _
        $region16: #{transformer_mlp_forward.1} parent=11 // pred_fallthru
          _
        // Predicated region
        $region17: #{transformer_mlp_forward.1} parent=11 // pred_check
          %p503 = pneg %p71
        $region18: #{transformer_mlp_forward.1} parent=11 // pred_check_branch
          %505 = sbr.rel (%p503) target = $region20
        $region19: #{transformer_mlp_forward.1} parent=11 // pred_region
          _
        $region20: #{transformer_mlp_forward.1} parent=11 // pred_fallthru
          _
        // Predicated region
        $region21: #{transformer_mlp_forward.1} parent=11 // pred_check
          %p506 = pneg %p92
        $region22: #{transformer_mlp_forward.1} parent=11 // pred_check_branch
          %508 = sbr.rel (%p506) target = $region24
        $region23: #{transformer_mlp_forward.1} parent=11 // pred_region
          _
        $region24: #{transformer_mlp_forward.1} parent=11 // pred_fallthru
          _
        // Predicated region
        $region25: #{transformer_mlp_forward.1} parent=11 // pred_check
          %p509 = pneg %p113
        $region26: #{transformer_mlp_forward.1} parent=11 // pred_check_branch
          %511 = sbr.rel (%p509) target = $region28
        $region27: #{transformer_mlp_forward.1} parent=11 // pred_region
          _
        $region28: #{transformer_mlp_forward.1} parent=11 // pred_fallthru
          _
        // Predicated region
        $region29: #{transformer_mlp_forward.1} parent=11 // pred_check
          %p512 = pneg %p134
        $region30: #{transformer_mlp_forward.1} parent=11 // pred_check_branch
          %514 = sbr.rel (%p512) target = $region32
        $region31: #{transformer_mlp_forward.1} parent=11 // pred_region
          _
        $region32: #{transformer_mlp_forward.1} parent=11 // pred_fallthru
          _
        // Predicated region
        $region33: #{transformer_mlp_forward.1} parent=11 // pred_check
          %p515 = pneg %p155
        $region34: #{transformer_mlp_forward.1} parent=11 // pred_check_branch
          %517 = sbr.rel (%p515) target = $region36
        $region35: #{transformer_mlp_forward.1} parent=11 // pred_region
          _
        $region36: #{transformer_mlp_forward.1} parent=11 // pred_fallthru
          _
        // Predicated region
        $region37: #{transformer_mlp_forward.1} parent=11 // pred_check
          %p518 = pneg %p176
        $region38: #{transformer_mlp_forward.1} parent=11 // pred_check_branch
          %520 = sbr.rel (%p518) target = $region40
        $region39: #{transformer_mlp_forward.1} parent=11 // pred_region
          _
        $region40: #{transformer_mlp_forward.1} parent=11 // pred_fallthru
          _
        // Predicated region
        $region41: #{transformer_mlp_forward.1} parent=11 // pred_check
          %p521 = pneg %p197
        $region42: #{transformer_mlp_forward.1} parent=11 // pred_check_branch
          %523 = sbr.rel (%p521) target = $region44
        $region43: #{transformer_mlp_forward.1} parent=11 // pred_region
          _
        $region44: #{transformer_mlp_forward.1} parent=11 // pred_fallthru
          _
        // Predicated region
        $region45: #{transformer_mlp_forward.1} parent=11 // pred_check
          %p524 = pneg %p218
        $region46: #{transformer_mlp_forward.1} parent=11 // pred_check_branch
          %526 = sbr.rel (%p524) target = $region48
        $region47: #{transformer_mlp_forward.1} parent=11 // pred_region
          _
        $region48: #{transformer_mlp_forward.1} parent=11 // pred_fallthru
          _
        // Predicated region
        $region49: #{transformer_mlp_forward.1} parent=11 // pred_check
          %p527 = pneg %p239
        $region50: #{transformer_mlp_forward.1} parent=11 // pred_check_branch
          %529 = sbr.rel (%p527) target = $region52
        $region51: #{transformer_mlp_forward.1} parent=11 // pred_region
          _
        $region52: #{transformer_mlp_forward.1} parent=11 // pred_fallthru
          _
        // Predicated region
        $region53: #{transformer_mlp_forward.1} parent=11 // pred_check
          %p530 = pneg %p338
        $region54: #{transformer_mlp_forward.1} parent=11 // pred_check_branch
          %532 = sbr.rel (%p530) target = $region56
        $region55: #{transformer_mlp_forward.1} parent=11 // pred_region
          _
        $region56: #{transformer_mlp_forward.1} parent=11 // pred_fallthru
          _
        // Predicated region
        $region57: #{transformer_mlp_forward.1} parent=11 // pred_check
          %p533 = pneg %p359
        $region58: #{transformer_mlp_forward.1} parent=11 // pred_check_branch
          %535 = sbr.rel (%p533) target = $region60
        $region59: #{transformer_mlp_forward.1} parent=11 // pred_region
          _
        $region60: #{transformer_mlp_forward.1} parent=11 // pred_fallthru
          _
        // Predicated region
        $region61: #{transformer_mlp_forward.1} parent=11 // pred_check
          %p536 = pneg %p380
        $region62: #{transformer_mlp_forward.1} parent=11 // pred_check_branch
          %538 = sbr.rel (%p536) target = $region64
        $region63: #{transformer_mlp_forward.1} parent=11 // pred_region
          _
        $region64: #{transformer_mlp_forward.1} parent=11 // pred_fallthru
          _
        // Predicated region
        $region65: #{transformer_mlp_forward.1} parent=11 // pred_check
          %p539 = pneg %p401
        $region66: #{transformer_mlp_forward.1} parent=11 // pred_check_branch
          %541 = sbr.rel (%p539) target = $region68
        $region67: #{transformer_mlp_forward.1} parent=11 // pred_region
          _
        $region68: #{transformer_mlp_forward.1} parent=11 // pred_fallthru
          _
        // Predicated region
        $region69: #{transformer_mlp_forward.1} parent=11 // pred_check
          %p542 = pneg %p422
        $region70: #{transformer_mlp_forward.1} parent=11 // pred_check_branch
          %544 = sbr.rel (%p542) target = $region72
        $region71: #{transformer_mlp_forward.1} parent=11 // pred_region
          _
        $region72: #{transformer_mlp_forward.1} parent=11 // pred_fallthru
          _
        // Predicated region
        $region73: #{transformer_mlp_forward.1} parent=11 // pred_check
          %p545 = pneg %p443
        $region74: #{transformer_mlp_forward.1} parent=11 // pred_check_branch
          %547 = sbr.rel (%p545) target = $region76
        $region75: #{transformer_mlp_forward.1} parent=11 // pred_region
          _
        $region76: #{transformer_mlp_forward.1} parent=11 // pred_fallthru
          _
        // Predicated region
        $region77: #{transformer_mlp_forward.1} parent=11 // pred_check
          %p548 = pneg %p464
        $region78: #{transformer_mlp_forward.1} parent=11 // pred_check_branch
          %550 = sbr.rel (%p548) target = $region80
        $region79: #{transformer_mlp_forward.1} parent=11 // pred_region
          _
        $region80: #{transformer_mlp_forward.1} parent=11 // pred_fallthru
          _
      $region12: #{transformer_mlp_forward.1} parent=5 // pred_fallthru
        _
      %p551 = scmp.lt.s32.totalorder %s29, 4
      // Predicated region
      $region81: #{transformer_mlp_forward.1} parent=5 // pred_check
        %p552 = pneg %p551
      $region82: #{transformer_mlp_forward.1} parent=5 // pred_check_branch
        %554 = sbr.rel (%p552) target = $region84
      $region83: #{transformer_mlp_forward.1} parent=5 // pred_region
        // Predicated region
        $region85: #{transformer_mlp_forward.1} parent=83 // pred_check
          %p555 = pneg %p259
        $region86: #{transformer_mlp_forward.1} parent=83 // pred_check_branch
          %557 = sbr.rel (%p555) target = $region88
        $region87: #{transformer_mlp_forward.1} parent=83 // pred_region
          %s558 = sand.u32 %s249, 1
          %s559 = sand.u32 %s249, 1
          %s560 = smul.addr %s559, 64
          %s561 = scalar_lea.vmem [#allocation8], %s560
          %s562 = smul.u32 4, %s29
          %s563 = smul.addr %s562, 4
          %s564 = scalar_lea.vmem %s10, %s563
          // Predicated region
          $region89: #{transformer_mlp_forward.1} parent=87 // pred_check
            _
          $region90: #{transformer_mlp_forward.1} parent=87 // pred_check_branch
            %566 = sbr.rel (0) target = $region92
          $region91: #{transformer_mlp_forward.1} parent=87 // pred_region
            // Predicated region
            $region93: #{transformer_mlp_forward.1} parent=91 // pred_check
              _
            $region94: #{transformer_mlp_forward.1} parent=91 // pred_check_branch
              %568 = sbr.rel (0) target = $region96
            $region95: #{transformer_mlp_forward.1} parent=91 // pred_region
              loop: start=0, step=1, limit=1
              $region97: #{transformer_mlp_forward.1} parent=95 // loop_pre_header
                _
              $region98: #{transformer_mlp_forward.1} parent=95 // loop_header
                %s570 = sphi 0, %s574
                %p571 = scmp.ge.s32.totalorder %s570, 1
                %s575 = sphi %s564, %s564
                %s576 = sphi %s561, %s561
              $region99: #{transformer_mlp_forward.1} parent=95 // loop_header_branch
                %573 = sbr.rel (%p571) target = $region103
              $region100: #{transformer_mlp_forward.1} parent=95 // loop_body
                %v577 = vld [vmem:[%s575] sm:$0xff]
                %578 = vst [vmem:[%s576] sm:$0xff] %v577
                %v579 = vld [vmem:[%s575 + $0x8] sm:$0xff]
                %580 = vst [vmem:[%s576 + $0x8] sm:$0xff] %v579
                %v581 = vld [vmem:[%s575 + $0x40] sm:$0xff]
                %582 = vst [vmem:[%s576 + $0x10] sm:$0xff] %v581
                %v583 = vld [vmem:[%s575 + $0x48] sm:$0xff]
                %584 = vst [vmem:[%s576 + $0x18] sm:$0xff] %v583
                %v585 = vld [vmem:[%s575 + $0x80] sm:$0xff]
                %586 = vst [vmem:[%s576 + $0x20] sm:$0xff] %v585
                %v587 = vld [vmem:[%s575 + $0x88] sm:$0xff]
                %588 = vst [vmem:[%s576 + $0x28] sm:$0xff] %v587
                %v589 = vld [vmem:[%s575 + $0xc0] sm:$0xff]
                %590 = vst [vmem:[%s576 + $0x30] sm:$0xff] %v589
                %v591 = vld [vmem:[%s575 + $0xc8] sm:$0xff]
                %592 = vst [vmem:[%s576 + $0x38] sm:$0xff] %v591
              $region101: #{transformer_mlp_forward.1} parent=95 // loop_footer
                %s574 = sadd.s32 1, %s570
              $region102: #{transformer_mlp_forward.1} parent=95 // loop_footer_branch
                %569 = sbr.rel target = $region98
              $region103: #{transformer_mlp_forward.1} parent=95 // loop_exit
                _
            $region96: #{transformer_mlp_forward.1} parent=91 // pred_fallthru
              _
            // Predicated region
            $region104: #{transformer_mlp_forward.1} parent=91 // pred_check
              _
            $region105: #{transformer_mlp_forward.1} parent=91 // pred_check_branch
              %594 = sbr.rel target = $region107
            $region106: #{transformer_mlp_forward.1} parent=91 // pred_region
              _
            $region107: #{transformer_mlp_forward.1} parent=91 // pred_fallthru
              _
          $region92: #{transformer_mlp_forward.1} parent=87 // pred_fallthru
            _
          %595 = vnop
        $region88: #{transformer_mlp_forward.1} parent=83 // pred_fallthru
          _
        // Predicated region
        $region108: #{transformer_mlp_forward.1} parent=83 // pred_check
          %p596 = pneg %p285
        $region109: #{transformer_mlp_forward.1} parent=83 // pred_check_branch
          %598 = sbr.rel (%p596) target = $region111
        $region110: #{transformer_mlp_forward.1} parent=83 // pred_region
          %s599 = smul.u32 4, %s29
          %p600 = scmp.lt.s32.totalorder %s599, 15
          %s601 = scalar_select %p600, %s599, 15
          %s602 = scalar_lea.vmem %s11, %s601
          %s603 = smul.u32 4, %s29
        $region111: #{transformer_mlp_forward.1} parent=83 // pred_fallthru
          _
        // Predicated region
        $region112: #{transformer_mlp_forward.1} parent=83 // pred_check
          %p604 = pneg %p311
        $region113: #{transformer_mlp_forward.1} parent=83 // pred_check_branch
          %606 = sbr.rel (%p604) target = $region115
        $region114: #{transformer_mlp_forward.1} parent=83 // pred_region
          %s607 = smul.u32 64, %s29
          %p608 = scmp.lt.s32.totalorder %s607, 255
          %s609 = scalar_select %p608, %s607, 255
          %s610 = smul.addr %s609, 4
          %s611 = scalar_lea.vmem %s12, %s610
          %s612 = smul.u32 64, %s29
        $region115: #{transformer_mlp_forward.1} parent=83 // pred_fallthru
          _
      $region84: #{transformer_mlp_forward.1} parent=5 // pred_fallthru
        _
      %p613 = scmp.le.s32.totalorder 1, %s29
      %p614 = scmp.lt.s32.totalorder %s29, 5
      %p615 = pnand %p613, %p614
      %p616 = pneg %p615
      // Predicated region
      $region116: #{transformer_mlp_forward.1} parent=5 // pred_check
        _
      $region117: #{transformer_mlp_forward.1} parent=5 // pred_check_branch
        %618 = sbr.rel (%p615) target = $region119
      $region118: #{transformer_mlp_forward.1} parent=5 // pred_region
        %s619 = ssub.s32 %s29, 1
        %s620 = sand.u32 %s252, 1
        %s621 = sand.u32 %s252, 1
        %s622 = smul.addr %s621, 64
        %s623 = scalar_lea.vmem [#allocation8], %s622
        // Predicated region
        $region120: #{transformer_mlp_forward.1} parent=118 // pred_check
          %p624 = pneg %p265
        $region121: #{transformer_mlp_forward.1} parent=118 // pred_check_branch
          %626 = sbr.rel (%p624) target = $region123
        $region122: #{transformer_mlp_forward.1} parent=118 // pred_region
          _
        $region123: #{transformer_mlp_forward.1} parent=118 // pred_fallthru
          _
        %p627 = pneg %p50
        %p628 = pneg %p47
        %p629 = pneg %p71
        %p630 = pneg %p68
        %p631 = pneg %p92
        %p632 = pneg %p89
        %p633 = pneg %p113
        %p634 = pneg %p110
        %p635 = pneg %p134
        %p636 = pneg %p131
        %p637 = pneg %p155
        %p638 = pneg %p152
        %p639 = pneg %p176
        %p640 = pneg %p173
        %p641 = pneg %p197
        %p642 = pneg %p194
        %p643 = pneg %p218
        %p644 = pneg %p215
        %p645 = pneg %p239
        %p646 = pneg %p236
        %s647 = sand.u32 %s252, 1
        %s648 = sand.u32 %s252, 1
        %s649 = smul.addr %s648, 64
        %s650 = scalar_lea.vmem [#allocation8], %s649
        %p651 = pneg %p265
        %p652 = pneg %p262
        %s653 = smul.u32 4, %s34
        %p654 = scmp.lt.s32.totalorder %s653, 15
        %s655 = scalar_select %p654, %s653, 15
        %s656 = scalar_lea.vmem %s11, %s655
        %p657 = pneg %p291
        %p658 = pneg %p288
        %s659 = smul.u32 64, %s34
        %p660 = scmp.lt.s32.totalorder %s659, 255
        %s661 = scalar_select %p660, %s659, 255
        %s662 = smul.addr %s661, 4
        %s663 = scalar_lea.vmem %s12, %s662
        %p664 = pneg %p317
        %p665 = pneg %p314
        %p666 = pneg %p338
        %p667 = pneg %p335
        %p668 = pneg %p359
        %p669 = pneg %p356
        %p670 = pneg %p380
        %p671 = pneg %p377
        %p672 = pneg %p401
        %p673 = pneg %p398
        %p674 = pneg %p422
        %p675 = pneg %p419
        %p676 = pneg %p443
        %p677 = pneg %p440
        %p678 = pneg %p464
        %p679 = pneg %p461
        %p680 = pneg %p485
        %p681 = pneg %p482
        %s682 = smul.u32 4, %s34
        %s683 = smul.u32 4, %s34
        %p684 = scmp.lt.s32.totalorder %s683, 15
        %s685 = scalar_select %p684, %s683, 15
        %s686 = scalar_lea.vmem %s11, %s685
        %s687 = smul.u32 4, %s34
        %s688 = smul.u32 64, %s34
        %p689 = scmp.lt.s32.totalorder %s688, 255
        %s690 = scalar_select %p689, %s688, 255
        %s691 = smul.addr %s690, 4
        %s692 = scalar_lea.vmem %s12, %s691
        %s693 = smul.u32 64, %s34
        %p695 = scmp.eq.s32.totalorder %s34, 0
        // Predicated region
        $region124: #{transformer_mlp_forward.1} parent=118 // pred_check
          %p696 = pneg %p695
        $region125: #{transformer_mlp_forward.1} parent=118 // pred_check_branch
          %698 = sbr.rel (%p696) target = $region127
        $region126: #{transformer_mlp_forward.1} parent=118 // pred_region
          %p700 = scmp.lt.u32.totalorder 4, 8
          %p701 = pneg %p700
          // Predicated region
          $region128: #{transformer_mlp_forward.1} parent=126 // pred_check
            _
          $region129: #{transformer_mlp_forward.1} parent=126 // pred_check_branch
            %703 = sbr.rel (%p700) target = $region131
          $region130: #{transformer_mlp_forward.1} parent=126 // pred_region
            %s972 = sand.u32 4, 7
            %p973 = scmp.eq.s32.totalorder %s972, 0
            %p974 = pneg %p973
            // Predicated region
            $region143: #{transformer_mlp_forward.1} parent=130 // pred_check
              _
            $region144: #{transformer_mlp_forward.1} parent=130 // pred_check_branch
              %976 = sbr.rel (%p973) target = $region146
            $region145: #{transformer_mlp_forward.1} parent=130 // pred_region
              %s977 = sand.u32 4, 7
              %s978 = ssub.s32 4, %s977
              %s979 = scalar_lea.vmem %s16, %s978
              %s980 = ssub.s32 4, %s977
              %s981 = scalar_lea.vmem [#allocation5], %s980
              loop: start=0, step=1, limit=1
              $region147: #{transformer_mlp_forward.1} parent=145 // loop_pre_header
                _
              $region148: #{transformer_mlp_forward.1} parent=145 // loop_header
                %s983 = sphi 0, %s987
                %p984 = scmp.ge.s32.totalorder %s983, 1
                %s988 = sphi %s16, %s16
                %s989 = sphi [#allocation5], [#allocation5]
              $region149: #{transformer_mlp_forward.1} parent=145 // loop_header_branch
                %986 = sbr.rel (%p984) target = $region153
              $region150: #{transformer_mlp_forward.1} parent=145 // loop_body
                _
              $region151: #{transformer_mlp_forward.1} parent=145 // loop_footer
                %s987 = sadd.s32 1, %s983
              $region152: #{transformer_mlp_forward.1} parent=145 // loop_footer_branch
                %982 = sbr.rel target = $region148
              $region153: #{transformer_mlp_forward.1} parent=145 // loop_exit
                _
              %s990 = sshllo.u32 0, %s977
              loop: start=0, step=1, limit=1
              $region154: #{transformer_mlp_forward.1} parent=145 // loop_pre_header
                _
              $region155: #{transformer_mlp_forward.1} parent=145 // loop_header
                %s992 = sphi 0, %s996
                %p993 = scmp.ge.s32.totalorder %s992, 1
                %s997 = sphi %s979, %s979
                %s998 = sphi %s981, %s981
              $region156: #{transformer_mlp_forward.1} parent=145 // loop_header_branch
                %995 = sbr.rel (%p993) target = $region160
              $region157: #{transformer_mlp_forward.1} parent=145 // loop_body
                %v999 = vld [vmem:[%s997] sm:%s990]
                %1000 = vst [vmem:[%s998] sm:%s990] %v999
                %v1001 = vld [vmem:[%s997 + $0x10] sm:%s990]
                %1002 = vst [vmem:[%s998 + $0x4] sm:%s990] %v1001
                %v1003 = vld [vmem:[%s997 + $0x4] sm:%s990]
                %1004 = vst [vmem:[%s998 + $0x8] sm:%s990] %v1003
                %v1005 = vld [vmem:[%s997 + $0x14] sm:%s990]
                %1006 = vst [vmem:[%s998 + $0xc] sm:%s990] %v1005
                %v1007 = vld [vmem:[%s997 + $0x8] sm:%s990]
                %1008 = vst [vmem:[%s998 + $0x10] sm:%s990] %v1007
                %v1009 = vld [vmem:[%s997 + $0x18] sm:%s990]
                %1010 = vst [vmem:[%s998 + $0x14] sm:%s990] %v1009
                %v1011 = vld [vmem:[%s997 + $0xc] sm:%s990]
                %1012 = vst [vmem:[%s998 + $0x18] sm:%s990] %v1011
                %v1013 = vld [vmem:[%s997 + $0x1c] sm:%s990]
                %1014 = vst [vmem:[%s998 + $0x1c] sm:%s990] %v1013
                %v1015 = vld [vmem:[%s997 + $0x20] sm:%s990]
                %1016 = vst [vmem:[%s998 + $0x20] sm:%s990] %v1015
                %v1017 = vld [vmem:[%s997 + $0x30] sm:%s990]
                %1018 = vst [vmem:[%s998 + $0x24] sm:%s990] %v1017
                %v1019 = vld [vmem:[%s997 + $0x24] sm:%s990]
                %1020 = vst [vmem:[%s998 + $0x28] sm:%s990] %v1019
                %v1021 = vld [vmem:[%s997 + $0x34] sm:%s990]
                %1022 = vst [vmem:[%s998 + $0x2c] sm:%s990] %v1021
                %v1023 = vld [vmem:[%s997 + $0x28] sm:%s990]
                %1024 = vst [vmem:[%s998 + $0x30] sm:%s990] %v1023
                %v1025 = vld [vmem:[%s997 + $0x38] sm:%s990]
                %1026 = vst [vmem:[%s998 + $0x34] sm:%s990] %v1025
                %v1027 = vld [vmem:[%s997 + $0x2c] sm:%s990]
                %1028 = vst [vmem:[%s998 + $0x38] sm:%s990] %v1027
                %v1029 = vld [vmem:[%s997 + $0x3c] sm:%s990]
                %1030 = vst [vmem:[%s998 + $0x3c] sm:%s990] %v1029
                %v1031 = vld [vmem:[%s997 + $0x40] sm:%s990]
                %1032 = vst [vmem:[%s998 + $0x40] sm:%s990] %v1031
                %v1033 = vld [vmem:[%s997 + $0x50] sm:%s990]
                %1034 = vst [vmem:[%s998 + $0x44] sm:%s990] %v1033
                %v1035 = vld [vmem:[%s997 + $0x44] sm:%s990]
                %1036 = vst [vmem:[%s998 + $0x48] sm:%s990] %v1035
                %v1037 = vld [vmem:[%s997 + $0x54] sm:%s990]
                %1038 = vst [vmem:[%s998 + $0x4c] sm:%s990] %v1037
                %v1039 = vld [vmem:[%s997 + $0x48] sm:%s990]
                %1040 = vst [vmem:[%s998 + $0x50] sm:%s990] %v1039
                %v1041 = vld [vmem:[%s997 + $0x58] sm:%s990]
                %1042 = vst [vmem:[%s998 + $0x54] sm:%s990] %v1041
                %v1043 = vld [vmem:[%s997 + $0x4c] sm:%s990]
                %1044 = vst [vmem:[%s998 + $0x58] sm:%s990] %v1043
                %v1045 = vld [vmem:[%s997 + $0x5c] sm:%s990]
                %1046 = vst [vmem:[%s998 + $0x5c] sm:%s990] %v1045
                %v1047 = vld [vmem:[%s997 + $0x60] sm:%s990]
                %1048 = vst [vmem:[%s998 + $0x60] sm:%s990] %v1047
                %v1049 = vld [vmem:[%s997 + $0x70] sm:%s990]
                %1050 = vst [vmem:[%s998 + $0x64] sm:%s990] %v1049
                %v1051 = vld [vmem:[%s997 + $0x64] sm:%s990]
                %1052 = vst [vmem:[%s998 + $0x68] sm:%s990] %v1051
                %v1053 = vld [vmem:[%s997 + $0x74] sm:%s990]
                %1054 = vst [vmem:[%s998 + $0x6c] sm:%s990] %v1053
                %v1055 = vld [vmem:[%s997 + $0x68] sm:%s990]
                %1056 = vst [vmem:[%s998 + $0x70] sm:%s990] %v1055
                %v1057 = vld [vmem:[%s997 + $0x78] sm:%s990]
                %1058 = vst [vmem:[%s998 + $0x74] sm:%s990] %v1057
                %v1059 = vld [vmem:[%s997 + $0x6c] sm:%s990]
                %1060 = vst [vmem:[%s998 + $0x78] sm:%s990] %v1059
                %v1061 = vld [vmem:[%s997 + $0x7c] sm:%s990]
                %1062 = vst [vmem:[%s998 + $0x7c] sm:%s990] %v1061
                %v1063 = vld [vmem:[%s997 + $0x80] sm:%s990]
                %1064 = vst [vmem:[%s998 + $0x80] sm:%s990] %v1063
                %v1065 = vld [vmem:[%s997 + $0x90] sm:%s990]
                %1066 = vst [vmem:[%s998 + $0x84] sm:%s990] %v1065
                %v1067 = vld [vmem:[%s997 + $0x84] sm:%s990]
                %1068 = vst [vmem:[%s998 + $0x88] sm:%s990] %v1067
                %v1069 = vld [vmem:[%s997 + $0x94] sm:%s990]
                %1070 = vst [vmem:[%s998 + $0x8c] sm:%s990] %v1069
                %v1071 = vld [vmem:[%s997 + $0x88] sm:%s990]
                %1072 = vst [vmem:[%s998 + $0x90] sm:%s990] %v1071
                %v1073 = vld [vmem:[%s997 + $0x98] sm:%s990]
                %1074 = vst [vmem:[%s998 + $0x94] sm:%s990] %v1073
                %v1075 = vld [vmem:[%s997 + $0x8c] sm:%s990]
                %1076 = vst [vmem:[%s998 + $0x98] sm:%s990] %v1075
                %v1077 = vld [vmem:[%s997 + $0x9c] sm:%s990]
                %1078 = vst [vmem:[%s998 + $0x9c] sm:%s990] %v1077
                %v1079 = vld [vmem:[%s997 + $0xa0] sm:%s990]
                %1080 = vst [vmem:[%s998 + $0xa0] sm:%s990] %v1079
                %v1081 = vld [vmem:[%s997 + $0xb0] sm:%s990]
                %1082 = vst [vmem:[%s998 + $0xa4] sm:%s990] %v1081
                %v1083 = vld [vmem:[%s997 + $0xa4] sm:%s990]
                %1084 = vst [vmem:[%s998 + $0xa8] sm:%s990] %v1083
                %v1085 = vld [vmem:[%s997 + $0xb4] sm:%s990]
                %1086 = vst [vmem:[%s998 + $0xac] sm:%s990] %v1085
                %v1087 = vld [vmem:[%s997 + $0xa8] sm:%s990]
                %1088 = vst [vmem:[%s998 + $0xb0] sm:%s990] %v1087
                %v1089 = vld [vmem:[%s997 + $0xb8] sm:%s990]
                %1090 = vst [vmem:[%s998 + $0xb4] sm:%s990] %v1089
                %v1091 = vld [vmem:[%s997 + $0xac] sm:%s990]
                %1092 = vst [vmem:[%s998 + $0xb8] sm:%s990] %v1091
                %v1093 = vld [vmem:[%s997 + $0xbc] sm:%s990]
                %1094 = vst [vmem:[%s998 + $0xbc] sm:%s990] %v1093
                %v1095 = vld [vmem:[%s997 + $0xc0] sm:%s990]
                %1096 = vst [vmem:[%s998 + $0xc0] sm:%s990] %v1095
                %v1097 = vld [vmem:[%s997 + $0xd0] sm:%s990]
                %1098 = vst [vmem:[%s998 + $0xc4] sm:%s990] %v1097
                %v1099 = vld [vmem:[%s997 + $0xc4] sm:%s990]
                %1100 = vst [vmem:[%s998 + $0xc8] sm:%s990] %v1099
                %v1101 = vld [vmem:[%s997 + $0xd4] sm:%s990]
                %1102 = vst [vmem:[%s998 + $0xcc] sm:%s990] %v1101
                %v1103 = vld [vmem:[%s997 + $0xc8] sm:%s990]
                %1104 = vst [vmem:[%s998 + $0xd0] sm:%s990] %v1103
                %v1105 = vld [vmem:[%s997 + $0xd8] sm:%s990]
                %1106 = vst [vmem:[%s998 + $0xd4] sm:%s990] %v1105
                %v1107 = vld [vmem:[%s997 + $0xcc] sm:%s990]
                %1108 = vst [vmem:[%s998 + $0xd8] sm:%s990] %v1107
                %v1109 = vld [vmem:[%s997 + $0xdc] sm:%s990]
                %1110 = vst [vmem:[%s998 + $0xdc] sm:%s990] %v1109
                %v1111 = vld [vmem:[%s997 + $0xe0] sm:%s990]
                %1112 = vst [vmem:[%s998 + $0xe0] sm:%s990] %v1111
                %v1113 = vld [vmem:[%s997 + $0xf0] sm:%s990]
                %1114 = vst [vmem:[%s998 + $0xe4] sm:%s990] %v1113
                %v1115 = vld [vmem:[%s997 + $0xe4] sm:%s990]
                %1116 = vst [vmem:[%s998 + $0xe8] sm:%s990] %v1115
                %v1117 = vld [vmem:[%s997 + $0xf4] sm:%s990]
                %1118 = vst [vmem:[%s998 + $0xec] sm:%s990] %v1117
                %v1119 = vld [vmem:[%s997 + $0xe8] sm:%s990]
                %1120 = vst [vmem:[%s998 + $0xf0] sm:%s990] %v1119
                %v1121 = vld [vmem:[%s997 + $0xf8] sm:%s990]
                %1122 = vst [vmem:[%s998 + $0xf4] sm:%s990] %v1121
                %v1123 = vld [vmem:[%s997 + $0xec] sm:%s990]
                %1124 = vst [vmem:[%s998 + $0xf8] sm:%s990] %v1123
                %v1125 = vld [vmem:[%s997 + $0xfc] sm:%s990]
                %1126 = vst [vmem:[%s998 + $0xfc] sm:%s990] %v1125
                %v1127 = vld [vmem:[%s997 + $0x100] sm:%s990]
                %1128 = vst [vmem:[%s998 + $0x100] sm:%s990] %v1127
                %v1129 = vld [vmem:[%s997 + $0x110] sm:%s990]
                %1130 = vst [vmem:[%s998 + $0x104] sm:%s990] %v1129
                %v1131 = vld [vmem:[%s997 + $0x104] sm:%s990]
                %1132 = vst [vmem:[%s998 + $0x108] sm:%s990] %v1131
                %v1133 = vld [vmem:[%s997 + $0x114] sm:%s990]
                %1134 = vst [vmem:[%s998 + $0x10c] sm:%s990] %v1133
                %v1135 = vld [vmem:[%s997 + $0x108] sm:%s990]
                %1136 = vst [vmem:[%s998 + $0x110] sm:%s990] %v1135
                %v1137 = vld [vmem:[%s997 + $0x118] sm:%s990]
                %1138 = vst [vmem:[%s998 + $0x114] sm:%s990] %v1137
                %v1139 = vld [vmem:[%s997 + $0x10c] sm:%s990]
                %1140 = vst [vmem:[%s998 + $0x118] sm:%s990] %v1139
                %v1141 = vld [vmem:[%s997 + $0x11c] sm:%s990]
                %1142 = vst [vmem:[%s998 + $0x11c] sm:%s990] %v1141
                %v1143 = vld [vmem:[%s997 + $0x120] sm:%s990]
                %1144 = vst [vmem:[%s998 + $0x120] sm:%s990] %v1143
                %v1145 = vld [vmem:[%s997 + $0x130] sm:%s990]
                %1146 = vst [vmem:[%s998 + $0x124] sm:%s990] %v1145
                %v1147 = vld [vmem:[%s997 + $0x124] sm:%s990]
                %1148 = vst [vmem:[%s998 + $0x128] sm:%s990] %v1147
                %v1149 = vld [vmem:[%s997 + $0x134] sm:%s990]
                %1150 = vst [vmem:[%s998 + $0x12c] sm:%s990] %v1149
                %v1151 = vld [vmem:[%s997 + $0x128] sm:%s990]
                %1152 = vst [vmem:[%s998 + $0x130] sm:%s990] %v1151
                %v1153 = vld [vmem:[%s997 + $0x138] sm:%s990]
                %1154 = vst [vmem:[%s998 + $0x134] sm:%s990] %v1153
                %v1155 = vld [vmem:[%s997 + $0x12c] sm:%s990]
                %1156 = vst [vmem:[%s998 + $0x138] sm:%s990] %v1155
                %v1157 = vld [vmem:[%s997 + $0x13c] sm:%s990]
                %1158 = vst [vmem:[%s998 + $0x13c] sm:%s990] %v1157
                %v1159 = vld [vmem:[%s997 + $0x140] sm:%s990]
                %1160 = vst [vmem:[%s998 + $0x140] sm:%s990] %v1159
                %v1161 = vld [vmem:[%s997 + $0x150] sm:%s990]
                %1162 = vst [vmem:[%s998 + $0x144] sm:%s990] %v1161
                %v1163 = vld [vmem:[%s997 + $0x144] sm:%s990]
                %1164 = vst [vmem:[%s998 + $0x148] sm:%s990] %v1163
                %v1165 = vld [vmem:[%s997 + $0x154] sm:%s990]
                %1166 = vst [vmem:[%s998 + $0x14c] sm:%s990] %v1165
                %v1167 = vld [vmem:[%s997 + $0x148] sm:%s990]
                %1168 = vst [vmem:[%s998 + $0x150] sm:%s990] %v1167
                %v1169 = vld [vmem:[%s997 + $0x158] sm:%s990]
                %1170 = vst [vmem:[%s998 + $0x154] sm:%s990] %v1169
                %v1171 = vld [vmem:[%s997 + $0x14c] sm:%s990]
                %1172 = vst [vmem:[%s998 + $0x158] sm:%s990] %v1171
                %v1173 = vld [vmem:[%s997 + $0x15c] sm:%s990]
                %1174 = vst [vmem:[%s998 + $0x15c] sm:%s990] %v1173
                %v1175 = vld [vmem:[%s997 + $0x160] sm:%s990]
                %1176 = vst [vmem:[%s998 + $0x160] sm:%s990] %v1175
                %v1177 = vld [vmem:[%s997 + $0x170] sm:%s990]
                %1178 = vst [vmem:[%s998 + $0x164] sm:%s990] %v1177
                %v1179 = vld [vmem:[%s997 + $0x164] sm:%s990]
                %1180 = vst [vmem:[%s998 + $0x168] sm:%s990] %v1179
                %v1181 = vld [vmem:[%s997 + $0x174] sm:%s990]
                %1182 = vst [vmem:[%s998 + $0x16c] sm:%s990] %v1181
                %v1183 = vld [vmem:[%s997 + $0x168] sm:%s990]
                %1184 = vst [vmem:[%s998 + $0x170] sm:%s990] %v1183
                %v1185 = vld [vmem:[%s997 + $0x178] sm:%s990]
                %1186 = vst [vmem:[%s998 + $0x174] sm:%s990] %v1185
                %v1187 = vld [vmem:[%s997 + $0x16c] sm:%s990]
                %1188 = vst [vmem:[%s998 + $0x178] sm:%s990] %v1187
                %v1189 = vld [vmem:[%s997 + $0x17c] sm:%s990]
                %1190 = vst [vmem:[%s998 + $0x17c] sm:%s990] %v1189
                %v1191 = vld [vmem:[%s997 + $0x180] sm:%s990]
                %1192 = vst [vmem:[%s998 + $0x180] sm:%s990] %v1191
                %v1193 = vld [vmem:[%s997 + $0x190] sm:%s990]
                %1194 = vst [vmem:[%s998 + $0x184] sm:%s990] %v1193
                %v1195 = vld [vmem:[%s997 + $0x184] sm:%s990]
                %1196 = vst [vmem:[%s998 + $0x188] sm:%s990] %v1195
                %v1197 = vld [vmem:[%s997 + $0x194] sm:%s990]
                %1198 = vst [vmem:[%s998 + $0x18c] sm:%s990] %v1197
                %v1199 = vld [vmem:[%s997 + $0x188] sm:%s990]
                %1200 = vst [vmem:[%s998 + $0x190] sm:%s990] %v1199
                %v1201 = vld [vmem:[%s997 + $0x198] sm:%s990]
                %1202 = vst [vmem:[%s998 + $0x194] sm:%s990] %v1201
                %v1203 = vld [vmem:[%s997 + $0x18c] sm:%s990]
                %1204 = vst [vmem:[%s998 + $0x198] sm:%s990] %v1203
                %v1205 = vld [vmem:[%s997 + $0x19c] sm:%s990]
                %1206 = vst [vmem:[%s998 + $0x19c] sm:%s990] %v1205
                %v1207 = vld [vmem:[%s997 + $0x1a0] sm:%s990]
                %1208 = vst [vmem:[%s998 + $0x1a0] sm:%s990] %v1207
                %v1209 = vld [vmem:[%s997 + $0x1b0] sm:%s990]
                %1210 = vst [vmem:[%s998 + $0x1a4] sm:%s990] %v1209
                %v1211 = vld [vmem:[%s997 + $0x1a4] sm:%s990]
                %1212 = vst [vmem:[%s998 + $0x1a8] sm:%s990] %v1211
                %v1213 = vld [vmem:[%s997 + $0x1b4] sm:%s990]
                %1214 = vst [vmem:[%s998 + $0x1ac] sm:%s990] %v1213
                %v1215 = vld [vmem:[%s997 + $0x1a8] sm:%s990]
                %1216 = vst [vmem:[%s998 + $0x1b0] sm:%s990] %v1215
                %v1217 = vld [vmem:[%s997 + $0x1b8] sm:%s990]
                %1218 = vst [vmem:[%s998 + $0x1b4] sm:%s990] %v1217
                %v1219 = vld [vmem:[%s997 + $0x1ac] sm:%s990]
                %1220 = vst [vmem:[%s998 + $0x1b8] sm:%s990] %v1219
                %v1221 = vld [vmem:[%s997 + $0x1bc] sm:%s990]
                %1222 = vst [vmem:[%s998 + $0x1bc] sm:%s990] %v1221
                %v1223 = vld [vmem:[%s997 + $0x1c0] sm:%s990]
                %1224 = vst [vmem:[%s998 + $0x1c0] sm:%s990] %v1223
                %v1225 = vld [vmem:[%s997 + $0x1d0] sm:%s990]
                %1226 = vst [vmem:[%s998 + $0x1c4] sm:%s990] %v1225
                %v1227 = vld [vmem:[%s997 + $0x1c4] sm:%s990]
                %1228 = vst [vmem:[%s998 + $0x1c8] sm:%s990] %v1227
                %v1229 = vld [vmem:[%s997 + $0x1d4] sm:%s990]
                %1230 = vst [vmem:[%s998 + $0x1cc] sm:%s990] %v1229
                %v1231 = vld [vmem:[%s997 + $0x1c8] sm:%s990]
                %1232 = vst [vmem:[%s998 + $0x1d0] sm:%s990] %v1231
                %v1233 = vld [vmem:[%s997 + $0x1d8] sm:%s990]
                %1234 = vst [vmem:[%s998 + $0x1d4] sm:%s990] %v1233
                %v1235 = vld [vmem:[%s997 + $0x1cc] sm:%s990]
                %1236 = vst [vmem:[%s998 + $0x1d8] sm:%s990] %v1235
                %v1237 = vld [vmem:[%s997 + $0x1dc] sm:%s990]
                %1238 = vst [vmem:[%s998 + $0x1dc] sm:%s990] %v1237
                %v1239 = vld [vmem:[%s997 + $0x1e0] sm:%s990]
                %1240 = vst [vmem:[%s998 + $0x1e0] sm:%s990] %v1239
                %v1241 = vld [vmem:[%s997 + $0x1f0] sm:%s990]
                %1242 = vst [vmem:[%s998 + $0x1e4] sm:%s990] %v1241
                %v1243 = vld [vmem:[%s997 + $0x1e4] sm:%s990]
                %1244 = vst [vmem:[%s998 + $0x1e8] sm:%s990] %v1243
                %v1245 = vld [vmem:[%s997 + $0x1f4] sm:%s990]
                %1246 = vst [vmem:[%s998 + $0x1ec] sm:%s990] %v1245
                %v1247 = vld [vmem:[%s997 + $0x1e8] sm:%s990]
                %1248 = vst [vmem:[%s998 + $0x1f0] sm:%s990] %v1247
                %v1249 = vld [vmem:[%s997 + $0x1f8] sm:%s990]
                %1250 = vst [vmem:[%s998 + $0x1f4] sm:%s990] %v1249
                %v1251 = vld [vmem:[%s997 + $0x1ec] sm:%s990]
                %1252 = vst [vmem:[%s998 + $0x1f8] sm:%s990] %v1251
                %v1253 = vld [vmem:[%s997 + $0x1fc] sm:%s990]
                %1254 = vst [vmem:[%s998 + $0x1fc] sm:%s990] %v1253
              $region158: #{transformer_mlp_forward.1} parent=145 // loop_footer
                %s996 = sadd.s32 1, %s992
              $region159: #{transformer_mlp_forward.1} parent=145 // loop_footer_branch
                %991 = sbr.rel target = $region155
              $region160: #{transformer_mlp_forward.1} parent=145 // loop_exit
                _
            $region146: #{transformer_mlp_forward.1} parent=130 // pred_fallthru
              _
          $region131: #{transformer_mlp_forward.1} parent=126 // pred_fallthru
            _
          // Predicated region
          $region132: #{transformer_mlp_forward.1} parent=126 // pred_check
            %p704 = pneg %p700
          $region133: #{transformer_mlp_forward.1} parent=126 // pred_check_branch
            %706 = sbr.rel (%p704) target = $region135
          $region134: #{transformer_mlp_forward.1} parent=126 // pred_region
            %s707 = sshllo.u32 0, 4
            loop: start=0, step=1, limit=1
            $region136: #{transformer_mlp_forward.1} parent=134 // loop_pre_header
              _
            $region137: #{transformer_mlp_forward.1} parent=134 // loop_header
              %s709 = sphi 0, %s713
              %p710 = scmp.ge.s32.totalorder %s709, 1
              %s714 = sphi %s16, %s16
              %s715 = sphi [#allocation5], [#allocation5]
            $region138: #{transformer_mlp_forward.1} parent=134 // loop_header_branch
              %712 = sbr.rel (%p710) target = $region142
            $region139: #{transformer_mlp_forward.1} parent=134 // loop_body
              %v716 = vld [vmem:[%s714] sm:%s707]
              %717 = vst [vmem:[%s715] sm:%s707] %v716
              %v718 = vld [vmem:[%s714 + $0x10] sm:%s707]
              %719 = vst [vmem:[%s715 + $0x4] sm:%s707] %v718
              %v720 = vld [vmem:[%s714 + $0x4] sm:%s707]
              %721 = vst [vmem:[%s715 + $0x8] sm:%s707] %v720
              %v722 = vld [vmem:[%s714 + $0x14] sm:%s707]
              %723 = vst [vmem:[%s715 + $0xc] sm:%s707] %v722
              %v724 = vld [vmem:[%s714 + $0x8] sm:%s707]
              %725 = vst [vmem:[%s715 + $0x10] sm:%s707] %v724
              %v726 = vld [vmem:[%s714 + $0x18] sm:%s707]
              %727 = vst [vmem:[%s715 + $0x14] sm:%s707] %v726
              %v728 = vld [vmem:[%s714 + $0xc] sm:%s707]
              %729 = vst [vmem:[%s715 + $0x18] sm:%s707] %v728
              %v730 = vld [vmem:[%s714 + $0x1c] sm:%s707]
              %731 = vst [vmem:[%s715 + $0x1c] sm:%s707] %v730
              %v732 = vld [vmem:[%s714 + $0x20] sm:%s707]
              %733 = vst [vmem:[%s715 + $0x20] sm:%s707] %v732
              %v734 = vld [vmem:[%s714 + $0x30] sm:%s707]
              %735 = vst [vmem:[%s715 + $0x24] sm:%s707] %v734
              %v736 = vld [vmem:[%s714 + $0x24] sm:%s707]
              %737 = vst [vmem:[%s715 + $0x28] sm:%s707] %v736
              %v738 = vld [vmem:[%s714 + $0x34] sm:%s707]
              %739 = vst [vmem:[%s715 + $0x2c] sm:%s707] %v738
              %v740 = vld [vmem:[%s714 + $0x28] sm:%s707]
              %741 = vst [vmem:[%s715 + $0x30] sm:%s707] %v740
              %v742 = vld [vmem:[%s714 + $0x38] sm:%s707]
              %743 = vst [vmem:[%s715 + $0x34] sm:%s707] %v742
              %v744 = vld [vmem:[%s714 + $0x2c] sm:%s707]
              %745 = vst [vmem:[%s715 + $0x38] sm:%s707] %v744
              %v746 = vld [vmem:[%s714 + $0x3c] sm:%s707]
              %747 = vst [vmem:[%s715 + $0x3c] sm:%s707] %v746
              %v748 = vld [vmem:[%s714 + $0x40] sm:%s707]
              %749 = vst [vmem:[%s715 + $0x40] sm:%s707] %v748
              %v750 = vld [vmem:[%s714 + $0x50] sm:%s707]
              %751 = vst [vmem:[%s715 + $0x44] sm:%s707] %v750
              %v752 = vld [vmem:[%s714 + $0x44] sm:%s707]
              %753 = vst [vmem:[%s715 + $0x48] sm:%s707] %v752
              %v754 = vld [vmem:[%s714 + $0x54] sm:%s707]
              %755 = vst [vmem:[%s715 + $0x4c] sm:%s707] %v754
              %v756 = vld [vmem:[%s714 + $0x48] sm:%s707]
              %757 = vst [vmem:[%s715 + $0x50] sm:%s707] %v756
              %v758 = vld [vmem:[%s714 + $0x58] sm:%s707]
              %759 = vst [vmem:[%s715 + $0x54] sm:%s707] %v758
              %v760 = vld [vmem:[%s714 + $0x4c] sm:%s707]
              %761 = vst [vmem:[%s715 + $0x58] sm:%s707] %v760
              %v762 = vld [vmem:[%s714 + $0x5c] sm:%s707]
              %763 = vst [vmem:[%s715 + $0x5c] sm:%s707] %v762
              %v764 = vld [vmem:[%s714 + $0x60] sm:%s707]
              %765 = vst [vmem:[%s715 + $0x60] sm:%s707] %v764
              %v766 = vld [vmem:[%s714 + $0x70] sm:%s707]
              %767 = vst [vmem:[%s715 + $0x64] sm:%s707] %v766
              %v768 = vld [vmem:[%s714 + $0x64] sm:%s707]
              %769 = vst [vmem:[%s715 + $0x68] sm:%s707] %v768
              %v770 = vld [vmem:[%s714 + $0x74] sm:%s707]
              %771 = vst [vmem:[%s715 + $0x6c] sm:%s707] %v770
              %v772 = vld [vmem:[%s714 + $0x68] sm:%s707]
              %773 = vst [vmem:[%s715 + $0x70] sm:%s707] %v772
              %v774 = vld [vmem:[%s714 + $0x78] sm:%s707]
              %775 = vst [vmem:[%s715 + $0x74] sm:%s707] %v774
              %v776 = vld [vmem:[%s714 + $0x6c] sm:%s707]
              %777 = vst [vmem:[%s715 + $0x78] sm:%s707] %v776
              %v778 = vld [vmem:[%s714 + $0x7c] sm:%s707]
              %779 = vst [vmem:[%s715 + $0x7c] sm:%s707] %v778
              %v780 = vld [vmem:[%s714 + $0x80] sm:%s707]
              %781 = vst [vmem:[%s715 + $0x80] sm:%s707] %v780
              %v782 = vld [vmem:[%s714 + $0x90] sm:%s707]
              %783 = vst [vmem:[%s715 + $0x84] sm:%s707] %v782
              %v784 = vld [vmem:[%s714 + $0x84] sm:%s707]
              %785 = vst [vmem:[%s715 + $0x88] sm:%s707] %v784
              %v786 = vld [vmem:[%s714 + $0x94] sm:%s707]
              %787 = vst [vmem:[%s715 + $0x8c] sm:%s707] %v786
              %v788 = vld [vmem:[%s714 + $0x88] sm:%s707]
              %789 = vst [vmem:[%s715 + $0x90] sm:%s707] %v788
              %v790 = vld [vmem:[%s714 + $0x98] sm:%s707]
              %791 = vst [vmem:[%s715 + $0x94] sm:%s707] %v790
              %v792 = vld [vmem:[%s714 + $0x8c] sm:%s707]
              %793 = vst [vmem:[%s715 + $0x98] sm:%s707] %v792
              %v794 = vld [vmem:[%s714 + $0x9c] sm:%s707]
              %795 = vst [vmem:[%s715 + $0x9c] sm:%s707] %v794
              %v796 = vld [vmem:[%s714 + $0xa0] sm:%s707]
              %797 = vst [vmem:[%s715 + $0xa0] sm:%s707] %v796
              %v798 = vld [vmem:[%s714 + $0xb0] sm:%s707]
              %799 = vst [vmem:[%s715 + $0xa4] sm:%s707] %v798
              %v800 = vld [vmem:[%s714 + $0xa4] sm:%s707]
              %801 = vst [vmem:[%s715 + $0xa8] sm:%s707] %v800
              %v802 = vld [vmem:[%s714 + $0xb4] sm:%s707]
              %803 = vst [vmem:[%s715 + $0xac] sm:%s707] %v802
              %v804 = vld [vmem:[%s714 + $0xa8] sm:%s707]
              %805 = vst [vmem:[%s715 + $0xb0] sm:%s707] %v804
              %v806 = vld [vmem:[%s714 + $0xb8] sm:%s707]
              %807 = vst [vmem:[%s715 + $0xb4] sm:%s707] %v806
              %v808 = vld [vmem:[%s714 + $0xac] sm:%s707]
              %809 = vst [vmem:[%s715 + $0xb8] sm:%s707] %v808
              %v810 = vld [vmem:[%s714 + $0xbc] sm:%s707]
              %811 = vst [vmem:[%s715 + $0xbc] sm:%s707] %v810
              %v812 = vld [vmem:[%s714 + $0xc0] sm:%s707]
              %813 = vst [vmem:[%s715 + $0xc0] sm:%s707] %v812
              %v814 = vld [vmem:[%s714 + $0xd0] sm:%s707]
              %815 = vst [vmem:[%s715 + $0xc4] sm:%s707] %v814
              %v816 = vld [vmem:[%s714 + $0xc4] sm:%s707]
              %817 = vst [vmem:[%s715 + $0xc8] sm:%s707] %v816
              %v818 = vld [vmem:[%s714 + $0xd4] sm:%s707]
              %819 = vst [vmem:[%s715 + $0xcc] sm:%s707] %v818
              %v820 = vld [vmem:[%s714 + $0xc8] sm:%s707]
              %821 = vst [vmem:[%s715 + $0xd0] sm:%s707] %v820
              %v822 = vld [vmem:[%s714 + $0xd8] sm:%s707]
              %823 = vst [vmem:[%s715 + $0xd4] sm:%s707] %v822
              %v824 = vld [vmem:[%s714 + $0xcc] sm:%s707]
              %825 = vst [vmem:[%s715 + $0xd8] sm:%s707] %v824
              %v826 = vld [vmem:[%s714 + $0xdc] sm:%s707]
              %827 = vst [vmem:[%s715 + $0xdc] sm:%s707] %v826
              %v828 = vld [vmem:[%s714 + $0xe0] sm:%s707]
              %829 = vst [vmem:[%s715 + $0xe0] sm:%s707] %v828
              %v830 = vld [vmem:[%s714 + $0xf0] sm:%s707]
              %831 = vst [vmem:[%s715 + $0xe4] sm:%s707] %v830
              %v832 = vld [vmem:[%s714 + $0xe4] sm:%s707]
              %833 = vst [vmem:[%s715 + $0xe8] sm:%s707] %v832
              %v834 = vld [vmem:[%s714 + $0xf4] sm:%s707]
              %835 = vst [vmem:[%s715 + $0xec] sm:%s707] %v834
              %v836 = vld [vmem:[%s714 + $0xe8] sm:%s707]
              %837 = vst [vmem:[%s715 + $0xf0] sm:%s707] %v836
              %v838 = vld [vmem:[%s714 + $0xf8] sm:%s707]
              %839 = vst [vmem:[%s715 + $0xf4] sm:%s707] %v838
              %v840 = vld [vmem:[%s714 + $0xec] sm:%s707]
              %841 = vst [vmem:[%s715 + $0xf8] sm:%s707] %v840
              %v842 = vld [vmem:[%s714 + $0xfc] sm:%s707]
              %843 = vst [vmem:[%s715 + $0xfc] sm:%s707] %v842
              %v844 = vld [vmem:[%s714 + $0x100] sm:%s707]
              %845 = vst [vmem:[%s715 + $0x100] sm:%s707] %v844
              %v846 = vld [vmem:[%s714 + $0x110] sm:%s707]
              %847 = vst [vmem:[%s715 + $0x104] sm:%s707] %v846
              %v848 = vld [vmem:[%s714 + $0x104] sm:%s707]
              %849 = vst [vmem:[%s715 + $0x108] sm:%s707] %v848
              %v850 = vld [vmem:[%s714 + $0x114] sm:%s707]
              %851 = vst [vmem:[%s715 + $0x10c] sm:%s707] %v850
              %v852 = vld [vmem:[%s714 + $0x108] sm:%s707]
              %853 = vst [vmem:[%s715 + $0x110] sm:%s707] %v852
              %v854 = vld [vmem:[%s714 + $0x118] sm:%s707]
              %855 = vst [vmem:[%s715 + $0x114] sm:%s707] %v854
              %v856 = vld [vmem:[%s714 + $0x10c] sm:%s707]
              %857 = vst [vmem:[%s715 + $0x118] sm:%s707] %v856
              %v858 = vld [vmem:[%s714 + $0x11c] sm:%s707]
              %859 = vst [vmem:[%s715 + $0x11c] sm:%s707] %v858
              %v860 = vld [vmem:[%s714 + $0x120] sm:%s707]
              %861 = vst [vmem:[%s715 + $0x120] sm:%s707] %v860
              %v862 = vld [vmem:[%s714 + $0x130] sm:%s707]
              %863 = vst [vmem:[%s715 + $0x124] sm:%s707] %v862
              %v864 = vld [vmem:[%s714 + $0x124] sm:%s707]
              %865 = vst [vmem:[%s715 + $0x128] sm:%s707] %v864
              %v866 = vld [vmem:[%s714 + $0x134] sm:%s707]
              %867 = vst [vmem:[%s715 + $0x12c] sm:%s707] %v866
              %v868 = vld [vmem:[%s714 + $0x128] sm:%s707]
              %869 = vst [vmem:[%s715 + $0x130] sm:%s707] %v868
              %v870 = vld [vmem:[%s714 + $0x138] sm:%s707]
              %871 = vst [vmem:[%s715 + $0x134] sm:%s707] %v870
              %v872 = vld [vmem:[%s714 + $0x12c] sm:%s707]
              %873 = vst [vmem:[%s715 + $0x138] sm:%s707] %v872
              %v874 = vld [vmem:[%s714 + $0x13c] sm:%s707]
              %875 = vst [vmem:[%s715 + $0x13c] sm:%s707] %v874
              %v876 = vld [vmem:[%s714 + $0x140] sm:%s707]
              %877 = vst [vmem:[%s715 + $0x140] sm:%s707] %v876
              %v878 = vld [vmem:[%s714 + $0x150] sm:%s707]
              %879 = vst [vmem:[%s715 + $0x144] sm:%s707] %v878
              %v880 = vld [vmem:[%s714 + $0x144] sm:%s707]
              %881 = vst [vmem:[%s715 + $0x148] sm:%s707] %v880
              %v882 = vld [vmem:[%s714 + $0x154] sm:%s707]
              %883 = vst [vmem:[%s715 + $0x14c] sm:%s707] %v882
              %v884 = vld [vmem:[%s714 + $0x148] sm:%s707]
              %885 = vst [vmem:[%s715 + $0x150] sm:%s707] %v884
              %v886 = vld [vmem:[%s714 + $0x158] sm:%s707]
              %887 = vst [vmem:[%s715 + $0x154] sm:%s707] %v886
              %v888 = vld [vmem:[%s714 + $0x14c] sm:%s707]
              %889 = vst [vmem:[%s715 + $0x158] sm:%s707] %v888
              %v890 = vld [vmem:[%s714 + $0x15c] sm:%s707]
              %891 = vst [vmem:[%s715 + $0x15c] sm:%s707] %v890
              %v892 = vld [vmem:[%s714 + $0x160] sm:%s707]
              %893 = vst [vmem:[%s715 + $0x160] sm:%s707] %v892
              %v894 = vld [vmem:[%s714 + $0x170] sm:%s707]
              %895 = vst [vmem:[%s715 + $0x164] sm:%s707] %v894
              %v896 = vld [vmem:[%s714 + $0x164] sm:%s707]
              %897 = vst [vmem:[%s715 + $0x168] sm:%s707] %v896
              %v898 = vld [vmem:[%s714 + $0x174] sm:%s707]
              %899 = vst [vmem:[%s715 + $0x16c] sm:%s707] %v898
              %v900 = vld [vmem:[%s714 + $0x168] sm:%s707]
              %901 = vst [vmem:[%s715 + $0x170] sm:%s707] %v900
              %v902 = vld [vmem:[%s714 + $0x178] sm:%s707]
              %903 = vst [vmem:[%s715 + $0x174] sm:%s707] %v902
              %v904 = vld [vmem:[%s714 + $0x16c] sm:%s707]
              %905 = vst [vmem:[%s715 + $0x178] sm:%s707] %v904
              %v906 = vld [vmem:[%s714 + $0x17c] sm:%s707]
              %907 = vst [vmem:[%s715 + $0x17c] sm:%s707] %v906
              %v908 = vld [vmem:[%s714 + $0x180] sm:%s707]
              %909 = vst [vmem:[%s715 + $0x180] sm:%s707] %v908
              %v910 = vld [vmem:[%s714 + $0x190] sm:%s707]
              %911 = vst [vmem:[%s715 + $0x184] sm:%s707] %v910
              %v912 = vld [vmem:[%s714 + $0x184] sm:%s707]
              %913 = vst [vmem:[%s715 + $0x188] sm:%s707] %v912
              %v914 = vld [vmem:[%s714 + $0x194] sm:%s707]
              %915 = vst [vmem:[%s715 + $0x18c] sm:%s707] %v914
              %v916 = vld [vmem:[%s714 + $0x188] sm:%s707]
              %917 = vst [vmem:[%s715 + $0x190] sm:%s707] %v916
              %v918 = vld [vmem:[%s714 + $0x198] sm:%s707]
              %919 = vst [vmem:[%s715 + $0x194] sm:%s707] %v918
              %v920 = vld [vmem:[%s714 + $0x18c] sm:%s707]
              %921 = vst [vmem:[%s715 + $0x198] sm:%s707] %v920
              %v922 = vld [vmem:[%s714 + $0x19c] sm:%s707]
              %923 = vst [vmem:[%s715 + $0x19c] sm:%s707] %v922
              %v924 = vld [vmem:[%s714 + $0x1a0] sm:%s707]
              %925 = vst [vmem:[%s715 + $0x1a0] sm:%s707] %v924
              %v926 = vld [vmem:[%s714 + $0x1b0] sm:%s707]
              %927 = vst [vmem:[%s715 + $0x1a4] sm:%s707] %v926
              %v928 = vld [vmem:[%s714 + $0x1a4] sm:%s707]
              %929 = vst [vmem:[%s715 + $0x1a8] sm:%s707] %v928
              %v930 = vld [vmem:[%s714 + $0x1b4] sm:%s707]
              %931 = vst [vmem:[%s715 + $0x1ac] sm:%s707] %v930
              %v932 = vld [vmem:[%s714 + $0x1a8] sm:%s707]
              %933 = vst [vmem:[%s715 + $0x1b0] sm:%s707] %v932
              %v934 = vld [vmem:[%s714 + $0x1b8] sm:%s707]
              %935 = vst [vmem:[%s715 + $0x1b4] sm:%s707] %v934
              %v936 = vld [vmem:[%s714 + $0x1ac] sm:%s707]
              %937 = vst [vmem:[%s715 + $0x1b8] sm:%s707] %v936
              %v938 = vld [vmem:[%s714 + $0x1bc] sm:%s707]
              %939 = vst [vmem:[%s715 + $0x1bc] sm:%s707] %v938
              %v940 = vld [vmem:[%s714 + $0x1c0] sm:%s707]
              %941 = vst [vmem:[%s715 + $0x1c0] sm:%s707] %v940
              %v942 = vld [vmem:[%s714 + $0x1d0] sm:%s707]
              %943 = vst [vmem:[%s715 + $0x1c4] sm:%s707] %v942
              %v944 = vld [vmem:[%s714 + $0x1c4] sm:%s707]
              %945 = vst [vmem:[%s715 + $0x1c8] sm:%s707] %v944
              %v946 = vld [vmem:[%s714 + $0x1d4] sm:%s707]
              %947 = vst [vmem:[%s715 + $0x1cc] sm:%s707] %v946
              %v948 = vld [vmem:[%s714 + $0x1c8] sm:%s707]
              %949 = vst [vmem:[%s715 + $0x1d0] sm:%s707] %v948
              %v950 = vld [vmem:[%s714 + $0x1d8] sm:%s707]
              %951 = vst [vmem:[%s715 + $0x1d4] sm:%s707] %v950
              %v952 = vld [vmem:[%s714 + $0x1cc] sm:%s707]
              %953 = vst [vmem:[%s715 + $0x1d8] sm:%s707] %v952
              %v954 = vld [vmem:[%s714 + $0x1dc] sm:%s707]
              %955 = vst [vmem:[%s715 + $0x1dc] sm:%s707] %v954
              %v956 = vld [vmem:[%s714 + $0x1e0] sm:%s707]
              %957 = vst [vmem:[%s715 + $0x1e0] sm:%s707] %v956
              %v958 = vld [vmem:[%s714 + $0x1f0] sm:%s707]
              %959 = vst [vmem:[%s715 + $0x1e4] sm:%s707] %v958
              %v960 = vld [vmem:[%s714 + $0x1e4] sm:%s707]
              %961 = vst [vmem:[%s715 + $0x1e8] sm:%s707] %v960
              %v962 = vld [vmem:[%s714 + $0x1f4] sm:%s707]
              %963 = vst [vmem:[%s715 + $0x1ec] sm:%s707] %v962
              %v964 = vld [vmem:[%s714 + $0x1e8] sm:%s707]
              %965 = vst [vmem:[%s715 + $0x1f0] sm:%s707] %v964
              %v966 = vld [vmem:[%s714 + $0x1f8] sm:%s707]
              %967 = vst [vmem:[%s715 + $0x1f4] sm:%s707] %v966
              %v968 = vld [vmem:[%s714 + $0x1ec] sm:%s707]
              %969 = vst [vmem:[%s715 + $0x1f8] sm:%s707] %v968
              %v970 = vld [vmem:[%s714 + $0x1fc] sm:%s707]
              %971 = vst [vmem:[%s715 + $0x1fc] sm:%s707] %v970
            $region140: #{transformer_mlp_forward.1} parent=134 // loop_footer
              %s713 = sadd.s32 1, %s709
            $region141: #{transformer_mlp_forward.1} parent=134 // loop_footer_branch
              %708 = sbr.rel target = $region137
            $region142: #{transformer_mlp_forward.1} parent=134 // loop_exit
              _
          $region135: #{transformer_mlp_forward.1} parent=126 // pred_fallthru
            _
          // Predicated region
          $region161: #{transformer_mlp_forward.1} parent=126 // pred_check
            _
          $region162: #{transformer_mlp_forward.1} parent=126 // pred_check_branch
            %1257 = sbr.rel (0) target = $region164
          $region163: #{transformer_mlp_forward.1} parent=126 // pred_region
            %1258 = vsyncadd [#allocation7], 8192
          $region164: #{transformer_mlp_forward.1} parent=126 // pred_fallthru
            _
          %s1259 = scalar_lea.sflag [#allocation7], 1
          %p1261 = scmp.lt.u32.totalorder 4, 8
          %p1262 = pneg %p1261
          // Predicated region
          $region165: #{transformer_mlp_forward.1} parent=126 // pred_check
            _
          $region166: #{transformer_mlp_forward.1} parent=126 // pred_check_branch
            %1264 = sbr.rel (%p1261) target = $region168
          $region167: #{transformer_mlp_forward.1} parent=126 // pred_region
            %s1533 = sand.u32 4, 7
            %p1534 = scmp.eq.s32.totalorder %s1533, 0
            %p1535 = pneg %p1534
            // Predicated region
            $region180: #{transformer_mlp_forward.1} parent=167 // pred_check
              _
            $region181: #{transformer_mlp_forward.1} parent=167 // pred_check_branch
              %1537 = sbr.rel (%p1534) target = $region183
            $region182: #{transformer_mlp_forward.1} parent=167 // pred_region
              %s1538 = sand.u32 4, 7
              %s1539 = ssub.s32 4, %s1538
              %s1540 = scalar_lea.vmem %s18, %s1539
              %s1541 = ssub.s32 4, %s1538
              %s1542 = scalar_lea.vmem [#allocation6], %s1541
              loop: start=0, step=1, limit=1
              $region184: #{transformer_mlp_forward.1} parent=182 // loop_pre_header
                _
              $region185: #{transformer_mlp_forward.1} parent=182 // loop_header
                %s1544 = sphi 0, %s1548
                %p1545 = scmp.ge.s32.totalorder %s1544, 1
                %s1549 = sphi %s18, %s18
                %s1550 = sphi [#allocation6], [#allocation6]
              $region186: #{transformer_mlp_forward.1} parent=182 // loop_header_branch
                %1547 = sbr.rel (%p1545) target = $region190
              $region187: #{transformer_mlp_forward.1} parent=182 // loop_body
                _
              $region188: #{transformer_mlp_forward.1} parent=182 // loop_footer
                %s1548 = sadd.s32 1, %s1544
              $region189: #{transformer_mlp_forward.1} parent=182 // loop_footer_branch
                %1543 = sbr.rel target = $region185
              $region190: #{transformer_mlp_forward.1} parent=182 // loop_exit
                _
              %s1551 = sshllo.u32 0, %s1538
              loop: start=0, step=1, limit=1
              $region191: #{transformer_mlp_forward.1} parent=182 // loop_pre_header
                _
              $region192: #{transformer_mlp_forward.1} parent=182 // loop_header
                %s1553 = sphi 0, %s1557
                %p1554 = scmp.ge.s32.totalorder %s1553, 1
                %s1558 = sphi %s1540, %s1540
                %s1559 = sphi %s1542, %s1542
              $region193: #{transformer_mlp_forward.1} parent=182 // loop_header_branch
                %1556 = sbr.rel (%p1554) target = $region197
              $region194: #{transformer_mlp_forward.1} parent=182 // loop_body
                %v1560 = vld [vmem:[%s1558] sm:%s1551]
                %1561 = vst [vmem:[%s1559] sm:%s1551] %v1560
                %v1562 = vld [vmem:[%s1558 + $0x8] sm:%s1551]
                %1563 = vst [vmem:[%s1559 + $0x4] sm:%s1551] %v1562
                %v1564 = vld [vmem:[%s1558 + $0x4] sm:%s1551]
                %1565 = vst [vmem:[%s1559 + $0x8] sm:%s1551] %v1564
                %v1566 = vld [vmem:[%s1558 + $0xc] sm:%s1551]
                %1567 = vst [vmem:[%s1559 + $0xc] sm:%s1551] %v1566
                %v1568 = vld [vmem:[%s1558 + $0x10] sm:%s1551]
                %1569 = vst [vmem:[%s1559 + $0x10] sm:%s1551] %v1568
                %v1570 = vld [vmem:[%s1558 + $0x18] sm:%s1551]
                %1571 = vst [vmem:[%s1559 + $0x14] sm:%s1551] %v1570
                %v1572 = vld [vmem:[%s1558 + $0x14] sm:%s1551]
                %1573 = vst [vmem:[%s1559 + $0x18] sm:%s1551] %v1572
                %v1574 = vld [vmem:[%s1558 + $0x1c] sm:%s1551]
                %1575 = vst [vmem:[%s1559 + $0x1c] sm:%s1551] %v1574
                %v1576 = vld [vmem:[%s1558 + $0x20] sm:%s1551]
                %1577 = vst [vmem:[%s1559 + $0x20] sm:%s1551] %v1576
                %v1578 = vld [vmem:[%s1558 + $0x28] sm:%s1551]
                %1579 = vst [vmem:[%s1559 + $0x24] sm:%s1551] %v1578
                %v1580 = vld [vmem:[%s1558 + $0x24] sm:%s1551]
                %1581 = vst [vmem:[%s1559 + $0x28] sm:%s1551] %v1580
                %v1582 = vld [vmem:[%s1558 + $0x2c] sm:%s1551]
                %1583 = vst [vmem:[%s1559 + $0x2c] sm:%s1551] %v1582
                %v1584 = vld [vmem:[%s1558 + $0x30] sm:%s1551]
                %1585 = vst [vmem:[%s1559 + $0x30] sm:%s1551] %v1584
                %v1586 = vld [vmem:[%s1558 + $0x38] sm:%s1551]
                %1587 = vst [vmem:[%s1559 + $0x34] sm:%s1551] %v1586
                %v1588 = vld [vmem:[%s1558 + $0x34] sm:%s1551]
                %1589 = vst [vmem:[%s1559 + $0x38] sm:%s1551] %v1588
                %v1590 = vld [vmem:[%s1558 + $0x3c] sm:%s1551]
                %1591 = vst [vmem:[%s1559 + $0x3c] sm:%s1551] %v1590
                %v1592 = vld [vmem:[%s1558 + $0x40] sm:%s1551]
                %1593 = vst [vmem:[%s1559 + $0x40] sm:%s1551] %v1592
                %v1594 = vld [vmem:[%s1558 + $0x48] sm:%s1551]
                %1595 = vst [vmem:[%s1559 + $0x44] sm:%s1551] %v1594
                %v1596 = vld [vmem:[%s1558 + $0x44] sm:%s1551]
                %1597 = vst [vmem:[%s1559 + $0x48] sm:%s1551] %v1596
                %v1598 = vld [vmem:[%s1558 + $0x4c] sm:%s1551]
                %1599 = vst [vmem:[%s1559 + $0x4c] sm:%s1551] %v1598
                %v1600 = vld [vmem:[%s1558 + $0x50] sm:%s1551]
                %1601 = vst [vmem:[%s1559 + $0x50] sm:%s1551] %v1600
                %v1602 = vld [vmem:[%s1558 + $0x58] sm:%s1551]
                %1603 = vst [vmem:[%s1559 + $0x54] sm:%s1551] %v1602
                %v1604 = vld [vmem:[%s1558 + $0x54] sm:%s1551]
                %1605 = vst [vmem:[%s1559 + $0x58] sm:%s1551] %v1604
                %v1606 = vld [vmem:[%s1558 + $0x5c] sm:%s1551]
                %1607 = vst [vmem:[%s1559 + $0x5c] sm:%s1551] %v1606
                %v1608 = vld [vmem:[%s1558 + $0x60] sm:%s1551]
                %1609 = vst [vmem:[%s1559 + $0x60] sm:%s1551] %v1608
                %v1610 = vld [vmem:[%s1558 + $0x68] sm:%s1551]
                %1611 = vst [vmem:[%s1559 + $0x64] sm:%s1551] %v1610
                %v1612 = vld [vmem:[%s1558 + $0x64] sm:%s1551]
                %1613 = vst [vmem:[%s1559 + $0x68] sm:%s1551] %v1612
                %v1614 = vld [vmem:[%s1558 + $0x6c] sm:%s1551]
                %1615 = vst [vmem:[%s1559 + $0x6c] sm:%s1551] %v1614
                %v1616 = vld [vmem:[%s1558 + $0x70] sm:%s1551]
                %1617 = vst [vmem:[%s1559 + $0x70] sm:%s1551] %v1616
                %v1618 = vld [vmem:[%s1558 + $0x78] sm:%s1551]
                %1619 = vst [vmem:[%s1559 + $0x74] sm:%s1551] %v1618
                %v1620 = vld [vmem:[%s1558 + $0x74] sm:%s1551]
                %1621 = vst [vmem:[%s1559 + $0x78] sm:%s1551] %v1620
                %v1622 = vld [vmem:[%s1558 + $0x7c] sm:%s1551]
                %1623 = vst [vmem:[%s1559 + $0x7c] sm:%s1551] %v1622
                %v1624 = vld [vmem:[%s1558 + $0x80] sm:%s1551]
                %1625 = vst [vmem:[%s1559 + $0x80] sm:%s1551] %v1624
                %v1626 = vld [vmem:[%s1558 + $0x88] sm:%s1551]
                %1627 = vst [vmem:[%s1559 + $0x84] sm:%s1551] %v1626
                %v1628 = vld [vmem:[%s1558 + $0x84] sm:%s1551]
                %1629 = vst [vmem:[%s1559 + $0x88] sm:%s1551] %v1628
                %v1630 = vld [vmem:[%s1558 + $0x8c] sm:%s1551]
                %1631 = vst [vmem:[%s1559 + $0x8c] sm:%s1551] %v1630
                %v1632 = vld [vmem:[%s1558 + $0x90] sm:%s1551]
                %1633 = vst [vmem:[%s1559 + $0x90] sm:%s1551] %v1632
                %v1634 = vld [vmem:[%s1558 + $0x98] sm:%s1551]
                %1635 = vst [vmem:[%s1559 + $0x94] sm:%s1551] %v1634
                %v1636 = vld [vmem:[%s1558 + $0x94] sm:%s1551]
                %1637 = vst [vmem:[%s1559 + $0x98] sm:%s1551] %v1636
                %v1638 = vld [vmem:[%s1558 + $0x9c] sm:%s1551]
                %1639 = vst [vmem:[%s1559 + $0x9c] sm:%s1551] %v1638
                %v1640 = vld [vmem:[%s1558 + $0xa0] sm:%s1551]
                %1641 = vst [vmem:[%s1559 + $0xa0] sm:%s1551] %v1640
                %v1642 = vld [vmem:[%s1558 + $0xa8] sm:%s1551]
                %1643 = vst [vmem:[%s1559 + $0xa4] sm:%s1551] %v1642
                %v1644 = vld [vmem:[%s1558 + $0xa4] sm:%s1551]
                %1645 = vst [vmem:[%s1559 + $0xa8] sm:%s1551] %v1644
                %v1646 = vld [vmem:[%s1558 + $0xac] sm:%s1551]
                %1647 = vst [vmem:[%s1559 + $0xac] sm:%s1551] %v1646
                %v1648 = vld [vmem:[%s1558 + $0xb0] sm:%s1551]
                %1649 = vst [vmem:[%s1559 + $0xb0] sm:%s1551] %v1648
                %v1650 = vld [vmem:[%s1558 + $0xb8] sm:%s1551]
                %1651 = vst [vmem:[%s1559 + $0xb4] sm:%s1551] %v1650
                %v1652 = vld [vmem:[%s1558 + $0xb4] sm:%s1551]
                %1653 = vst [vmem:[%s1559 + $0xb8] sm:%s1551] %v1652
                %v1654 = vld [vmem:[%s1558 + $0xbc] sm:%s1551]
                %1655 = vst [vmem:[%s1559 + $0xbc] sm:%s1551] %v1654
                %v1656 = vld [vmem:[%s1558 + $0xc0] sm:%s1551]
                %1657 = vst [vmem:[%s1559 + $0xc0] sm:%s1551] %v1656
                %v1658 = vld [vmem:[%s1558 + $0xc8] sm:%s1551]
                %1659 = vst [vmem:[%s1559 + $0xc4] sm:%s1551] %v1658
                %v1660 = vld [vmem:[%s1558 + $0xc4] sm:%s1551]
                %1661 = vst [vmem:[%s1559 + $0xc8] sm:%s1551] %v1660
                %v1662 = vld [vmem:[%s1558 + $0xcc] sm:%s1551]
                %1663 = vst [vmem:[%s1559 + $0xcc] sm:%s1551] %v1662
                %v1664 = vld [vmem:[%s1558 + $0xd0] sm:%s1551]
                %1665 = vst [vmem:[%s1559 + $0xd0] sm:%s1551] %v1664
                %v1666 = vld [vmem:[%s1558 + $0xd8] sm:%s1551]
                %1667 = vst [vmem:[%s1559 + $0xd4] sm:%s1551] %v1666
                %v1668 = vld [vmem:[%s1558 + $0xd4] sm:%s1551]
                %1669 = vst [vmem:[%s1559 + $0xd8] sm:%s1551] %v1668
                %v1670 = vld [vmem:[%s1558 + $0xdc] sm:%s1551]
                %1671 = vst [vmem:[%s1559 + $0xdc] sm:%s1551] %v1670
                %v1672 = vld [vmem:[%s1558 + $0xe0] sm:%s1551]
                %1673 = vst [vmem:[%s1559 + $0xe0] sm:%s1551] %v1672
                %v1674 = vld [vmem:[%s1558 + $0xe8] sm:%s1551]
                %1675 = vst [vmem:[%s1559 + $0xe4] sm:%s1551] %v1674
                %v1676 = vld [vmem:[%s1558 + $0xe4] sm:%s1551]
                %1677 = vst [vmem:[%s1559 + $0xe8] sm:%s1551] %v1676
                %v1678 = vld [vmem:[%s1558 + $0xec] sm:%s1551]
                %1679 = vst [vmem:[%s1559 + $0xec] sm:%s1551] %v1678
                %v1680 = vld [vmem:[%s1558 + $0xf0] sm:%s1551]
                %1681 = vst [vmem:[%s1559 + $0xf0] sm:%s1551] %v1680
                %v1682 = vld [vmem:[%s1558 + $0xf8] sm:%s1551]
                %1683 = vst [vmem:[%s1559 + $0xf4] sm:%s1551] %v1682
                %v1684 = vld [vmem:[%s1558 + $0xf4] sm:%s1551]
                %1685 = vst [vmem:[%s1559 + $0xf8] sm:%s1551] %v1684
                %v1686 = vld [vmem:[%s1558 + $0xfc] sm:%s1551]
                %1687 = vst [vmem:[%s1559 + $0xfc] sm:%s1551] %v1686
                %v1688 = vld [vmem:[%s1558 + $0x100] sm:%s1551]
                %1689 = vst [vmem:[%s1559 + $0x100] sm:%s1551] %v1688
                %v1690 = vld [vmem:[%s1558 + $0x108] sm:%s1551]
                %1691 = vst [vmem:[%s1559 + $0x104] sm:%s1551] %v1690
                %v1692 = vld [vmem:[%s1558 + $0x104] sm:%s1551]
                %1693 = vst [vmem:[%s1559 + $0x108] sm:%s1551] %v1692
                %v1694 = vld [vmem:[%s1558 + $0x10c] sm:%s1551]
                %1695 = vst [vmem:[%s1559 + $0x10c] sm:%s1551] %v1694
                %v1696 = vld [vmem:[%s1558 + $0x110] sm:%s1551]
                %1697 = vst [vmem:[%s1559 + $0x110] sm:%s1551] %v1696
                %v1698 = vld [vmem:[%s1558 + $0x118] sm:%s1551]
                %1699 = vst [vmem:[%s1559 + $0x114] sm:%s1551] %v1698
                %v1700 = vld [vmem:[%s1558 + $0x114] sm:%s1551]
                %1701 = vst [vmem:[%s1559 + $0x118] sm:%s1551] %v1700
                %v1702 = vld [vmem:[%s1558 + $0x11c] sm:%s1551]
                %1703 = vst [vmem:[%s1559 + $0x11c] sm:%s1551] %v1702
                %v1704 = vld [vmem:[%s1558 + $0x120] sm:%s1551]
                %1705 = vst [vmem:[%s1559 + $0x120] sm:%s1551] %v1704
                %v1706 = vld [vmem:[%s1558 + $0x128] sm:%s1551]
                %1707 = vst [vmem:[%s1559 + $0x124] sm:%s1551] %v1706
                %v1708 = vld [vmem:[%s1558 + $0x124] sm:%s1551]
                %1709 = vst [vmem:[%s1559 + $0x128] sm:%s1551] %v1708
                %v1710 = vld [vmem:[%s1558 + $0x12c] sm:%s1551]
                %1711 = vst [vmem:[%s1559 + $0x12c] sm:%s1551] %v1710
                %v1712 = vld [vmem:[%s1558 + $0x130] sm:%s1551]
                %1713 = vst [vmem:[%s1559 + $0x130] sm:%s1551] %v1712
                %v1714 = vld [vmem:[%s1558 + $0x138] sm:%s1551]
                %1715 = vst [vmem:[%s1559 + $0x134] sm:%s1551] %v1714
                %v1716 = vld [vmem:[%s1558 + $0x134] sm:%s1551]
                %1717 = vst [vmem:[%s1559 + $0x138] sm:%s1551] %v1716
                %v1718 = vld [vmem:[%s1558 + $0x13c] sm:%s1551]
                %1719 = vst [vmem:[%s1559 + $0x13c] sm:%s1551] %v1718
                %v1720 = vld [vmem:[%s1558 + $0x140] sm:%s1551]
                %1721 = vst [vmem:[%s1559 + $0x140] sm:%s1551] %v1720
                %v1722 = vld [vmem:[%s1558 + $0x148] sm:%s1551]
                %1723 = vst [vmem:[%s1559 + $0x144] sm:%s1551] %v1722
                %v1724 = vld [vmem:[%s1558 + $0x144] sm:%s1551]
                %1725 = vst [vmem:[%s1559 + $0x148] sm:%s1551] %v1724
                %v1726 = vld [vmem:[%s1558 + $0x14c] sm:%s1551]
                %1727 = vst [vmem:[%s1559 + $0x14c] sm:%s1551] %v1726
                %v1728 = vld [vmem:[%s1558 + $0x150] sm:%s1551]
                %1729 = vst [vmem:[%s1559 + $0x150] sm:%s1551] %v1728
                %v1730 = vld [vmem:[%s1558 + $0x158] sm:%s1551]
                %1731 = vst [vmem:[%s1559 + $0x154] sm:%s1551] %v1730
                %v1732 = vld [vmem:[%s1558 + $0x154] sm:%s1551]
                %1733 = vst [vmem:[%s1559 + $0x158] sm:%s1551] %v1732
                %v1734 = vld [vmem:[%s1558 + $0x15c] sm:%s1551]
                %1735 = vst [vmem:[%s1559 + $0x15c] sm:%s1551] %v1734
                %v1736 = vld [vmem:[%s1558 + $0x160] sm:%s1551]
                %1737 = vst [vmem:[%s1559 + $0x160] sm:%s1551] %v1736
                %v1738 = vld [vmem:[%s1558 + $0x168] sm:%s1551]
                %1739 = vst [vmem:[%s1559 + $0x164] sm:%s1551] %v1738
                %v1740 = vld [vmem:[%s1558 + $0x164] sm:%s1551]
                %1741 = vst [vmem:[%s1559 + $0x168] sm:%s1551] %v1740
                %v1742 = vld [vmem:[%s1558 + $0x16c] sm:%s1551]
                %1743 = vst [vmem:[%s1559 + $0x16c] sm:%s1551] %v1742
                %v1744 = vld [vmem:[%s1558 + $0x170] sm:%s1551]
                %1745 = vst [vmem:[%s1559 + $0x170] sm:%s1551] %v1744
                %v1746 = vld [vmem:[%s1558 + $0x178] sm:%s1551]
                %1747 = vst [vmem:[%s1559 + $0x174] sm:%s1551] %v1746
                %v1748 = vld [vmem:[%s1558 + $0x174] sm:%s1551]
                %1749 = vst [vmem:[%s1559 + $0x178] sm:%s1551] %v1748
                %v1750 = vld [vmem:[%s1558 + $0x17c] sm:%s1551]
                %1751 = vst [vmem:[%s1559 + $0x17c] sm:%s1551] %v1750
                %v1752 = vld [vmem:[%s1558 + $0x180] sm:%s1551]
                %1753 = vst [vmem:[%s1559 + $0x180] sm:%s1551] %v1752
                %v1754 = vld [vmem:[%s1558 + $0x188] sm:%s1551]
                %1755 = vst [vmem:[%s1559 + $0x184] sm:%s1551] %v1754
                %v1756 = vld [vmem:[%s1558 + $0x184] sm:%s1551]
                %1757 = vst [vmem:[%s1559 + $0x188] sm:%s1551] %v1756
                %v1758 = vld [vmem:[%s1558 + $0x18c] sm:%s1551]
                %1759 = vst [vmem:[%s1559 + $0x18c] sm:%s1551] %v1758
                %v1760 = vld [vmem:[%s1558 + $0x190] sm:%s1551]
                %1761 = vst [vmem:[%s1559 + $0x190] sm:%s1551] %v1760
                %v1762 = vld [vmem:[%s1558 + $0x198] sm:%s1551]
                %1763 = vst [vmem:[%s1559 + $0x194] sm:%s1551] %v1762
                %v1764 = vld [vmem:[%s1558 + $0x194] sm:%s1551]
                %1765 = vst [vmem:[%s1559 + $0x198] sm:%s1551] %v1764
                %v1766 = vld [vmem:[%s1558 + $0x19c] sm:%s1551]
                %1767 = vst [vmem:[%s1559 + $0x19c] sm:%s1551] %v1766
                %v1768 = vld [vmem:[%s1558 + $0x1a0] sm:%s1551]
                %1769 = vst [vmem:[%s1559 + $0x1a0] sm:%s1551] %v1768
                %v1770 = vld [vmem:[%s1558 + $0x1a8] sm:%s1551]
                %1771 = vst [vmem:[%s1559 + $0x1a4] sm:%s1551] %v1770
                %v1772 = vld [vmem:[%s1558 + $0x1a4] sm:%s1551]
                %1773 = vst [vmem:[%s1559 + $0x1a8] sm:%s1551] %v1772
                %v1774 = vld [vmem:[%s1558 + $0x1ac] sm:%s1551]
                %1775 = vst [vmem:[%s1559 + $0x1ac] sm:%s1551] %v1774
                %v1776 = vld [vmem:[%s1558 + $0x1b0] sm:%s1551]
                %1777 = vst [vmem:[%s1559 + $0x1b0] sm:%s1551] %v1776
                %v1778 = vld [vmem:[%s1558 + $0x1b8] sm:%s1551]
                %1779 = vst [vmem:[%s1559 + $0x1b4] sm:%s1551] %v1778
                %v1780 = vld [vmem:[%s1558 + $0x1b4] sm:%s1551]
                %1781 = vst [vmem:[%s1559 + $0x1b8] sm:%s1551] %v1780
                %v1782 = vld [vmem:[%s1558 + $0x1bc] sm:%s1551]
                %1783 = vst [vmem:[%s1559 + $0x1bc] sm:%s1551] %v1782
                %v1784 = vld [vmem:[%s1558 + $0x1c0] sm:%s1551]
                %1785 = vst [vmem:[%s1559 + $0x1c0] sm:%s1551] %v1784
                %v1786 = vld [vmem:[%s1558 + $0x1c8] sm:%s1551]
                %1787 = vst [vmem:[%s1559 + $0x1c4] sm:%s1551] %v1786
                %v1788 = vld [vmem:[%s1558 + $0x1c4] sm:%s1551]
                %1789 = vst [vmem:[%s1559 + $0x1c8] sm:%s1551] %v1788
                %v1790 = vld [vmem:[%s1558 + $0x1cc] sm:%s1551]
                %1791 = vst [vmem:[%s1559 + $0x1cc] sm:%s1551] %v1790
                %v1792 = vld [vmem:[%s1558 + $0x1d0] sm:%s1551]
                %1793 = vst [vmem:[%s1559 + $0x1d0] sm:%s1551] %v1792
                %v1794 = vld [vmem:[%s1558 + $0x1d8] sm:%s1551]
                %1795 = vst [vmem:[%s1559 + $0x1d4] sm:%s1551] %v1794
                %v1796 = vld [vmem:[%s1558 + $0x1d4] sm:%s1551]
                %1797 = vst [vmem:[%s1559 + $0x1d8] sm:%s1551] %v1796
                %v1798 = vld [vmem:[%s1558 + $0x1dc] sm:%s1551]
                %1799 = vst [vmem:[%s1559 + $0x1dc] sm:%s1551] %v1798
                %v1800 = vld [vmem:[%s1558 + $0x1e0] sm:%s1551]
                %1801 = vst [vmem:[%s1559 + $0x1e0] sm:%s1551] %v1800
                %v1802 = vld [vmem:[%s1558 + $0x1e8] sm:%s1551]
                %1803 = vst [vmem:[%s1559 + $0x1e4] sm:%s1551] %v1802
                %v1804 = vld [vmem:[%s1558 + $0x1e4] sm:%s1551]
                %1805 = vst [vmem:[%s1559 + $0x1e8] sm:%s1551] %v1804
                %v1806 = vld [vmem:[%s1558 + $0x1ec] sm:%s1551]
                %1807 = vst [vmem:[%s1559 + $0x1ec] sm:%s1551] %v1806
                %v1808 = vld [vmem:[%s1558 + $0x1f0] sm:%s1551]
                %1809 = vst [vmem:[%s1559 + $0x1f0] sm:%s1551] %v1808
                %v1810 = vld [vmem:[%s1558 + $0x1f8] sm:%s1551]
                %1811 = vst [vmem:[%s1559 + $0x1f4] sm:%s1551] %v1810
                %v1812 = vld [vmem:[%s1558 + $0x1f4] sm:%s1551]
                %1813 = vst [vmem:[%s1559 + $0x1f8] sm:%s1551] %v1812
                %v1814 = vld [vmem:[%s1558 + $0x1fc] sm:%s1551]
                %1815 = vst [vmem:[%s1559 + $0x1fc] sm:%s1551] %v1814
              $region195: #{transformer_mlp_forward.1} parent=182 // loop_footer
                %s1557 = sadd.s32 1, %s1553
              $region196: #{transformer_mlp_forward.1} parent=182 // loop_footer_branch
                %1552 = sbr.rel target = $region192
              $region197: #{transformer_mlp_forward.1} parent=182 // loop_exit
                _
            $region183: #{transformer_mlp_forward.1} parent=167 // pred_fallthru
              _
          $region168: #{transformer_mlp_forward.1} parent=126 // pred_fallthru
            _
          // Predicated region
          $region169: #{transformer_mlp_forward.1} parent=126 // pred_check
            %p1265 = pneg %p1261
          $region170: #{transformer_mlp_forward.1} parent=126 // pred_check_branch
            %1267 = sbr.rel (%p1265) target = $region172
          $region171: #{transformer_mlp_forward.1} parent=126 // pred_region
            %s1268 = sshllo.u32 0, 4
            loop: start=0, step=1, limit=1
            $region173: #{transformer_mlp_forward.1} parent=171 // loop_pre_header
              _
            $region174: #{transformer_mlp_forward.1} parent=171 // loop_header
              %s1270 = sphi 0, %s1274
              %p1271 = scmp.ge.s32.totalorder %s1270, 1
              %s1275 = sphi %s18, %s18
              %s1276 = sphi [#allocation6], [#allocation6]
            $region175: #{transformer_mlp_forward.1} parent=171 // loop_header_branch
              %1273 = sbr.rel (%p1271) target = $region179
            $region176: #{transformer_mlp_forward.1} parent=171 // loop_body
              %v1277 = vld [vmem:[%s1275] sm:%s1268]
              %1278 = vst [vmem:[%s1276] sm:%s1268] %v1277
              %v1279 = vld [vmem:[%s1275 + $0x8] sm:%s1268]
              %1280 = vst [vmem:[%s1276 + $0x4] sm:%s1268] %v1279
              %v1281 = vld [vmem:[%s1275 + $0x4] sm:%s1268]
              %1282 = vst [vmem:[%s1276 + $0x8] sm:%s1268] %v1281
              %v1283 = vld [vmem:[%s1275 + $0xc] sm:%s1268]
              %1284 = vst [vmem:[%s1276 + $0xc] sm:%s1268] %v1283
              %v1285 = vld [vmem:[%s1275 + $0x10] sm:%s1268]
              %1286 = vst [vmem:[%s1276 + $0x10] sm:%s1268] %v1285
              %v1287 = vld [vmem:[%s1275 + $0x18] sm:%s1268]
              %1288 = vst [vmem:[%s1276 + $0x14] sm:%s1268] %v1287
              %v1289 = vld [vmem:[%s1275 + $0x14] sm:%s1268]
              %1290 = vst [vmem:[%s1276 + $0x18] sm:%s1268] %v1289
              %v1291 = vld [vmem:[%s1275 + $0x1c] sm:%s1268]
              %1292 = vst [vmem:[%s1276 + $0x1c] sm:%s1268] %v1291
              %v1293 = vld [vmem:[%s1275 + $0x20] sm:%s1268]
              %1294 = vst [vmem:[%s1276 + $0x20] sm:%s1268] %v1293
              %v1295 = vld [vmem:[%s1275 + $0x28] sm:%s1268]
              %1296 = vst [vmem:[%s1276 + $0x24] sm:%s1268] %v1295
              %v1297 = vld [vmem:[%s1275 + $0x24] sm:%s1268]
              %1298 = vst [vmem:[%s1276 + $0x28] sm:%s1268] %v1297
              %v1299 = vld [vmem:[%s1275 + $0x2c] sm:%s1268]
              %1300 = vst [vmem:[%s1276 + $0x2c] sm:%s1268] %v1299
              %v1301 = vld [vmem:[%s1275 + $0x30] sm:%s1268]
              %1302 = vst [vmem:[%s1276 + $0x30] sm:%s1268] %v1301
              %v1303 = vld [vmem:[%s1275 + $0x38] sm:%s1268]
              %1304 = vst [vmem:[%s1276 + $0x34] sm:%s1268] %v1303
              %v1305 = vld [vmem:[%s1275 + $0x34] sm:%s1268]
              %1306 = vst [vmem:[%s1276 + $0x38] sm:%s1268] %v1305
              %v1307 = vld [vmem:[%s1275 + $0x3c] sm:%s1268]
              %1308 = vst [vmem:[%s1276 + $0x3c] sm:%s1268] %v1307
              %v1309 = vld [vmem:[%s1275 + $0x40] sm:%s1268]
              %1310 = vst [vmem:[%s1276 + $0x40] sm:%s1268] %v1309
              %v1311 = vld [vmem:[%s1275 + $0x48] sm:%s1268]
              %1312 = vst [vmem:[%s1276 + $0x44] sm:%s1268] %v1311
              %v1313 = vld [vmem:[%s1275 + $0x44] sm:%s1268]
              %1314 = vst [vmem:[%s1276 + $0x48] sm:%s1268] %v1313
              %v1315 = vld [vmem:[%s1275 + $0x4c] sm:%s1268]
              %1316 = vst [vmem:[%s1276 + $0x4c] sm:%s1268] %v1315
              %v1317 = vld [vmem:[%s1275 + $0x50] sm:%s1268]
              %1318 = vst [vmem:[%s1276 + $0x50] sm:%s1268] %v1317
              %v1319 = vld [vmem:[%s1275 + $0x58] sm:%s1268]
              %1320 = vst [vmem:[%s1276 + $0x54] sm:%s1268] %v1319
              %v1321 = vld [vmem:[%s1275 + $0x54] sm:%s1268]
              %1322 = vst [vmem:[%s1276 + $0x58] sm:%s1268] %v1321
              %v1323 = vld [vmem:[%s1275 + $0x5c] sm:%s1268]
              %1324 = vst [vmem:[%s1276 + $0x5c] sm:%s1268] %v1323
              %v1325 = vld [vmem:[%s1275 + $0x60] sm:%s1268]
              %1326 = vst [vmem:[%s1276 + $0x60] sm:%s1268] %v1325
              %v1327 = vld [vmem:[%s1275 + $0x68] sm:%s1268]
              %1328 = vst [vmem:[%s1276 + $0x64] sm:%s1268] %v1327
              %v1329 = vld [vmem:[%s1275 + $0x64] sm:%s1268]
              %1330 = vst [vmem:[%s1276 + $0x68] sm:%s1268] %v1329
              %v1331 = vld [vmem:[%s1275 + $0x6c] sm:%s1268]
              %1332 = vst [vmem:[%s1276 + $0x6c] sm:%s1268] %v1331
              %v1333 = vld [vmem:[%s1275 + $0x70] sm:%s1268]
              %1334 = vst [vmem:[%s1276 + $0x70] sm:%s1268] %v1333
              %v1335 = vld [vmem:[%s1275 + $0x78] sm:%s1268]
              %1336 = vst [vmem:[%s1276 + $0x74] sm:%s1268] %v1335
              %v1337 = vld [vmem:[%s1275 + $0x74] sm:%s1268]
              %1338 = vst [vmem:[%s1276 + $0x78] sm:%s1268] %v1337
              %v1339 = vld [vmem:[%s1275 + $0x7c] sm:%s1268]
              %1340 = vst [vmem:[%s1276 + $0x7c] sm:%s1268] %v1339
              %v1341 = vld [vmem:[%s1275 + $0x80] sm:%s1268]
              %1342 = vst [vmem:[%s1276 + $0x80] sm:%s1268] %v1341
              %v1343 = vld [vmem:[%s1275 + $0x88] sm:%s1268]
              %1344 = vst [vmem:[%s1276 + $0x84] sm:%s1268] %v1343
              %v1345 = vld [vmem:[%s1275 + $0x84] sm:%s1268]
              %1346 = vst [vmem:[%s1276 + $0x88] sm:%s1268] %v1345
              %v1347 = vld [vmem:[%s1275 + $0x8c] sm:%s1268]
              %1348 = vst [vmem:[%s1276 + $0x8c] sm:%s1268] %v1347
              %v1349 = vld [vmem:[%s1275 + $0x90] sm:%s1268]
              %1350 = vst [vmem:[%s1276 + $0x90] sm:%s1268] %v1349
              %v1351 = vld [vmem:[%s1275 + $0x98] sm:%s1268]
              %1352 = vst [vmem:[%s1276 + $0x94] sm:%s1268] %v1351
              %v1353 = vld [vmem:[%s1275 + $0x94] sm:%s1268]
              %1354 = vst [vmem:[%s1276 + $0x98] sm:%s1268] %v1353
              %v1355 = vld [vmem:[%s1275 + $0x9c] sm:%s1268]
              %1356 = vst [vmem:[%s1276 + $0x9c] sm:%s1268] %v1355
              %v1357 = vld [vmem:[%s1275 + $0xa0] sm:%s1268]
              %1358 = vst [vmem:[%s1276 + $0xa0] sm:%s1268] %v1357
              %v1359 = vld [vmem:[%s1275 + $0xa8] sm:%s1268]
              %1360 = vst [vmem:[%s1276 + $0xa4] sm:%s1268] %v1359
              %v1361 = vld [vmem:[%s1275 + $0xa4] sm:%s1268]
              %1362 = vst [vmem:[%s1276 + $0xa8] sm:%s1268] %v1361
              %v1363 = vld [vmem:[%s1275 + $0xac] sm:%s1268]
              %1364 = vst [vmem:[%s1276 + $0xac] sm:%s1268] %v1363
              %v1365 = vld [vmem:[%s1275 + $0xb0] sm:%s1268]
              %1366 = vst [vmem:[%s1276 + $0xb0] sm:%s1268] %v1365
              %v1367 = vld [vmem:[%s1275 + $0xb8] sm:%s1268]
              %1368 = vst [vmem:[%s1276 + $0xb4] sm:%s1268] %v1367
              %v1369 = vld [vmem:[%s1275 + $0xb4] sm:%s1268]
              %1370 = vst [vmem:[%s1276 + $0xb8] sm:%s1268] %v1369
              %v1371 = vld [vmem:[%s1275 + $0xbc] sm:%s1268]
              %1372 = vst [vmem:[%s1276 + $0xbc] sm:%s1268] %v1371
              %v1373 = vld [vmem:[%s1275 + $0xc0] sm:%s1268]
              %1374 = vst [vmem:[%s1276 + $0xc0] sm:%s1268] %v1373
              %v1375 = vld [vmem:[%s1275 + $0xc8] sm:%s1268]
              %1376 = vst [vmem:[%s1276 + $0xc4] sm:%s1268] %v1375
              %v1377 = vld [vmem:[%s1275 + $0xc4] sm:%s1268]
              %1378 = vst [vmem:[%s1276 + $0xc8] sm:%s1268] %v1377
              %v1379 = vld [vmem:[%s1275 + $0xcc] sm:%s1268]
              %1380 = vst [vmem:[%s1276 + $0xcc] sm:%s1268] %v1379
              %v1381 = vld [vmem:[%s1275 + $0xd0] sm:%s1268]
              %1382 = vst [vmem:[%s1276 + $0xd0] sm:%s1268] %v1381
              %v1383 = vld [vmem:[%s1275 + $0xd8] sm:%s1268]
              %1384 = vst [vmem:[%s1276 + $0xd4] sm:%s1268] %v1383
              %v1385 = vld [vmem:[%s1275 + $0xd4] sm:%s1268]
              %1386 = vst [vmem:[%s1276 + $0xd8] sm:%s1268] %v1385
              %v1387 = vld [vmem:[%s1275 + $0xdc] sm:%s1268]
              %1388 = vst [vmem:[%s1276 + $0xdc] sm:%s1268] %v1387
              %v1389 = vld [vmem:[%s1275 + $0xe0] sm:%s1268]
              %1390 = vst [vmem:[%s1276 + $0xe0] sm:%s1268] %v1389
              %v1391 = vld [vmem:[%s1275 + $0xe8] sm:%s1268]
              %1392 = vst [vmem:[%s1276 + $0xe4] sm:%s1268] %v1391
              %v1393 = vld [vmem:[%s1275 + $0xe4] sm:%s1268]
              %1394 = vst [vmem:[%s1276 + $0xe8] sm:%s1268] %v1393
              %v1395 = vld [vmem:[%s1275 + $0xec] sm:%s1268]
              %1396 = vst [vmem:[%s1276 + $0xec] sm:%s1268] %v1395
              %v1397 = vld [vmem:[%s1275 + $0xf0] sm:%s1268]
              %1398 = vst [vmem:[%s1276 + $0xf0] sm:%s1268] %v1397
              %v1399 = vld [vmem:[%s1275 + $0xf8] sm:%s1268]
              %1400 = vst [vmem:[%s1276 + $0xf4] sm:%s1268] %v1399
              %v1401 = vld [vmem:[%s1275 + $0xf4] sm:%s1268]
              %1402 = vst [vmem:[%s1276 + $0xf8] sm:%s1268] %v1401
              %v1403 = vld [vmem:[%s1275 + $0xfc] sm:%s1268]
              %1404 = vst [vmem:[%s1276 + $0xfc] sm:%s1268] %v1403
              %v1405 = vld [vmem:[%s1275 + $0x100] sm:%s1268]
              %1406 = vst [vmem:[%s1276 + $0x100] sm:%s1268] %v1405
              %v1407 = vld [vmem:[%s1275 + $0x108] sm:%s1268]
              %1408 = vst [vmem:[%s1276 + $0x104] sm:%s1268] %v1407
              %v1409 = vld [vmem:[%s1275 + $0x104] sm:%s1268]
              %1410 = vst [vmem:[%s1276 + $0x108] sm:%s1268] %v1409
              %v1411 = vld [vmem:[%s1275 + $0x10c] sm:%s1268]
              %1412 = vst [vmem:[%s1276 + $0x10c] sm:%s1268] %v1411
              %v1413 = vld [vmem:[%s1275 + $0x110] sm:%s1268]
              %1414 = vst [vmem:[%s1276 + $0x110] sm:%s1268] %v1413
              %v1415 = vld [vmem:[%s1275 + $0x118] sm:%s1268]
              %1416 = vst [vmem:[%s1276 + $0x114] sm:%s1268] %v1415
              %v1417 = vld [vmem:[%s1275 + $0x114] sm:%s1268]
              %1418 = vst [vmem:[%s1276 + $0x118] sm:%s1268] %v1417
              %v1419 = vld [vmem:[%s1275 + $0x11c] sm:%s1268]
              %1420 = vst [vmem:[%s1276 + $0x11c] sm:%s1268] %v1419
              %v1421 = vld [vmem:[%s1275 + $0x120] sm:%s1268]
              %1422 = vst [vmem:[%s1276 + $0x120] sm:%s1268] %v1421
              %v1423 = vld [vmem:[%s1275 + $0x128] sm:%s1268]
              %1424 = vst [vmem:[%s1276 + $0x124] sm:%s1268] %v1423
              %v1425 = vld [vmem:[%s1275 + $0x124] sm:%s1268]
              %1426 = vst [vmem:[%s1276 + $0x128] sm:%s1268] %v1425
              %v1427 = vld [vmem:[%s1275 + $0x12c] sm:%s1268]
              %1428 = vst [vmem:[%s1276 + $0x12c] sm:%s1268] %v1427
              %v1429 = vld [vmem:[%s1275 + $0x130] sm:%s1268]
              %1430 = vst [vmem:[%s1276 + $0x130] sm:%s1268] %v1429
              %v1431 = vld [vmem:[%s1275 + $0x138] sm:%s1268]
              %1432 = vst [vmem:[%s1276 + $0x134] sm:%s1268] %v1431
              %v1433 = vld [vmem:[%s1275 + $0x134] sm:%s1268]
              %1434 = vst [vmem:[%s1276 + $0x138] sm:%s1268] %v1433
              %v1435 = vld [vmem:[%s1275 + $0x13c] sm:%s1268]
              %1436 = vst [vmem:[%s1276 + $0x13c] sm:%s1268] %v1435
              %v1437 = vld [vmem:[%s1275 + $0x140] sm:%s1268]
              %1438 = vst [vmem:[%s1276 + $0x140] sm:%s1268] %v1437
              %v1439 = vld [vmem:[%s1275 + $0x148] sm:%s1268]
              %1440 = vst [vmem:[%s1276 + $0x144] sm:%s1268] %v1439
              %v1441 = vld [vmem:[%s1275 + $0x144] sm:%s1268]
              %1442 = vst [vmem:[%s1276 + $0x148] sm:%s1268] %v1441
              %v1443 = vld [vmem:[%s1275 + $0x14c] sm:%s1268]
              %1444 = vst [vmem:[%s1276 + $0x14c] sm:%s1268] %v1443
              %v1445 = vld [vmem:[%s1275 + $0x150] sm:%s1268]
              %1446 = vst [vmem:[%s1276 + $0x150] sm:%s1268] %v1445
              %v1447 = vld [vmem:[%s1275 + $0x158] sm:%s1268]
              %1448 = vst [vmem:[%s1276 + $0x154] sm:%s1268] %v1447
              %v1449 = vld [vmem:[%s1275 + $0x154] sm:%s1268]
              %1450 = vst [vmem:[%s1276 + $0x158] sm:%s1268] %v1449
              %v1451 = vld [vmem:[%s1275 + $0x15c] sm:%s1268]
              %1452 = vst [vmem:[%s1276 + $0x15c] sm:%s1268] %v1451
              %v1453 = vld [vmem:[%s1275 + $0x160] sm:%s1268]
              %1454 = vst [vmem:[%s1276 + $0x160] sm:%s1268] %v1453
              %v1455 = vld [vmem:[%s1275 + $0x168] sm:%s1268]
              %1456 = vst [vmem:[%s1276 + $0x164] sm:%s1268] %v1455
              %v1457 = vld [vmem:[%s1275 + $0x164] sm:%s1268]
              %1458 = vst [vmem:[%s1276 + $0x168] sm:%s1268] %v1457
              %v1459 = vld [vmem:[%s1275 + $0x16c] sm:%s1268]
              %1460 = vst [vmem:[%s1276 + $0x16c] sm:%s1268] %v1459
              %v1461 = vld [vmem:[%s1275 + $0x170] sm:%s1268]
              %1462 = vst [vmem:[%s1276 + $0x170] sm:%s1268] %v1461
              %v1463 = vld [vmem:[%s1275 + $0x178] sm:%s1268]
              %1464 = vst [vmem:[%s1276 + $0x174] sm:%s1268] %v1463
              %v1465 = vld [vmem:[%s1275 + $0x174] sm:%s1268]
              %1466 = vst [vmem:[%s1276 + $0x178] sm:%s1268] %v1465
              %v1467 = vld [vmem:[%s1275 + $0x17c] sm:%s1268]
              %1468 = vst [vmem:[%s1276 + $0x17c] sm:%s1268] %v1467
              %v1469 = vld [vmem:[%s1275 + $0x180] sm:%s1268]
              %1470 = vst [vmem:[%s1276 + $0x180] sm:%s1268] %v1469
              %v1471 = vld [vmem:[%s1275 + $0x188] sm:%s1268]
              %1472 = vst [vmem:[%s1276 + $0x184] sm:%s1268] %v1471
              %v1473 = vld [vmem:[%s1275 + $0x184] sm:%s1268]
              %1474 = vst [vmem:[%s1276 + $0x188] sm:%s1268] %v1473
              %v1475 = vld [vmem:[%s1275 + $0x18c] sm:%s1268]
              %1476 = vst [vmem:[%s1276 + $0x18c] sm:%s1268] %v1475
              %v1477 = vld [vmem:[%s1275 + $0x190] sm:%s1268]
              %1478 = vst [vmem:[%s1276 + $0x190] sm:%s1268] %v1477
              %v1479 = vld [vmem:[%s1275 + $0x198] sm:%s1268]
              %1480 = vst [vmem:[%s1276 + $0x194] sm:%s1268] %v1479
              %v1481 = vld [vmem:[%s1275 + $0x194] sm:%s1268]
              %1482 = vst [vmem:[%s1276 + $0x198] sm:%s1268] %v1481
              %v1483 = vld [vmem:[%s1275 + $0x19c] sm:%s1268]
              %1484 = vst [vmem:[%s1276 + $0x19c] sm:%s1268] %v1483
              %v1485 = vld [vmem:[%s1275 + $0x1a0] sm:%s1268]
              %1486 = vst [vmem:[%s1276 + $0x1a0] sm:%s1268] %v1485
              %v1487 = vld [vmem:[%s1275 + $0x1a8] sm:%s1268]
              %1488 = vst [vmem:[%s1276 + $0x1a4] sm:%s1268] %v1487
              %v1489 = vld [vmem:[%s1275 + $0x1a4] sm:%s1268]
              %1490 = vst [vmem:[%s1276 + $0x1a8] sm:%s1268] %v1489
              %v1491 = vld [vmem:[%s1275 + $0x1ac] sm:%s1268]
              %1492 = vst [vmem:[%s1276 + $0x1ac] sm:%s1268] %v1491
              %v1493 = vld [vmem:[%s1275 + $0x1b0] sm:%s1268]
              %1494 = vst [vmem:[%s1276 + $0x1b0] sm:%s1268] %v1493
              %v1495 = vld [vmem:[%s1275 + $0x1b8] sm:%s1268]
              %1496 = vst [vmem:[%s1276 + $0x1b4] sm:%s1268] %v1495
              %v1497 = vld [vmem:[%s1275 + $0x1b4] sm:%s1268]
              %1498 = vst [vmem:[%s1276 + $0x1b8] sm:%s1268] %v1497
              %v1499 = vld [vmem:[%s1275 + $0x1bc] sm:%s1268]
              %1500 = vst [vmem:[%s1276 + $0x1bc] sm:%s1268] %v1499
              %v1501 = vld [vmem:[%s1275 + $0x1c0] sm:%s1268]
              %1502 = vst [vmem:[%s1276 + $0x1c0] sm:%s1268] %v1501
              %v1503 = vld [vmem:[%s1275 + $0x1c8] sm:%s1268]
              %1504 = vst [vmem:[%s1276 + $0x1c4] sm:%s1268] %v1503
              %v1505 = vld [vmem:[%s1275 + $0x1c4] sm:%s1268]
              %1506 = vst [vmem:[%s1276 + $0x1c8] sm:%s1268] %v1505
              %v1507 = vld [vmem:[%s1275 + $0x1cc] sm:%s1268]
              %1508 = vst [vmem:[%s1276 + $0x1cc] sm:%s1268] %v1507
              %v1509 = vld [vmem:[%s1275 + $0x1d0] sm:%s1268]
              %1510 = vst [vmem:[%s1276 + $0x1d0] sm:%s1268] %v1509
              %v1511 = vld [vmem:[%s1275 + $0x1d8] sm:%s1268]
              %1512 = vst [vmem:[%s1276 + $0x1d4] sm:%s1268] %v1511
              %v1513 = vld [vmem:[%s1275 + $0x1d4] sm:%s1268]
              %1514 = vst [vmem:[%s1276 + $0x1d8] sm:%s1268] %v1513
              %v1515 = vld [vmem:[%s1275 + $0x1dc] sm:%s1268]
              %1516 = vst [vmem:[%s1276 + $0x1dc] sm:%s1268] %v1515
              %v1517 = vld [vmem:[%s1275 + $0x1e0] sm:%s1268]
              %1518 = vst [vmem:[%s1276 + $0x1e0] sm:%s1268] %v1517
              %v1519 = vld [vmem:[%s1275 + $0x1e8] sm:%s1268]
              %1520 = vst [vmem:[%s1276 + $0x1e4] sm:%s1268] %v1519
              %v1521 = vld [vmem:[%s1275 + $0x1e4] sm:%s1268]
              %1522 = vst [vmem:[%s1276 + $0x1e8] sm:%s1268] %v1521
              %v1523 = vld [vmem:[%s1275 + $0x1ec] sm:%s1268]
              %1524 = vst [vmem:[%s1276 + $0x1ec] sm:%s1268] %v1523
              %v1525 = vld [vmem:[%s1275 + $0x1f0] sm:%s1268]
              %1526 = vst [vmem:[%s1276 + $0x1f0] sm:%s1268] %v1525
              %v1527 = vld [vmem:[%s1275 + $0x1f8] sm:%s1268]
              %1528 = vst [vmem:[%s1276 + $0x1f4] sm:%s1268] %v1527
              %v1529 = vld [vmem:[%s1275 + $0x1f4] sm:%s1268]
              %1530 = vst [vmem:[%s1276 + $0x1f8] sm:%s1268] %v1529
              %v1531 = vld [vmem:[%s1275 + $0x1fc] sm:%s1268]
              %1532 = vst [vmem:[%s1276 + $0x1fc] sm:%s1268] %v1531
            $region177: #{transformer_mlp_forward.1} parent=171 // loop_footer
              %s1274 = sadd.s32 1, %s1270
            $region178: #{transformer_mlp_forward.1} parent=171 // loop_footer_branch
              %1269 = sbr.rel target = $region174
            $region179: #{transformer_mlp_forward.1} parent=171 // loop_exit
              _
          $region172: #{transformer_mlp_forward.1} parent=126 // pred_fallthru
            _
          // Predicated region
          $region198: #{transformer_mlp_forward.1} parent=126 // pred_check
            _
          $region199: #{transformer_mlp_forward.1} parent=126 // pred_check_branch
            %1818 = sbr.rel (0) target = $region201
          $region200: #{transformer_mlp_forward.1} parent=126 // pred_region
            %1819 = vsyncadd %s1259, 8192
          $region201: #{transformer_mlp_forward.1} parent=126 // pred_fallthru
            _
          %v1820 = vld [vmem:[%s0] sm:$0xff]
          %v1821 = vld [vmem:[%s0 + $0x8] sm:$0xff]
          %v1822 = vlaneseq
          %v1823 = vand.u32 %v1822, 127
          %1824 = vset.pattern.permute.xlu0 0
          %1825 = vperm.xlu0 %1824, %v1820
          %v1826 = vpop.permute.xlu0 %1825
          %1827 = vset.pattern.permute.xlu0 0
          %1828 = vperm.xlu0 %1827, %v1821
          %v1829 = vpop.permute.xlu0 %1828
          %vm1830 = vcmp.eq.s32.totalorder %v1826, %v1823
          %vm1831 = vcmp.eq.s32.totalorder %v1829, %v1823
          %v1832 = vsel %vm1830, 1, 0
          %v1833 = vsel %vm1831, 1, 0
          %v1834 = vcvt.s32.f32 %v1832
          %v1835 = vcvt.s32.f32 %v1833
          %v1836 = vld [vmem:[%s1] sm:$0xff]
          %v1837 = vld [vmem:[%s1 + $0x8] sm:$0xff]
          %v1838 = vld [vmem:[%s1 + $0x10] sm:$0xff]
          %v1839 = vld [vmem:[%s1 + $0x18] sm:$0xff]
          %v1840 = vld [vmem:[%s1 + $0x20] sm:$0xff]
          %v1841 = vld [vmem:[%s1 + $0x28] sm:$0xff]
          %v1842 = vld [vmem:[%s1 + $0x30] sm:$0xff]
          %v1843 = vld [vmem:[%s1 + $0x38] sm:$0xff]
          %v1844 = vld [vmem:[%s1 + $0x40] sm:$0xff]
          %v1845 = vld [vmem:[%s1 + $0x48] sm:$0xff]
          %v1846 = vld [vmem:[%s1 + $0x50] sm:$0xff]
          %v1847 = vld [vmem:[%s1 + $0x58] sm:$0xff]
          %v1848 = vld [vmem:[%s1 + $0x60] sm:$0xff]
          %v1849 = vld [vmem:[%s1 + $0x68] sm:$0xff]
          %v1850 = vld [vmem:[%s1 + $0x70] sm:$0xff]
          %v1851 = vld [vmem:[%s1 + $0x78] sm:$0xff]
          %1852 = vmatprep.subr.mxu0 0.0
          %1853 = vmatpush1.msra.mxu0 %v1836
          %1854 = vmatprep.subr.mxu0 0.0
          %1855 = vmatpush1.msra.mxu0 %v1837
          %1856 = vmatprep.subr.mxu0 0.0
          %1857 = vmatpush1.msra.mxu0 %v1838
          %1858 = vmatprep.subr.mxu0 0.0
          %1859 = vmatpush1.msra.mxu0 %v1839
          %1860 = vmatprep.subr.mxu0 0.0
          %1861 = vmatpush1.msra.mxu0 %v1840
          %1862 = vmatprep.subr.mxu0 0.0
          %1863 = vmatpush1.msra.mxu0 %v1841
          %1864 = vmatprep.subr.mxu0 0.0
          %1865 = vmatpush1.msra.mxu0 %v1842
          %1866 = vmatprep.subr.mxu0 0.0
          %1867 = vmatpush1.msra.mxu0 %v1843
          %1868 = vmatprep.subr.mxu0 0.0
          %1869 = vmatpush1.msra.mxu0 %v1844
          %1870 = vmatprep.subr.mxu0 0.0
          %1871 = vmatpush1.msra.mxu0 %v1845
          %1872 = vmatprep.subr.mxu0 0.0
          %1873 = vmatpush1.msra.mxu0 %v1846
          %1874 = vmatprep.subr.mxu0 0.0
          %1875 = vmatpush1.msra.mxu0 %v1847
          %1876 = vmatprep.subr.mxu0 0.0
          %1877 = vmatpush1.msra.mxu0 %v1848
          %1878 = vmatprep.subr.mxu0 0.0
          %1879 = vmatpush1.msra.mxu0 %v1849
          %1880 = vmatprep.subr.mxu0 0.0
          %1881 = vmatpush1.msra.mxu0 %v1850
          %1882 = vmatprep.subr.mxu0 0.0
          %1883 = vmatpush1.msra.mxu0 %v1851
          %1884 = vmatprep.subr.mxu0 0.0
          %1885 = vmatpush1.msra.mxu0 0.0
          %1886 = vmatprep.subr.mxu0 0.0
          %1887 = vmatpush1.msra.mxu0 0.0
          %1888 = vmatprep.subr.mxu0 0.0
          %1889 = vmatpush1.msra.mxu0 0.0
          %1890 = vmatprep.subr.mxu0 0.0
          %1891 = vmatpush1.msra.mxu0 0.0
          %1892 = vmatprep.subr.mxu0 0.0
          %1893 = vmatpush1.msra.mxu0 0.0
          %1894 = vmatprep.subr.mxu0 0.0
          %1895 = vmatpush1.msra.mxu0 0.0
          %1896 = vmatprep.subr.mxu0 0.0
          %1897 = vmatpush1.msra.mxu0 0.0
          %1898 = vmatprep.subr.mxu0 0.0
          %1899 = vmatpush1.msra.mxu0 0.0
          %1900 = vmatprep.subr.mxu0 0.0
          %1901 = vmatpush1.msra.mxu0 0.0
          %1902 = vmatprep.subr.mxu0 0.0
          %1903 = vmatpush1.msra.mxu0 0.0
          %1904 = vmatprep.subr.mxu0 0.0
          %1905 = vmatpush1.msra.mxu0 0.0
          %1906 = vmatprep.subr.mxu0 0.0
          %1907 = vmatpush1.msra.mxu0 0.0
          %1908 = vmatprep.subr.mxu0 0.0
          %1909 = vmatpush1.msra.mxu0 0.0
          %1910 = vmatprep.subr.mxu0 0.0
          %1911 = vmatpush1.msra.mxu0 0.0
          %1912 = vmatprep.subr.mxu0 0.0
          %1913 = vmatpush1.msra.mxu0 0.0
          %1914 = vmatprep.subr.mxu0 0.0
          %1915 = vmatpush1.msra.mxu0 0.0
          %1916 = vmatprep.mubr.f32.mxu0 0.0
          %1917 = vmatmul.mubr.f32.gmra.mrb[0].mxu0 %v1834
          %v1918 = vpop.f32.mrb[0].mxu0
          %v1919 = vadd.f32 0.0, %v1918
          %v1920 = vpop.f32.mrb[0].mxu0
          %1921 = vmatprep.mubr.f32.mxu0 0.0
          %1922 = vmatmul.mubr.f32.gmra.mrb[0].mxu0 %v1835
          %v1923 = vpop.f32.mrb[0].mxu0
          %v1924 = vadd.f32 0.0, %v1923
          %v1925 = vpop.f32.mrb[0].mxu0
          %1926 = vdwg.mxu0
          %v1927 = vld [vmem:[%s2] sm:$0xff]
          %v1928 = vld [vmem:[%s2 + $0x8] sm:$0xff]
          %v1929 = vld [vmem:[%s2 + $0x10] sm:$0xff]
          %v1930 = vld [vmem:[%s2 + $0x18] sm:$0xff]
          %v1931 = vld [vmem:[%s3] sm:$0x1]
          %v1933 = vlaneseq
          %v1934 = vshrl.u32 %v1933, 7
          %v1935 = vsub.s32 0, %v1934
          %v1936 = vrot.slane %v1931, %v1935
          %vm1938 = vcmask 261120
          %v1940 = vsel %vm1938, %v1919, 0
          %v1943 = vsel %vm1938, %v1924, 0
          %1945 = vmatprep.subr.mxu0 0.0
          %1946 = vmatpush1.msra.mxu0 %v1927
          %1947 = vmatprep.subr.mxu0 0.0
          %1948 = vmatpush1.msra.mxu0 %v1928
          %1949 = vmatprep.subr.mxu0 0.0
          %1950 = vmatpush1.msra.mxu0 %v1929
          %1951 = vmatprep.subr.mxu0 0.0
          %1952 = vmatpush1.msra.mxu0 %v1930
          %1953 = vmatprep.subr.mxu0 0.0
          %1954 = vmatpush1.msra.mxu0 0.0
          %1955 = vmatprep.subr.mxu0 0.0
          %1956 = vmatpush1.msra.mxu0 0.0
          %1957 = vmatprep.subr.mxu0 0.0
          %1958 = vmatpush1.msra.mxu0 0.0
          %1959 = vmatprep.subr.mxu0 0.0
          %1960 = vmatpush1.msra.mxu0 0.0
          %1961 = vmatprep.subr.mxu0 0.0
          %1962 = vmatpush1.msra.mxu0 0.0
          %1963 = vmatprep.subr.mxu0 0.0
          %1964 = vmatpush1.msra.mxu0 0.0
          %1965 = vmatprep.subr.mxu0 0.0
          %1966 = vmatpush1.msra.mxu0 0.0
          %1967 = vmatprep.subr.mxu0 0.0
          %1968 = vmatpush1.msra.mxu0 0.0
          %1969 = vmatprep.subr.mxu0 0.0
          %1970 = vmatpush1.msra.mxu0 0.0
          %1971 = vmatprep.subr.mxu0 0.0
          %1972 = vmatpush1.msra.mxu0 0.0
          %1973 = vmatprep.subr.mxu0 0.0
          %1974 = vmatpush1.msra.mxu0 0.0
          %1975 = vmatprep.subr.mxu0 0.0
          %1976 = vmatpush1.msra.mxu0 0.0
          %1977 = vmatprep.subr.mxu0 0.0
          %1978 = vmatpush1.msra.mxu0 0.0
          %1979 = vmatprep.subr.mxu0 0.0
          %1980 = vmatpush1.msra.mxu0 0.0
          %1981 = vmatprep.subr.mxu0 0.0
          %1982 = vmatpush1.msra.mxu0 0.0
          %1983 = vmatprep.subr.mxu0 0.0
          %1984 = vmatpush1.msra.mxu0 0.0
          %1985 = vmatprep.subr.mxu0 0.0
          %1986 = vmatpush1.msra.mxu0 0.0
          %1987 = vmatprep.subr.mxu0 0.0
          %1988 = vmatpush1.msra.mxu0 0.0
          %1989 = vmatprep.subr.mxu0 0.0
          %1990 = vmatpush1.msra.mxu0 0.0
          %1991 = vmatprep.subr.mxu0 0.0
          %1992 = vmatpush1.msra.mxu0 0.0
          %1993 = vmatprep.subr.mxu0 0.0
          %1994 = vmatpush1.msra.mxu0 0.0
          %1995 = vmatprep.subr.mxu0 0.0
          %1996 = vmatpush1.msra.mxu0 0.0
          %1997 = vmatprep.subr.mxu0 0.0
          %1998 = vmatpush1.msra.mxu0 0.0
          %1999 = vmatprep.subr.mxu0 0.0
          %2000 = vmatpush1.msra.mxu0 0.0
          %2001 = vmatprep.subr.mxu0 0.0
          %2002 = vmatpush1.msra.mxu0 0.0
          %2003 = vmatprep.subr.mxu0 0.0
          %2004 = vmatpush1.msra.mxu0 0.0
          %2005 = vmatprep.subr.mxu0 0.0
          %2006 = vmatpush1.msra.mxu0 0.0
          %2007 = vmatprep.subr.mxu0 0.0
          %2008 = vmatpush1.msra.mxu0 0.0
          %2009 = vmatprep.mubr.f32.mxu0 0.0
          %2010 = vmatmul.mubr.f32.gmra.mrb[0].mxu0 %v1940
          %v2011 = vpop.f32.mrb[0].mxu0
          %v2012 = vadd.f32 %v1936, %v2011
          %v2013 = vpop.f32.mrb[0].mxu0
          %2014 = vmatprep.mubr.f32.mxu0 0.0
          %2015 = vmatmul.mubr.f32.gmra.mrb[0].mxu0 %v1943
          %v2016 = vpop.f32.mrb[0].mxu0
          %v2017 = vadd.f32 %v1936, %v2016
          %v2018 = vpop.f32.mrb[0].mxu0
          %2019 = vdwg.mxu0
          %2022 = vrot.lane.b32.xlu0 %v2012, 96
          %v2023 = vpop.permute.xlu0 %2022
          %2024 = vrot.lane.b32.xlu0 %v2017, 96
          %v2025 = vpop.permute.xlu0 %2024
          %v2028 = vmul.f32 %v2012, %v2023
          %v2029 = vmul.f32 %v2012, %v2025
          %v2030 = vmul.f32 %v2017, %v2023
          %v2031 = vmul.f32 %v2017, %v2025
          %v2032 = vld [vmem:[%s4] sm:$0xff]
          %v2033 = vld [vmem:[%s4 + $0x8] sm:$0xff]
          %v2034 = vld [vmem:[%s4 + $0x10] sm:$0xff]
          %v2035 = vld [vmem:[%s4 + $0x18] sm:$0xff]
          %v2037 = vsel %vm1938, %v2028, 0
          %v2040 = vsel %vm1938, %v2029, 0
          %v2043 = vsel %vm1938, %v2030, 0
          %v2046 = vsel %vm1938, %v2031, 0
          %2048 = vmatprep.subr.mxu0 0.0
          %2049 = vmatpush1.msra.mxu0 %v2032
          %2050 = vmatprep.subr.mxu0 0.0
          %2051 = vmatpush1.msra.mxu0 %v2033
          %2052 = vmatprep.subr.mxu0 0.0
          %2053 = vmatpush1.msra.mxu0 %v2034
          %2054 = vmatprep.subr.mxu0 0.0
          %2055 = vmatpush1.msra.mxu0 %v2035
          %2056 = vmatprep.subr.mxu0 0.0
          %2057 = vmatpush1.msra.mxu0 0.0
          %2058 = vmatprep.subr.mxu0 0.0
          %2059 = vmatpush1.msra.mxu0 0.0
          %2060 = vmatprep.subr.mxu0 0.0
          %2061 = vmatpush1.msra.mxu0 0.0
          %2062 = vmatprep.subr.mxu0 0.0
          %2063 = vmatpush1.msra.mxu0 0.0
          %2064 = vmatprep.subr.mxu0 0.0
          %2065 = vmatpush1.msra.mxu0 0.0
          %2066 = vmatprep.subr.mxu0 0.0
          %2067 = vmatpush1.msra.mxu0 0.0
          %2068 = vmatprep.subr.mxu0 0.0
          %2069 = vmatpush1.msra.mxu0 0.0
          %2070 = vmatprep.subr.mxu0 0.0
          %2071 = vmatpush1.msra.mxu0 0.0
          %2072 = vmatprep.subr.mxu0 0.0
          %2073 = vmatpush1.msra.mxu0 0.0
          %2074 = vmatprep.subr.mxu0 0.0
          %2075 = vmatpush1.msra.mxu0 0.0
          %2076 = vmatprep.subr.mxu0 0.0
          %2077 = vmatpush1.msra.mxu0 0.0
          %2078 = vmatprep.subr.mxu0 0.0
          %2079 = vmatpush1.msra.mxu0 0.0
          %2080 = vmatprep.subr.mxu0 0.0
          %2081 = vmatpush1.msra.mxu0 0.0
          %2082 = vmatprep.subr.mxu0 0.0
          %2083 = vmatpush1.msra.mxu0 0.0
          %2084 = vmatprep.subr.mxu0 0.0
          %2085 = vmatpush1.msra.mxu0 0.0
          %2086 = vmatprep.subr.mxu0 0.0
          %2087 = vmatpush1.msra.mxu0 0.0
          %2088 = vmatprep.subr.mxu0 0.0
          %2089 = vmatpush1.msra.mxu0 0.0
          %2090 = vmatprep.subr.mxu0 0.0
          %2091 = vmatpush1.msra.mxu0 0.0
          %2092 = vmatprep.subr.mxu0 0.0
          %2093 = vmatpush1.msra.mxu0 0.0
          %2094 = vmatprep.subr.mxu0 0.0
          %2095 = vmatpush1.msra.mxu0 0.0
          %2096 = vmatprep.subr.mxu0 0.0
          %2097 = vmatpush1.msra.mxu0 0.0
          %2098 = vmatprep.subr.mxu0 0.0
          %2099 = vmatpush1.msra.mxu0 0.0
          %2100 = vmatprep.subr.mxu0 0.0
          %2101 = vmatpush1.msra.mxu0 0.0
          %2102 = vmatprep.subr.mxu0 0.0
          %2103 = vmatpush1.msra.mxu0 0.0
          %2104 = vmatprep.subr.mxu0 0.0
          %2105 = vmatpush1.msra.mxu0 0.0
          %2106 = vmatprep.subr.mxu0 0.0
          %2107 = vmatpush1.msra.mxu0 0.0
          %2108 = vmatprep.subr.mxu0 0.0
          %2109 = vmatpush1.msra.mxu0 0.0
          %2110 = vmatprep.subr.mxu0 0.0
          %2111 = vmatpush1.msra.mxu0 0.0
          %2112 = vmatprep.mubr.f32.mxu0 0.0
          %2113 = vmatmul.mubr.f32.gmra.mrb[0].mxu0 %v2037
          %v2114 = vpop.f32.mrb[0].mxu0
          %v2115 = vadd.f32 0.0, %v2114
          %v2116 = vpop.f32.mrb[0].mxu0
          %2117 = vmatprep.mubr.f32.mxu0 0.0
          %2118 = vmatmul.mubr.f32.gmra.mrb[0].mxu0 %v2040
          %v2119 = vpop.f32.mrb[0].mxu0
          %v2120 = vadd.f32 0.0, %v2119
          %v2121 = vpop.f32.mrb[0].mxu0
          %2122 = vmatprep.mubr.f32.mxu0 0.0
          %2123 = vmatmul.mubr.f32.gmra.mrb[0].mxu0 %v2043
          %v2124 = vpop.f32.mrb[0].mxu0
          %v2125 = vadd.f32 0.0, %v2124
          %v2126 = vpop.f32.mrb[0].mxu0
          %2127 = vmatprep.mubr.f32.mxu0 0.0
          %2128 = vmatmul.mubr.f32.gmra.mrb[0].mxu0 %v2046
          %v2129 = vpop.f32.mrb[0].mxu0
          %v2130 = vadd.f32 0.0, %v2129
          %v2131 = vpop.f32.mrb[0].mxu0
          %2132 = vdwg.mxu0
          %vm2133 = vcmask 31744
          %v2134 = vsel %vm2133, %v2115, -inf
          %v2135 = vsel %vm2133, %v2120, -inf
          %v2136 = vmax.f32 %v2134, %v2135
          %v2137 = vsel %vm2133, %v2125, -inf
          %v2138 = vsel %vm2133, %v2130, -inf
          %v2139 = vmax.f32 %v2137, %v2138
          %v2140 = vsub.f32 %v2115, %v2136
          %v2141 = vsub.f32 %v2120, %v2136
          %v2142 = vsub.f32 %v2125, %v2139
          %v2143 = vsub.f32 %v2130, %v2139
          %v2144 = vmul.f32 %v2140, 1.442695
          %v2145 = vpow.pop %v2144
          %v2146 = vmul.f32 %v2141, 1.442695
          %v2147 = vpow.pop %v2146
          %v2148 = vmul.f32 %v2142, 1.442695
          %v2149 = vpow.pop %v2148
          %v2150 = vmul.f32 %v2143, 1.442695
          %v2151 = vpow.pop %v2150
          %v2152 = vsel %vm2133, %v2145, 0.0
          %v2153 = vsel %vm2133, %v2147, 0.0
          %v2154 = vadd.f32 %v2152, %v2153
          %v2155 = vsel %vm2133, %v2149, 0.0
          %v2156 = vsel %vm2133, %v2151, 0.0
          %v2157 = vadd.f32 %v2155, %v2156
          %v2158 = vrcp.pop %v2154
          %v2159 = vmul.f32 %v2145, %v2158
          %v2160 = vmul.f32 %v2147, %v2158
          %v2161 = vrcp.pop %v2157
          %v2162 = vmul.f32 %v2149, %v2161
          %v2163 = vmul.f32 %v2151, %v2161
          %v2164 = vld [vmem:[%s5] sm:$0xf]
          %v2166 = vsel %vm2133, %v2159, 0
          %v2169 = vsel %vm2133, %v2160, 0
          %v2172 = vsel %vm2133, %v2162, 0
          %v2175 = vsel %vm2133, %v2163, 0
          %vm2177 = vcmask 1043456
          %v2179 = vsel %vm2177, %v2164, 0
          %2181 = vmatprep.subr.mxu0 0.0
          %2182 = vmatpush1.msra.mxu0 %v2179
          %2183 = vmatprep.subr.mxu0 0.0
          %2184 = vmatpush1.msra.mxu0 0.0
          %2185 = vmatprep.subr.mxu0 0.0
          %2186 = vmatpush1.msra.mxu0 0.0
          %2187 = vmatprep.subr.mxu0 0.0
          %2188 = vmatpush1.msra.mxu0 0.0
          %2189 = vmatprep.subr.mxu0 0.0
          %2190 = vmatpush1.msra.mxu0 0.0
          %2191 = vmatprep.subr.mxu0 0.0
          %2192 = vmatpush1.msra.mxu0 0.0
          %2193 = vmatprep.subr.mxu0 0.0
          %2194 = vmatpush1.msra.mxu0 0.0
          %2195 = vmatprep.subr.mxu0 0.0
          %2196 = vmatpush1.msra.mxu0 0.0
          %2197 = vmatprep.subr.mxu0 0.0
          %2198 = vmatpush1.msra.mxu0 0.0
          %2199 = vmatprep.subr.mxu0 0.0
          %2200 = vmatpush1.msra.mxu0 0.0
          %2201 = vmatprep.subr.mxu0 0.0
          %2202 = vmatpush1.msra.mxu0 0.0
          %2203 = vmatprep.subr.mxu0 0.0
          %2204 = vmatpush1.msra.mxu0 0.0
          %2205 = vmatprep.subr.mxu0 0.0
          %2206 = vmatpush1.msra.mxu0 0.0
          %2207 = vmatprep.subr.mxu0 0.0
          %2208 = vmatpush1.msra.mxu0 0.0
          %2209 = vmatprep.subr.mxu0 0.0
          %2210 = vmatpush1.msra.mxu0 0.0
          %2211 = vmatprep.subr.mxu0 0.0
          %2212 = vmatpush1.msra.mxu0 0.0
          %2213 = vmatprep.subr.mxu0 0.0
          %2214 = vmatpush1.msra.mxu0 0.0
          %2215 = vmatprep.subr.mxu0 0.0
          %2216 = vmatpush1.msra.mxu0 0.0
          %2217 = vmatprep.subr.mxu0 0.0
          %2218 = vmatpush1.msra.mxu0 0.0
          %2219 = vmatprep.subr.mxu0 0.0
          %2220 = vmatpush1.msra.mxu0 0.0
          %2221 = vmatprep.subr.mxu0 0.0
          %2222 = vmatpush1.msra.mxu0 0.0
          %2223 = vmatprep.subr.mxu0 0.0
          %2224 = vmatpush1.msra.mxu0 0.0
          %2225 = vmatprep.subr.mxu0 0.0
          %2226 = vmatpush1.msra.mxu0 0.0
          %2227 = vmatprep.subr.mxu0 0.0
          %2228 = vmatpush1.msra.mxu0 0.0
          %2229 = vmatprep.subr.mxu0 0.0
          %2230 = vmatpush1.msra.mxu0 0.0
          %2231 = vmatprep.subr.mxu0 0.0
          %2232 = vmatpush1.msra.mxu0 0.0
          %2233 = vmatprep.subr.mxu0 0.0
          %2234 = vmatpush1.msra.mxu0 0.0
          %2235 = vmatprep.subr.mxu0 0.0
          %2236 = vmatpush1.msra.mxu0 0.0
          %2237 = vmatprep.subr.mxu0 0.0
          %2238 = vmatpush1.msra.mxu0 0.0
          %2239 = vmatprep.subr.mxu0 0.0
          %2240 = vmatpush1.msra.mxu0 0.0
          %2241 = vmatprep.subr.mxu0 0.0
          %2242 = vmatpush1.msra.mxu0 0.0
          %2243 = vmatprep.subr.mxu0 0.0
          %2244 = vmatpush1.msra.mxu0 0.0
          %2245 = vmatprep.mubr.f32.mxu0 0.0
          %2246 = vmatmul.mubr.f32.gmra.mrb[0].mxu0 %v2166
          %v2247 = vpop.f32.mrb[0].mxu0
          %v2248 = vadd.f32 0.0, %v2247
          %v2249 = vpop.f32.mrb[0].mxu0
          %2250 = vmatprep.mubr.f32.mxu0 0.0
          %2251 = vmatmul.mubr.f32.gmra.mrb[0].mxu0 %v2169
          %v2252 = vpop.f32.mrb[0].mxu0
          %v2253 = vadd.f32 0.0, %v2252
          %v2254 = vpop.f32.mrb[0].mxu0
          %2255 = vmatprep.mubr.f32.mxu0 0.0
          %2256 = vmatmul.mubr.f32.gmra.mrb[0].mxu0 %v2172
          %v2257 = vpop.f32.mrb[0].mxu0
          %v2258 = vadd.f32 0.0, %v2257
          %v2259 = vpop.f32.mrb[0].mxu0
          %2260 = vmatprep.mubr.f32.mxu0 0.0
          %2261 = vmatmul.mubr.f32.gmra.mrb[0].mxu0 %v2175
          %v2262 = vpop.f32.mrb[0].mxu0
          %v2263 = vadd.f32 0.0, %v2262
          %v2264 = vpop.f32.mrb[0].mxu0
          %2265 = vdwg.mxu0
          %2266 = vrot.lane.b32.xlu0 %v2012, 64
          %v2267 = vpop.permute.xlu0 %2266
          %2268 = vrot.lane.b32.xlu0 %v2017, 64
          %v2269 = vpop.permute.xlu0 %2268
          %v2272 = vmul.f32 %v2248, %v2267
          %v2273 = vmul.f32 %v2253, %v2269
          %v2274 = vmul.f32 %v2258, %v2267
          %v2275 = vmul.f32 %v2263, %v2269
          %v2276 = vsel %vm1938, %v2272, 0.0
          %v2277 = vsel %vm1938, %v2273, 0.0
          %v2278 = vadd.f32 %v2276, %v2277
          %v2279 = vsel %vm1938, %v2274, 0.0
          %v2280 = vsel %vm1938, %v2275, 0.0
          %v2281 = vadd.f32 %v2279, %v2280
          %v2282 = vld [vmem:[%s6] sm:$0xff]
          %v2283 = vld [vmem:[%s6 + $0x8] sm:$0xff]
          %v2284 = vld [vmem:[%s6 + $0x10] sm:$0xff]
          %v2285 = vld [vmem:[%s6 + $0x18] sm:$0xff]
          %v2286 = vld [vmem:[%s7] sm:$0x1]
          %v2288 = vlaneseq
          %v2289 = vshrl.u32 %v2288, 7
          %v2290 = vsub.s32 0, %v2289
          %v2291 = vrot.slane %v2286, %v2290
          %v2294 = vsel %vm1938, %v2278, 0
          %v2297 = vsel %vm1938, %v2281, 0
          %2299 = vmatprep.subr.mxu0 0.0
          %2300 = vmatpush1.msra.mxu0 %v2282
          %2301 = vmatprep.subr.mxu0 0.0
          %2302 = vmatpush1.msra.mxu0 %v2283
          %2303 = vmatprep.subr.mxu0 0.0
          %2304 = vmatpush1.msra.mxu0 %v2284
          %2305 = vmatprep.subr.mxu0 0.0
          %2306 = vmatpush1.msra.mxu0 %v2285
          %2307 = vmatprep.subr.mxu0 0.0
          %2308 = vmatpush1.msra.mxu0 0.0
          %2309 = vmatprep.subr.mxu0 0.0
          %2310 = vmatpush1.msra.mxu0 0.0
          %2311 = vmatprep.subr.mxu0 0.0
          %2312 = vmatpush1.msra.mxu0 0.0
          %2313 = vmatprep.subr.mxu0 0.0
          %2314 = vmatpush1.msra.mxu0 0.0
          %2315 = vmatprep.subr.mxu0 0.0
          %2316 = vmatpush1.msra.mxu0 0.0
          %2317 = vmatprep.subr.mxu0 0.0
          %2318 = vmatpush1.msra.mxu0 0.0
          %2319 = vmatprep.subr.mxu0 0.0
          %2320 = vmatpush1.msra.mxu0 0.0
          %2321 = vmatprep.subr.mxu0 0.0
          %2322 = vmatpush1.msra.mxu0 0.0
          %2323 = vmatprep.subr.mxu0 0.0
          %2324 = vmatpush1.msra.mxu0 0.0
          %2325 = vmatprep.subr.mxu0 0.0
          %2326 = vmatpush1.msra.mxu0 0.0
          %2327 = vmatprep.subr.mxu0 0.0
          %2328 = vmatpush1.msra.mxu0 0.0
          %2329 = vmatprep.subr.mxu0 0.0
          %2330 = vmatpush1.msra.mxu0 0.0
          %2331 = vmatprep.subr.mxu0 0.0
          %2332 = vmatpush1.msra.mxu0 0.0
          %2333 = vmatprep.subr.mxu0 0.0
          %2334 = vmatpush1.msra.mxu0 0.0
          %2335 = vmatprep.subr.mxu0 0.0
          %2336 = vmatpush1.msra.mxu0 0.0
          %2337 = vmatprep.subr.mxu0 0.0
          %2338 = vmatpush1.msra.mxu0 0.0
          %2339 = vmatprep.subr.mxu0 0.0
          %2340 = vmatpush1.msra.mxu0 0.0
          %2341 = vmatprep.subr.mxu0 0.0
          %2342 = vmatpush1.msra.mxu0 0.0
          %2343 = vmatprep.subr.mxu0 0.0
          %2344 = vmatpush1.msra.mxu0 0.0
          %2345 = vmatprep.subr.mxu0 0.0
          %2346 = vmatpush1.msra.mxu0 0.0
          %2347 = vmatprep.subr.mxu0 0.0
          %2348 = vmatpush1.msra.mxu0 0.0
          %2349 = vmatprep.subr.mxu0 0.0
          %2350 = vmatpush1.msra.mxu0 0.0
          %2351 = vmatprep.subr.mxu0 0.0
          %2352 = vmatpush1.msra.mxu0 0.0
          %2353 = vmatprep.subr.mxu0 0.0
          %2354 = vmatpush1.msra.mxu0 0.0
          %2355 = vmatprep.subr.mxu0 0.0
          %2356 = vmatpush1.msra.mxu0 0.0
          %2357 = vmatprep.subr.mxu0 0.0
          %2358 = vmatpush1.msra.mxu0 0.0
          %2359 = vmatprep.subr.mxu0 0.0
          %2360 = vmatpush1.msra.mxu0 0.0
          %2361 = vmatprep.subr.mxu0 0.0
          %2362 = vmatpush1.msra.mxu0 0.0
          %2363 = vmatprep.mubr.f32.mxu0 0.0
          %2364 = vmatmul.mubr.f32.gmra.mrb[0].mxu0 %v2294
          %v2365 = vpop.f32.mrb[0].mxu0
          %v2366 = vadd.f32 %v2291, %v2365
          %v2367 = vpop.f32.mrb[0].mxu0
          %2368 = vmatprep.mubr.f32.mxu0 0.0
          %2369 = vmatmul.mubr.f32.gmra.mrb[0].mxu0 %v2297
          %v2370 = vpop.f32.mrb[0].mxu0
          %v2371 = vadd.f32 %v2291, %v2370
          %v2372 = vpop.f32.mrb[0].mxu0
          %2373 = vdwg.mxu0
          %v2374 = vadd.f32 %v1919, %v2366
          %v2375 = vadd.f32 %v1924, %v2371
          %v2376 = vsel %vm1938, %v2374, 0.0
          %2377 = vadd.xlane.f32.xlu0 %v2376
          %v2378 = vpop.xlane.xlu0 %2377
          %v2379 = vsel %vm1938, %v2375, 0.0
          %2380 = vadd.xlane.f32.xlu0 %v2379
          %v2381 = vpop.xlane.xlu0 %2380
          %v2382 = vrcp.pop 32.0
          %v2383 = vmul.f32 %v2378, %v2382
          %v2384 = vmul.f32 %v2381, %v2382
          %v2385 = vsub.f32 %v2374, %v2383
          %v2386 = vsub.f32 %v2375, %v2384
          %v2387 = vmul.f32 %v2385, %v2385
          %v2388 = vmul.f32 %v2386, %v2386
          %v2389 = vsel %vm1938, %v2387, 0.0
          %2390 = vadd.xlane.f32.xlu0 %v2389
          %v2391 = vpop.xlane.xlu0 %2390
          %v2392 = vsel %vm1938, %v2388, 0.0
          %2393 = vadd.xlane.f32.xlu0 %v2392
          %v2394 = vpop.xlane.xlu0 %2393
          %v2395 = vmul.f32 %v2391, %v2382
          %v2396 = vmul.f32 %v2394, %v2382
          %v2397 = vadd.f32 %v2395, 1e-05
          %v2398 = vadd.f32 %v2396, 1e-05
          %v2399 = vrsqrt.pop %v2397
          %v2400 = vrsqrt.pop %v2398
          %v2401 = vmul.f32 %v2385, %v2399
          %v2402 = vmul.f32 %v2386, %v2400
          %v2403 = vld [vmem:[%s8] sm:$0x1]
          %v2405 = vlaneseq
          %v2406 = vshrl.u32 %v2405, 7
          %v2407 = vsub.s32 0, %v2406
          %v2408 = vrot.slane %v2403, %v2407
          %v2410 = vmul.f32 %v2401, %v2408
          %v2411 = vmul.f32 %v2402, %v2408
          %v2412 = vld [vmem:[%s9] sm:$0x1]
          %v2414 = vlaneseq
          %v2415 = vshrl.u32 %v2414, 7
          %v2416 = vsub.s32 0, %v2415
          %v2417 = vrot.slane %v2412, %v2416
          %v2419 = vadd.f32 %v2410, %v2417
          %v2420 = vadd.f32 %v2411, %v2417
          %2421 = vst.msk [vmem:[#allocation2] sm:$0xff] %vm1938, %v2419
          %2422 = vst.msk [vmem:[#allocation2 + $0x8] sm:$0xff] %vm1938, %v2420
          %2423 = vst.msk [vmem:[#allocation3] sm:$0xff] %vm1938, 0.0
          %2424 = vst.msk [vmem:[#allocation3 + $0x8] sm:$0xff] %vm1938, 0.0
        $region127: #{transformer_mlp_forward.1} parent=118 // pred_fallthru
          _
        %v2425 = vld [vmem:[#allocation2] sm:$0xff]
        %v2426 = vld [vmem:[#allocation2 + $0x8] sm:$0xff]
        %v2427 = vpack.c.bf16 %v2426, %v2425
        %v2428 = vld [vmem:[%s623] sm:$0xff]
        %v2429 = vld [vmem:[%s623 + $0x8] sm:$0xff]
        %v2430 = vld [vmem:[%s623 + $0x10] sm:$0xff]
        %v2431 = vld [vmem:[%s623 + $0x18] sm:$0xff]
        %v2432 = vld [vmem:[%s623 + $0x20] sm:$0xff]
        %v2433 = vld [vmem:[%s623 + $0x28] sm:$0xff]
        %v2434 = vld [vmem:[%s623 + $0x30] sm:$0xff]
        %v2435 = vld [vmem:[%s623 + $0x38] sm:$0xff]
        %v2436 = vld [vmem:[%s686] sm:$0xf]
        %v2438 = vlaneseq
        %v2439 = vshrl.u32 %v2438, 7
        %v2440 = vsub.s32 0, %v2439
        %v2441 = vrot.slane %v2436, %v2440
        %v2442 = vlaneseq
        %v2443 = vshrl.u32 %v2442, 7
        %v2444 = vsub.s32 1, %v2443
        %v2445 = vrot.slane %v2436, %v2444
        %v2446 = vlaneseq
        %v2447 = vshrl.u32 %v2446, 7
        %v2448 = vsub.s32 2, %v2447
        %v2449 = vrot.slane %v2436, %v2448
        %v2450 = vlaneseq
        %v2451 = vshrl.u32 %v2450, 7
        %v2452 = vsub.s32 3, %v2451
        %v2453 = vrot.slane %v2436, %v2452
        %v2466 = vunpack.c.l.b16 %v2428
        %v2467 = vunpack.c.h.b16 %v2428
        %v2468 = vunpack.c.l.b16 %v2429
        %v2469 = vunpack.c.h.b16 %v2429
        %v2470 = vunpack.c.l.b16 %v2430
        %v2471 = vunpack.c.h.b16 %v2430
        %v2472 = vunpack.c.l.b16 %v2431
        %v2473 = vunpack.c.h.b16 %v2431
        %v2474 = vunpack.c.l.b16 %v2432
        %v2475 = vunpack.c.h.b16 %v2432
        %v2476 = vunpack.c.l.b16 %v2433
        %v2477 = vunpack.c.h.b16 %v2433
        %v2478 = vunpack.c.l.b16 %v2434
        %v2479 = vunpack.c.h.b16 %v2434
        %v2480 = vunpack.c.l.b16 %v2435
        %v2481 = vunpack.c.h.b16 %v2435
        %v2482 = vpack.c.b16 %v2470, %v2466
        %v2483 = vpack.c.b16 %v2471, %v2467
        %v2484 = vpack.c.b16 %v2472, %v2468
        %v2485 = vpack.c.b16 %v2473, %v2469
        %v2486 = vpack.c.b16 %v2478, %v2474
        %v2487 = vpack.c.b16 %v2479, %v2475
        %v2488 = vpack.c.b16 %v2480, %v2476
        %v2489 = vpack.c.b16 %v2481, %v2477
        %vm2498 = vcmask 261120
        %v2500 = vsel %vm2498, %v2427, 0
        %2502 = vmatprep.subr.bf16.mxu0 %v2483
        %2503 = vmatpush1.bf16.msra.mxu0 %v2482
        %2504 = vmatprep.subr.bf16.mxu0 %v2487
        %2505 = vmatpush1.bf16.msra.mxu0 %v2486
        %2506 = vmatprep.subr.bf16.mxu0 0
        %2507 = vmatpush1.bf16.msra.mxu0 0
        %2508 = vmatprep.subr.bf16.mxu0 0
        %2509 = vmatpush1.bf16.msra.mxu0 0
        %2510 = vmatprep.subr.bf16.mxu0 0
        %2511 = vmatpush1.bf16.msra.mxu0 0
        %2512 = vmatprep.subr.bf16.mxu0 0
        %2513 = vmatpush1.bf16.msra.mxu0 0
        %2514 = vmatprep.subr.bf16.mxu0 0
        %2515 = vmatpush1.bf16.msra.mxu0 0
        %2516 = vmatprep.subr.bf16.mxu0 0
        %2517 = vmatpush1.bf16.msra.mxu0 0
        %2518 = vmatprep.subr.bf16.mxu0 0
        %2519 = vmatpush1.bf16.msra.mxu0 0
        %2520 = vmatprep.subr.bf16.mxu0 0
        %2521 = vmatpush1.bf16.msra.mxu0 0
        %2522 = vmatprep.subr.bf16.mxu0 0
        %2523 = vmatpush1.bf16.msra.mxu0 0
        %2524 = vmatprep.subr.bf16.mxu0 0
        %2525 = vmatpush1.bf16.msra.mxu0 0
        %2526 = vmatprep.subr.bf16.mxu0 0
        %2527 = vmatpush1.bf16.msra.mxu0 0
        %2528 = vmatprep.subr.bf16.mxu0 0
        %2529 = vmatpush1.bf16.msra.mxu0 0
        %2530 = vmatprep.subr.bf16.mxu0 0
        %2531 = vmatpush1.bf16.msra.mxu0 0
        %2532 = vmatprep.subr.bf16.mxu0 0
        %2533 = vmatpush1.bf16.msra.mxu0 0
        %2534 = vmatprep.mubr.bf16.mxu0 0
        %2535 = vmatmul.mubr.bf16.gmra.mrb[0].mxu0 %v2500
        %v2536 = vpop.f32.mrb[0].mxu0
        %v2537 = vadd.f32 %v2441, %v2536
        %v2538 = vpop.f32.mrb[0].mxu0
        %v2539 = vadd.f32 %v2445, %v2538
        %v2540 = vpop.f32.mrb[0].mxu0
        %v2541 = vadd.f32 %v2441, %v2540
        %v2542 = vpop.f32.mrb[0].mxu0
        %v2543 = vadd.f32 %v2445, %v2542
        %2544 = vdwg.mxu0
        %2545 = vmatprep.subr.bf16.mxu0 %v2485
        %2546 = vmatpush1.bf16.msra.mxu0 %v2484
        %2547 = vmatprep.subr.bf16.mxu0 %v2489
        %2548 = vmatpush1.bf16.msra.mxu0 %v2488
        %2549 = vmatprep.subr.bf16.mxu0 0
        %2550 = vmatpush1.bf16.msra.mxu0 0
        %2551 = vmatprep.subr.bf16.mxu0 0
        %2552 = vmatpush1.bf16.msra.mxu0 0
        %2553 = vmatprep.subr.bf16.mxu0 0
        %2554 = vmatpush1.bf16.msra.mxu0 0
        %2555 = vmatprep.subr.bf16.mxu0 0
        %2556 = vmatpush1.bf16.msra.mxu0 0
        %2557 = vmatprep.subr.bf16.mxu0 0
        %2558 = vmatpush1.bf16.msra.mxu0 0
        %2559 = vmatprep.subr.bf16.mxu0 0
        %2560 = vmatpush1.bf16.msra.mxu0 0
        %2561 = vmatprep.subr.bf16.mxu0 0
        %2562 = vmatpush1.bf16.msra.mxu0 0
        %2563 = vmatprep.subr.bf16.mxu0 0
        %2564 = vmatpush1.bf16.msra.mxu0 0
        %2565 = vmatprep.subr.bf16.mxu0 0
        %2566 = vmatpush1.bf16.msra.mxu0 0
        %2567 = vmatprep.subr.bf16.mxu0 0
        %2568 = vmatpush1.bf16.msra.mxu0 0
        %2569 = vmatprep.subr.bf16.mxu0 0
        %2570 = vmatpush1.bf16.msra.mxu0 0
        %2571 = vmatprep.subr.bf16.mxu0 0
        %2572 = vmatpush1.bf16.msra.mxu0 0
        %2573 = vmatprep.subr.bf16.mxu0 0
        %2574 = vmatpush1.bf16.msra.mxu0 0
        %2575 = vmatprep.subr.bf16.mxu0 0
        %2576 = vmatpush1.bf16.msra.mxu0 0
        %2577 = vmatprep.mubr.bf16.mxu0 0
        %2578 = vmatmul.mubr.bf16.gmra.mrb[0].mxu0 %v2500
        %v2579 = vpop.f32.mrb[0].mxu0
        %v2580 = vadd.f32 %v2449, %v2579
        %v2581 = vpop.f32.mrb[0].mxu0
        %v2582 = vadd.f32 %v2453, %v2581
        %v2583 = vpop.f32.mrb[0].mxu0
        %v2584 = vadd.f32 %v2449, %v2583
        %v2585 = vpop.f32.mrb[0].mxu0
        %v2586 = vadd.f32 %v2453, %v2585
        %2587 = vdwg.mxu0
        %v2588 = vmax.f32 %v2537, 0.0
        %v2589 = vmax.f32 %v2539, 0.0
        %v2590 = vmax.f32 %v2580, 0.0
        %v2591 = vmax.f32 %v2582, 0.0
        %v2592 = vmax.f32 %v2541, 0.0
        %v2593 = vmax.f32 %v2543, 0.0
        %v2594 = vmax.f32 %v2584, 0.0
        %v2595 = vmax.f32 %v2586, 0.0
        %v2596 = vld [vmem:[#allocation3] sm:$0xff]
        %v2597 = vld [vmem:[#allocation3 + $0x8] sm:$0xff]
        %v2598 = vpack.c.bf16 %v2592, %v2588
        %v2599 = vpack.c.bf16 %v2593, %v2589
        %v2600 = vpack.c.bf16 %v2594, %v2590
        %v2601 = vpack.c.bf16 %v2595, %v2591
        %v2602 = vld [vmem:[%s692] sm:$0xf]
        %v2603 = vld [vmem:[%s692 + $0x4] sm:$0xf]
        %v2604 = vld [vmem:[%s692 + $0x8] sm:$0xf]
        %v2605 = vld [vmem:[%s692 + $0xc] sm:$0xf]
        %v2606 = vld [vmem:[%s692 + $0x10] sm:$0xf]
        %v2607 = vld [vmem:[%s692 + $0x14] sm:$0xf]
        %v2608 = vld [vmem:[%s692 + $0x18] sm:$0xf]
        %v2609 = vld [vmem:[%s692 + $0x1c] sm:$0xf]
        %v2610 = vld [vmem:[%s692 + $0x20] sm:$0xf]
        %v2611 = vld [vmem:[%s692 + $0x24] sm:$0xf]
        %v2612 = vld [vmem:[%s692 + $0x28] sm:$0xf]
        %v2613 = vld [vmem:[%s692 + $0x2c] sm:$0xf]
        %v2614 = vld [vmem:[%s692 + $0x30] sm:$0xf]
        %v2615 = vld [vmem:[%s692 + $0x34] sm:$0xf]
        %v2616 = vld [vmem:[%s692 + $0x38] sm:$0xf]
        %v2617 = vld [vmem:[%s692 + $0x3c] sm:$0xf]
        %v2618 = vld [vmem:[%s692 + $0x40] sm:$0xf]
        %v2619 = vld [vmem:[%s692 + $0x44] sm:$0xf]
        %v2620 = vld [vmem:[%s692 + $0x48] sm:$0xf]
        %v2621 = vld [vmem:[%s692 + $0x4c] sm:$0xf]
        %v2622 = vld [vmem:[%s692 + $0x50] sm:$0xf]
        %v2623 = vld [vmem:[%s692 + $0x54] sm:$0xf]
        %v2624 = vld [vmem:[%s692 + $0x58] sm:$0xf]
        %v2625 = vld [vmem:[%s692 + $0x5c] sm:$0xf]
        %v2626 = vld [vmem:[%s692 + $0x60] sm:$0xf]
        %v2627 = vld [vmem:[%s692 + $0x64] sm:$0xf]
        %v2628 = vld [vmem:[%s692 + $0x68] sm:$0xf]
        %v2629 = vld [vmem:[%s692 + $0x6c] sm:$0xf]
        %v2630 = vld [vmem:[%s692 + $0x70] sm:$0xf]
        %v2631 = vld [vmem:[%s692 + $0x74] sm:$0xf]
        %v2632 = vld [vmem:[%s692 + $0x78] sm:$0xf]
        %v2633 = vld [vmem:[%s692 + $0x7c] sm:$0xf]
        %v2634 = vld [vmem:[%s692 + $0x80] sm:$0xf]
        %v2635 = vld [vmem:[%s692 + $0x84] sm:$0xf]
        %v2636 = vld [vmem:[%s692 + $0x88] sm:$0xf]
        %v2637 = vld [vmem:[%s692 + $0x8c] sm:$0xf]
        %v2638 = vld [vmem:[%s692 + $0x90] sm:$0xf]
        %v2639 = vld [vmem:[%s692 + $0x94] sm:$0xf]
        %v2640 = vld [vmem:[%s692 + $0x98] sm:$0xf]
        %v2641 = vld [vmem:[%s692 + $0x9c] sm:$0xf]
        %v2642 = vld [vmem:[%s692 + $0xa0] sm:$0xf]
        %v2643 = vld [vmem:[%s692 + $0xa4] sm:$0xf]
        %v2644 = vld [vmem:[%s692 + $0xa8] sm:$0xf]
        %v2645 = vld [vmem:[%s692 + $0xac] sm:$0xf]
        %v2646 = vld [vmem:[%s692 + $0xb0] sm:$0xf]
        %v2647 = vld [vmem:[%s692 + $0xb4] sm:$0xf]
        %v2648 = vld [vmem:[%s692 + $0xb8] sm:$0xf]
        %v2649 = vld [vmem:[%s692 + $0xbc] sm:$0xf]
        %v2650 = vld [vmem:[%s692 + $0xc0] sm:$0xf]
        %v2651 = vld [vmem:[%s692 + $0xc4] sm:$0xf]
        %v2652 = vld [vmem:[%s692 + $0xc8] sm:$0xf]
        %v2653 = vld [vmem:[%s692 + $0xcc] sm:$0xf]
        %v2654 = vld [vmem:[%s692 + $0xd0] sm:$0xf]
        %v2655 = vld [vmem:[%s692 + $0xd4] sm:$0xf]
        %v2656 = vld [vmem:[%s692 + $0xd8] sm:$0xf]
        %v2657 = vld [vmem:[%s692 + $0xdc] sm:$0xf]
        %v2658 = vld [vmem:[%s692 + $0xe0] sm:$0xf]
        %v2659 = vld [vmem:[%s692 + $0xe4] sm:$0xf]
        %v2660 = vld [vmem:[%s692 + $0xe8] sm:$0xf]
        %v2661 = vld [vmem:[%s692 + $0xec] sm:$0xf]
        %v2662 = vld [vmem:[%s692 + $0xf0] sm:$0xf]
        %v2663 = vld [vmem:[%s692 + $0xf4] sm:$0xf]
        %v2664 = vld [vmem:[%s692 + $0xf8] sm:$0xf]
        %v2665 = vld [vmem:[%s692 + $0xfc] sm:$0xf]
        %v2730 = vunpack.c.l.b16 %v2602
        %v2731 = vunpack.c.l.b16 %v2603
        %v2732 = vunpack.c.l.b16 %v2604
        %v2733 = vunpack.c.l.b16 %v2605
        %v2734 = vunpack.c.l.b16 %v2606
        %v2735 = vunpack.c.l.b16 %v2607
        %v2736 = vunpack.c.l.b16 %v2608
        %v2737 = vunpack.c.l.b16 %v2609
        %v2738 = vunpack.c.l.b16 %v2610
        %v2739 = vunpack.c.l.b16 %v2611
        %v2740 = vunpack.c.l.b16 %v2612
        %v2741 = vunpack.c.l.b16 %v2613
        %v2742 = vunpack.c.l.b16 %v2614
        %v2743 = vunpack.c.l.b16 %v2615
        %v2744 = vunpack.c.l.b16 %v2616
        %v2745 = vunpack.c.l.b16 %v2617
        %v2746 = vunpack.c.l.b16 %v2618
        %v2747 = vunpack.c.l.b16 %v2619
        %v2748 = vunpack.c.l.b16 %v2620
        %v2749 = vunpack.c.l.b16 %v2621
        %v2750 = vunpack.c.l.b16 %v2622
        %v2751 = vunpack.c.l.b16 %v2623
        %v2752 = vunpack.c.l.b16 %v2624
        %v2753 = vunpack.c.l.b16 %v2625
        %v2754 = vunpack.c.l.b16 %v2626
        %v2755 = vunpack.c.l.b16 %v2627
        %v2756 = vunpack.c.l.b16 %v2628
        %v2757 = vunpack.c.l.b16 %v2629
        %v2758 = vunpack.c.l.b16 %v2630
        %v2759 = vunpack.c.l.b16 %v2631
        %v2760 = vunpack.c.l.b16 %v2632
        %v2761 = vunpack.c.l.b16 %v2633
        %v2762 = vunpack.c.l.b16 %v2634
        %v2763 = vunpack.c.l.b16 %v2635
        %v2764 = vunpack.c.l.b16 %v2636
        %v2765 = vunpack.c.l.b16 %v2637
        %v2766 = vunpack.c.l.b16 %v2638
        %v2767 = vunpack.c.l.b16 %v2639
        %v2768 = vunpack.c.l.b16 %v2640
        %v2769 = vunpack.c.l.b16 %v2641
        %v2770 = vunpack.c.l.b16 %v2642
        %v2771 = vunpack.c.l.b16 %v2643
        %v2772 = vunpack.c.l.b16 %v2644
        %v2773 = vunpack.c.l.b16 %v2645
        %v2774 = vunpack.c.l.b16 %v2646
        %v2775 = vunpack.c.l.b16 %v2647
        %v2776 = vunpack.c.l.b16 %v2648
        %v2777 = vunpack.c.l.b16 %v2649
        %v2778 = vunpack.c.l.b16 %v2650
        %v2779 = vunpack.c.l.b16 %v2651
        %v2780 = vunpack.c.l.b16 %v2652
        %v2781 = vunpack.c.l.b16 %v2653
        %v2782 = vunpack.c.l.b16 %v2654
        %v2783 = vunpack.c.l.b16 %v2655
        %v2784 = vunpack.c.l.b16 %v2656
        %v2785 = vunpack.c.l.b16 %v2657
        %v2786 = vunpack.c.l.b16 %v2658
        %v2787 = vunpack.c.l.b16 %v2659
        %v2788 = vunpack.c.l.b16 %v2660
        %v2789 = vunpack.c.l.b16 %v2661
        %v2790 = vunpack.c.l.b16 %v2662
        %v2791 = vunpack.c.l.b16 %v2663
        %v2792 = vunpack.c.l.b16 %v2664
        %v2793 = vunpack.c.l.b16 %v2665
        %v2794 = vpack.c.b16 %v2731, %v2730
        %v2795 = vpack.c.b16 %v2733, %v2732
        %v2796 = vpack.c.b16 %v2735, %v2734
        %v2797 = vpack.c.b16 %v2737, %v2736
        %v2798 = vpack.c.b16 %v2739, %v2738
        %v2799 = vpack.c.b16 %v2741, %v2740
        %v2800 = vpack.c.b16 %v2743, %v2742
        %v2801 = vpack.c.b16 %v2745, %v2744
        %v2802 = vpack.c.b16 %v2747, %v2746
        %v2803 = vpack.c.b16 %v2749, %v2748
        %v2804 = vpack.c.b16 %v2751, %v2750
        %v2805 = vpack.c.b16 %v2753, %v2752
        %v2806 = vpack.c.b16 %v2755, %v2754
        %v2807 = vpack.c.b16 %v2757, %v2756
        %v2808 = vpack.c.b16 %v2759, %v2758
        %v2809 = vpack.c.b16 %v2761, %v2760
        %v2810 = vpack.c.b16 %v2763, %v2762
        %v2811 = vpack.c.b16 %v2765, %v2764
        %v2812 = vpack.c.b16 %v2767, %v2766
        %v2813 = vpack.c.b16 %v2769, %v2768
        %v2814 = vpack.c.b16 %v2771, %v2770
        %v2815 = vpack.c.b16 %v2773, %v2772
        %v2816 = vpack.c.b16 %v2775, %v2774
        %v2817 = vpack.c.b16 %v2777, %v2776
        %v2818 = vpack.c.b16 %v2779, %v2778
        %v2819 = vpack.c.b16 %v2781, %v2780
        %v2820 = vpack.c.b16 %v2783, %v2782
        %v2821 = vpack.c.b16 %v2785, %v2784
        %v2822 = vpack.c.b16 %v2787, %v2786
        %v2823 = vpack.c.b16 %v2789, %v2788
        %v2824 = vpack.c.b16 %v2791, %v2790
        %v2825 = vpack.c.b16 %v2793, %v2792
        %2858 = vmatprep.subr.bf16.mxu0 0
        %2859 = vmatpush1.bf16.msra.mxu0 %v2794
        %2860 = vmatprep.subr.bf16.mxu0 0
        %2861 = vmatpush1.bf16.msra.mxu0 %v2795
        %2862 = vmatprep.subr.bf16.mxu0 0
        %2863 = vmatpush1.bf16.msra.mxu0 %v2796
        %2864 = vmatprep.subr.bf16.mxu0 0
        %2865 = vmatpush1.bf16.msra.mxu0 %v2797
        %2866 = vmatprep.subr.bf16.mxu0 0
        %2867 = vmatpush1.bf16.msra.mxu0 %v2798
        %2868 = vmatprep.subr.bf16.mxu0 0
        %2869 = vmatpush1.bf16.msra.mxu0 %v2799
        %2870 = vmatprep.subr.bf16.mxu0 0
        %2871 = vmatpush1.bf16.msra.mxu0 %v2800
        %2872 = vmatprep.subr.bf16.mxu0 0
        %2873 = vmatpush1.bf16.msra.mxu0 %v2801
        %2874 = vmatprep.subr.bf16.mxu0 0
        %2875 = vmatpush1.bf16.msra.mxu0 %v2802
        %2876 = vmatprep.subr.bf16.mxu0 0
        %2877 = vmatpush1.bf16.msra.mxu0 %v2803
        %2878 = vmatprep.subr.bf16.mxu0 0
        %2879 = vmatpush1.bf16.msra.mxu0 %v2804
        %2880 = vmatprep.subr.bf16.mxu0 0
        %2881 = vmatpush1.bf16.msra.mxu0 %v2805
        %2882 = vmatprep.subr.bf16.mxu0 0
        %2883 = vmatpush1.bf16.msra.mxu0 %v2806
        %2884 = vmatprep.subr.bf16.mxu0 0
        %2885 = vmatpush1.bf16.msra.mxu0 %v2807
        %2886 = vmatprep.subr.bf16.mxu0 0
        %2887 = vmatpush1.bf16.msra.mxu0 %v2808
        %2888 = vmatprep.subr.bf16.mxu0 0
        %2889 = vmatpush1.bf16.msra.mxu0 %v2809
        %2890 = vmatprep.mubr.bf16.mxu0 %v2599
        %2891 = vmatmul.mubr.bf16.gmra.mrb[0].mxu0 %v2598
        %v2892 = vpop.f32.mrb[0].mxu0
        %v2893 = vadd.f32 0.0, %v2892
        %v2894 = vpop.f32.mrb[0].mxu0
        %v2895 = vpop.f32.mrb[0].mxu0
        %v2896 = vadd.f32 0.0, %v2895
        %v2897 = vpop.f32.mrb[0].mxu0
        %2898 = vdwg.mxu0
        %2899 = vmatprep.subr.bf16.mxu0 0
        %2900 = vmatpush1.bf16.msra.mxu0 %v2810
        %2901 = vmatprep.subr.bf16.mxu0 0
        %2902 = vmatpush1.bf16.msra.mxu0 %v2811
        %2903 = vmatprep.subr.bf16.mxu0 0
        %2904 = vmatpush1.bf16.msra.mxu0 %v2812
        %2905 = vmatprep.subr.bf16.mxu0 0
        %2906 = vmatpush1.bf16.msra.mxu0 %v2813
        %2907 = vmatprep.subr.bf16.mxu0 0
        %2908 = vmatpush1.bf16.msra.mxu0 %v2814
        %2909 = vmatprep.subr.bf16.mxu0 0
        %2910 = vmatpush1.bf16.msra.mxu0 %v2815
        %2911 = vmatprep.subr.bf16.mxu0 0
        %2912 = vmatpush1.bf16.msra.mxu0 %v2816
        %2913 = vmatprep.subr.bf16.mxu0 0
        %2914 = vmatpush1.bf16.msra.mxu0 %v2817
        %2915 = vmatprep.subr.bf16.mxu0 0
        %2916 = vmatpush1.bf16.msra.mxu0 %v2818
        %2917 = vmatprep.subr.bf16.mxu0 0
        %2918 = vmatpush1.bf16.msra.mxu0 %v2819
        %2919 = vmatprep.subr.bf16.mxu0 0
        %2920 = vmatpush1.bf16.msra.mxu0 %v2820
        %2921 = vmatprep.subr.bf16.mxu0 0
        %2922 = vmatpush1.bf16.msra.mxu0 %v2821
        %2923 = vmatprep.subr.bf16.mxu0 0
        %2924 = vmatpush1.bf16.msra.mxu0 %v2822
        %2925 = vmatprep.subr.bf16.mxu0 0
        %2926 = vmatpush1.bf16.msra.mxu0 %v2823
        %2927 = vmatprep.subr.bf16.mxu0 0
        %2928 = vmatpush1.bf16.msra.mxu0 %v2824
        %2929 = vmatprep.subr.bf16.mxu0 0
        %2930 = vmatpush1.bf16.msra.mxu0 %v2825
        %2931 = vmatprep.mubr.bf16.mxu0 %v2601
        %2932 = vmatmul.mubr.bf16.gmra.mrb[0].mxu0 %v2600
        %v2933 = vpop.f32.mrb[0].mxu0
        %v2934 = vadd.f32 %v2893, %v2933
        %v2935 = vpop.f32.mrb[0].mxu0
        %v2936 = vpop.f32.mrb[0].mxu0
        %v2937 = vadd.f32 %v2896, %v2936
        %v2938 = vpop.f32.mrb[0].mxu0
        %2939 = vdwg.mxu0
        %v2940 = vadd.f32 %v2596, %v2934
        %v2941 = vadd.f32 %v2597, %v2937
        %2942 = vst.msk [vmem:[#allocation3] sm:$0xff] %vm2498, %v2940
        %2943 = vst.msk [vmem:[#allocation3 + $0x8] sm:$0xff] %vm2498, %v2941
        %p2944 = scmp.eq.s32.totalorder %s34, 3
        // Predicated region
        $region202: #{transformer_mlp_forward.1} parent=118 // pred_check
          %p2945 = pneg %p2944
        $region203: #{transformer_mlp_forward.1} parent=118 // pred_check_branch
          %2947 = sbr.rel (%p2945) target = $region205
        $region204: #{transformer_mlp_forward.1} parent=118 // pred_region
          %s2948 = smul.u32 4, 32
          %s2949 = smul.u32 %s2948, 4
          %s2950 = sshll.u32 %s2949, 4
          %2951 = dma.done [#allocation7], %s2950
          %s2952 = scalar_lea.sflag [#allocation7], 1
          %s2953 = smul.u32 4, 64
          %s2954 = smul.u32 %s2953, 2
          %s2955 = sshll.u32 %s2954, 4
          %2956 = dma.done %s2952, %s2955
          %v2957 = vld [vmem:[#allocation2] sm:$0xff]
          %v2958 = vld [vmem:[#allocation2 + $0x8] sm:$0xff]
          %v2959 = vld [vmem:[#allocation3] sm:$0xff]
          %v2960 = vld [vmem:[#allocation3 + $0x8] sm:$0xff]
          %v2961 = vadd.f32 %v2957, %v2959
          %v2962 = vadd.f32 %v2958, %v2960
          %v2963 = vld [vmem:[%s13] sm:$0x1]
          %v2965 = vlaneseq
          %v2966 = vshrl.u32 %v2965, 7
          %v2967 = vsub.s32 0, %v2966
          %v2968 = vrot.slane %v2963, %v2967
          %v2970 = vadd.f32 %v2961, %v2968
          %v2971 = vadd.f32 %v2962, %v2968
          %v2972 = vsel %vm2498, %v2970, 0.0
          %2973 = vadd.xlane.f32.xlu0 %v2972
          %v2974 = vpop.xlane.xlu0 %2973
          %v2975 = vsel %vm2498, %v2971, 0.0
          %2976 = vadd.xlane.f32.xlu0 %v2975
          %v2977 = vpop.xlane.xlu0 %2976
          %v2978 = vrcp.pop 32.0
          %v2979 = vmul.f32 %v2974, %v2978
          %v2980 = vmul.f32 %v2977, %v2978
          %v2981 = vsub.f32 %v2970, %v2979
          %v2982 = vsub.f32 %v2971, %v2980
          %v2983 = vmul.f32 %v2981, %v2981
          %v2984 = vmul.f32 %v2982, %v2982
          %v2985 = vsel %vm2498, %v2983, 0.0
          %2986 = vadd.xlane.f32.xlu0 %v2985
          %v2987 = vpop.xlane.xlu0 %2986
          %v2988 = vsel %vm2498, %v2984, 0.0
          %2989 = vadd.xlane.f32.xlu0 %v2988
          %v2990 = vpop.xlane.xlu0 %2989
          %v2991 = vmul.f32 %v2987, %v2978
          %v2992 = vmul.f32 %v2990, %v2978
          %v2993 = vadd.f32 %v2991, 1e-05
          %v2994 = vadd.f32 %v2992, 1e-05
          %v2995 = vrsqrt.pop %v2993
          %v2996 = vrsqrt.pop %v2994
          %v2997 = vmul.f32 %v2981, %v2995
          %v2998 = vmul.f32 %v2982, %v2996
          %v2999 = vld [vmem:[%s14] sm:$0x1]
          %v3001 = vlaneseq
          %v3002 = vshrl.u32 %v3001, 7
          %v3003 = vsub.s32 0, %v3002
          %v3004 = vrot.slane %v2999, %v3003
          %v3006 = vmul.f32 %v2997, %v3004
          %v3007 = vmul.f32 %v2998, %v3004
          %v3008 = vld [vmem:[%s15] sm:$0x1]
          %v3010 = vlaneseq
          %v3011 = vshrl.u32 %v3010, 7
          %v3012 = vsub.s32 0, %v3011
          %v3013 = vrot.slane %v3008, %v3012
          %v3015 = vadd.f32 %v3006, %v3013
          %v3016 = vadd.f32 %v3007, %v3013
          %3017 = vst.msk [vmem:[#allocation4] sm:$0xff] %vm2498, %v3015
          %3018 = vst.msk [vmem:[#allocation4 + $0x8] sm:$0xff] %vm2498, %v3016
          %v3019 = vld [vmem:[#allocation4] ss:$8 sm:$0x3]
          %v3020 = vpack.c.bf16 %v3019, %v3019
          %v3021 = vld [vmem:[#allocation5] sm:$0xff]
          %v3022 = vld [vmem:[#allocation5 + $0x8] sm:$0xff]
          %v3023 = vld [vmem:[#allocation5 + $0x10] sm:$0xff]
          %v3024 = vld [vmem:[#allocation5 + $0x18] sm:$0xff]
          %v3025 = vld [vmem:[#allocation5 + $0x20] sm:$0xff]
          %v3026 = vld [vmem:[#allocation5 + $0x28] sm:$0xff]
          %v3027 = vld [vmem:[#allocation5 + $0x30] sm:$0xff]
          %v3028 = vld [vmem:[#allocation5 + $0x38] sm:$0xff]
          %s3029 = scalar_lea.vmem [#allocation4], 1
          %v3030 = vld [vmem:[%s3029] ss:$8 sm:$0x3]
          %v3031 = vpack.c.bf16 %v3030, %v3030
          %v3032 = vld [vmem:[#allocation5 + $0x40] sm:$0xff]
          %v3033 = vld [vmem:[#allocation5 + $0x48] sm:$0xff]
          %v3034 = vld [vmem:[#allocation5 + $0x50] sm:$0xff]
          %v3035 = vld [vmem:[#allocation5 + $0x58] sm:$0xff]
          %v3036 = vld [vmem:[#allocation5 + $0x60] sm:$0xff]
          %v3037 = vld [vmem:[#allocation5 + $0x68] sm:$0xff]
          %v3038 = vld [vmem:[#allocation5 + $0x70] sm:$0xff]
          %v3039 = vld [vmem:[#allocation5 + $0x78] sm:$0xff]
          %v3041 = vsel %vm2498, %v3031, 0
          %3043 = vmatprep.subr.bf16.mxu0 %v3033
          %3044 = vmatpush1.bf16.msra.mxu0 %v3032
          %3045 = vmatprep.subr.bf16.mxu0 %v3037
          %3046 = vmatpush1.bf16.msra.mxu0 %v3036
          %3047 = vmatprep.subr.bf16.mxu0 0
          %3048 = vmatpush1.bf16.msra.mxu0 0
          %3049 = vmatprep.subr.bf16.mxu0 0
          %3050 = vmatpush1.bf16.msra.mxu0 0
          %3051 = vmatprep.subr.bf16.mxu0 0
          %3052 = vmatpush1.bf16.msra.mxu0 0
          %3053 = vmatprep.subr.bf16.mxu0 0
          %3054 = vmatpush1.bf16.msra.mxu0 0
          %3055 = vmatprep.subr.bf16.mxu0 0
          %3056 = vmatpush1.bf16.msra.mxu0 0
          %3057 = vmatprep.subr.bf16.mxu0 0
          %3058 = vmatpush1.bf16.msra.mxu0 0
          %3059 = vmatprep.subr.bf16.mxu0 0
          %3060 = vmatpush1.bf16.msra.mxu0 0
          %3061 = vmatprep.subr.bf16.mxu0 0
          %3062 = vmatpush1.bf16.msra.mxu0 0
          %3063 = vmatprep.subr.bf16.mxu0 0
          %3064 = vmatpush1.bf16.msra.mxu0 0
          %3065 = vmatprep.subr.bf16.mxu0 0
          %3066 = vmatpush1.bf16.msra.mxu0 0
          %3067 = vmatprep.subr.bf16.mxu0 0
          %3068 = vmatpush1.bf16.msra.mxu0 0
          %3069 = vmatprep.subr.bf16.mxu0 0
          %3070 = vmatpush1.bf16.msra.mxu0 0
          %3071 = vmatprep.subr.bf16.mxu0 0
          %3072 = vmatpush1.bf16.msra.mxu0 0
          %3073 = vmatprep.subr.bf16.mxu0 0
          %3074 = vmatpush1.bf16.msra.mxu0 0
          %3075 = vmatprep.mubr.bf16.mxu0 0
          %3076 = vmatmul.mubr.bf16.gmra.mrb[0].mxu0 %v3041
          %v3077 = vpop.f32.mrb[0].mxu0
          %v3078 = vadd.f32 0.0, %v3077
          %v3079 = vpop.f32.mrb[0].mxu0
          %v3080 = vadd.f32 0.0, %v3079
          %v3081 = vpop.f32.mrb[0].mxu0
          %v3082 = vpop.f32.mrb[0].mxu0
          %3083 = vdwg.mxu0
          %3084 = vmatprep.subr.bf16.mxu0 %v3035
          %3085 = vmatpush1.bf16.msra.mxu0 %v3034
          %3086 = vmatprep.subr.bf16.mxu0 %v3039
          %3087 = vmatpush1.bf16.msra.mxu0 %v3038
          %3088 = vmatprep.subr.bf16.mxu0 0
          %3089 = vmatpush1.bf16.msra.mxu0 0
          %3090 = vmatprep.subr.bf16.mxu0 0
          %3091 = vmatpush1.bf16.msra.mxu0 0
          %3092 = vmatprep.subr.bf16.mxu0 0
          %3093 = vmatpush1.bf16.msra.mxu0 0
          %3094 = vmatprep.subr.bf16.mxu0 0
          %3095 = vmatpush1.bf16.msra.mxu0 0
          %3096 = vmatprep.subr.bf16.mxu0 0
          %3097 = vmatpush1.bf16.msra.mxu0 0
          %3098 = vmatprep.subr.bf16.mxu0 0
          %3099 = vmatpush1.bf16.msra.mxu0 0
          %3100 = vmatprep.subr.bf16.mxu0 0
          %3101 = vmatpush1.bf16.msra.mxu0 0
          %3102 = vmatprep.subr.bf16.mxu0 0
          %3103 = vmatpush1.bf16.msra.mxu0 0
          %3104 = vmatprep.subr.bf16.mxu0 0
          %3105 = vmatpush1.bf16.msra.mxu0 0
          %3106 = vmatprep.subr.bf16.mxu0 0
          %3107 = vmatpush1.bf16.msra.mxu0 0
          %3108 = vmatprep.subr.bf16.mxu0 0
          %3109 = vmatpush1.bf16.msra.mxu0 0
          %3110 = vmatprep.subr.bf16.mxu0 0
          %3111 = vmatpush1.bf16.msra.mxu0 0
          %3112 = vmatprep.subr.bf16.mxu0 0
          %3113 = vmatpush1.bf16.msra.mxu0 0
          %3114 = vmatprep.subr.bf16.mxu0 0
          %3115 = vmatpush1.bf16.msra.mxu0 0
          %3116 = vmatprep.mubr.bf16.mxu0 0
          %3117 = vmatmul.mubr.bf16.gmra.mrb[0].mxu0 %v3041
          %v3118 = vpop.f32.mrb[0].mxu0
          %v3119 = vadd.f32 0.0, %v3118
          %v3120 = vpop.f32.mrb[0].mxu0
          %v3121 = vadd.f32 0.0, %v3120
          %v3122 = vpop.f32.mrb[0].mxu0
          %v3123 = vpop.f32.mrb[0].mxu0
          %3124 = vdwg.mxu0
          %v3126 = vsel %vm2498, %v3020, 0
          %3128 = vmatprep.subr.bf16.mxu0 %v3022
          %3129 = vmatpush1.bf16.msra.mxu0 %v3021
          %3130 = vmatprep.subr.bf16.mxu0 %v3026
          %3131 = vmatpush1.bf16.msra.mxu0 %v3025
          %3132 = vmatprep.subr.bf16.mxu0 0
          %3133 = vmatpush1.bf16.msra.mxu0 0
          %3134 = vmatprep.subr.bf16.mxu0 0
          %3135 = vmatpush1.bf16.msra.mxu0 0
          %3136 = vmatprep.subr.bf16.mxu0 0
          %3137 = vmatpush1.bf16.msra.mxu0 0
          %3138 = vmatprep.subr.bf16.mxu0 0
          %3139 = vmatpush1.bf16.msra.mxu0 0
          %3140 = vmatprep.subr.bf16.mxu0 0
          %3141 = vmatpush1.bf16.msra.mxu0 0
          %3142 = vmatprep.subr.bf16.mxu0 0
          %3143 = vmatpush1.bf16.msra.mxu0 0
          %3144 = vmatprep.subr.bf16.mxu0 0
          %3145 = vmatpush1.bf16.msra.mxu0 0
          %3146 = vmatprep.subr.bf16.mxu0 0
          %3147 = vmatpush1.bf16.msra.mxu0 0
          %3148 = vmatprep.subr.bf16.mxu0 0
          %3149 = vmatpush1.bf16.msra.mxu0 0
          %3150 = vmatprep.subr.bf16.mxu0 0
          %3151 = vmatpush1.bf16.msra.mxu0 0
          %3152 = vmatprep.subr.bf16.mxu0 0
          %3153 = vmatpush1.bf16.msra.mxu0 0
          %3154 = vmatprep.subr.bf16.mxu0 0
          %3155 = vmatpush1.bf16.msra.mxu0 0
          %3156 = vmatprep.subr.bf16.mxu0 0
          %3157 = vmatpush1.bf16.msra.mxu0 0
          %3158 = vmatprep.subr.bf16.mxu0 0
          %3159 = vmatpush1.bf16.msra.mxu0 0
          %3160 = vmatprep.mubr.bf16.mxu0 0
          %3161 = vmatmul.mubr.bf16.gmra.mrb[0].mxu0 %v3126
          %v3162 = vpop.f32.mrb[0].mxu0
          %v3163 = vadd.f32 %v3078, %v3162
          %v3164 = vpop.f32.mrb[0].mxu0
          %v3165 = vadd.f32 %v3080, %v3164
          %v3166 = vpop.f32.mrb[0].mxu0
          %v3167 = vpop.f32.mrb[0].mxu0
          %3168 = vdwg.mxu0
          %3169 = vmatprep.subr.bf16.mxu0 %v3024
          %3170 = vmatpush1.bf16.msra.mxu0 %v3023
          %3171 = vmatprep.subr.bf16.mxu0 %v3028
          %3172 = vmatpush1.bf16.msra.mxu0 %v3027
          %3173 = vmatprep.subr.bf16.mxu0 0
          %3174 = vmatpush1.bf16.msra.mxu0 0
          %3175 = vmatprep.subr.bf16.mxu0 0
          %3176 = vmatpush1.bf16.msra.mxu0 0
          %3177 = vmatprep.subr.bf16.mxu0 0
          %3178 = vmatpush1.bf16.msra.mxu0 0
          %3179 = vmatprep.subr.bf16.mxu0 0
          %3180 = vmatpush1.bf16.msra.mxu0 0
          %3181 = vmatprep.subr.bf16.mxu0 0
          %3182 = vmatpush1.bf16.msra.mxu0 0
          %3183 = vmatprep.subr.bf16.mxu0 0
          %3184 = vmatpush1.bf16.msra.mxu0 0
          %3185 = vmatprep.subr.bf16.mxu0 0
          %3186 = vmatpush1.bf16.msra.mxu0 0
          %3187 = vmatprep.subr.bf16.mxu0 0
          %3188 = vmatpush1.bf16.msra.mxu0 0
          %3189 = vmatprep.subr.bf16.mxu0 0
          %3190 = vmatpush1.bf16.msra.mxu0 0
          %3191 = vmatprep.subr.bf16.mxu0 0
          %3192 = vmatpush1.bf16.msra.mxu0 0
          %3193 = vmatprep.subr.bf16.mxu0 0
          %3194 = vmatpush1.bf16.msra.mxu0 0
          %3195 = vmatprep.subr.bf16.mxu0 0
          %3196 = vmatpush1.bf16.msra.mxu0 0
          %3197 = vmatprep.subr.bf16.mxu0 0
          %3198 = vmatpush1.bf16.msra.mxu0 0
          %3199 = vmatprep.subr.bf16.mxu0 0
          %3200 = vmatpush1.bf16.msra.mxu0 0
          %3201 = vmatprep.mubr.bf16.mxu0 0
          %3202 = vmatmul.mubr.bf16.gmra.mrb[0].mxu0 %v3126
          %v3203 = vpop.f32.mrb[0].mxu0
          %v3204 = vadd.f32 %v3119, %v3203
          %v3205 = vpop.f32.mrb[0].mxu0
          %v3206 = vadd.f32 %v3121, %v3205
          %v3207 = vpop.f32.mrb[0].mxu0
          %v3208 = vpop.f32.mrb[0].mxu0
          %3209 = vdwg.mxu0
          %s3210 = scalar_lea.vmem [#allocation4], 2
          %v3211 = vld [vmem:[%s3210] ss:$8 sm:$0x3]
          %v3212 = vpack.c.bf16 %v3211, %v3211
          %v3213 = vld [vmem:[#allocation5 + $0x80] sm:$0xff]
          %v3214 = vld [vmem:[#allocation5 + $0x88] sm:$0xff]
          %v3215 = vld [vmem:[#allocation5 + $0x90] sm:$0xff]
          %v3216 = vld [vmem:[#allocation5 + $0x98] sm:$0xff]
          %v3217 = vld [vmem:[#allocation5 + $0xa0] sm:$0xff]
          %v3218 = vld [vmem:[#allocation5 + $0xa8] sm:$0xff]
          %v3219 = vld [vmem:[#allocation5 + $0xb0] sm:$0xff]
          %v3220 = vld [vmem:[#allocation5 + $0xb8] sm:$0xff]
          %v3222 = vsel %vm2498, %v3212, 0
          %3224 = vmatprep.subr.bf16.mxu0 %v3214
          %3225 = vmatpush1.bf16.msra.mxu0 %v3213
          %3226 = vmatprep.subr.bf16.mxu0 %v3218
          %3227 = vmatpush1.bf16.msra.mxu0 %v3217
          %3228 = vmatprep.subr.bf16.mxu0 0
          %3229 = vmatpush1.bf16.msra.mxu0 0
          %3230 = vmatprep.subr.bf16.mxu0 0
          %3231 = vmatpush1.bf16.msra.mxu0 0
          %3232 = vmatprep.subr.bf16.mxu0 0
          %3233 = vmatpush1.bf16.msra.mxu0 0
          %3234 = vmatprep.subr.bf16.mxu0 0
          %3235 = vmatpush1.bf16.msra.mxu0 0
          %3236 = vmatprep.subr.bf16.mxu0 0
          %3237 = vmatpush1.bf16.msra.mxu0 0
          %3238 = vmatprep.subr.bf16.mxu0 0
          %3239 = vmatpush1.bf16.msra.mxu0 0
          %3240 = vmatprep.subr.bf16.mxu0 0
          %3241 = vmatpush1.bf16.msra.mxu0 0
          %3242 = vmatprep.subr.bf16.mxu0 0
          %3243 = vmatpush1.bf16.msra.mxu0 0
          %3244 = vmatprep.subr.bf16.mxu0 0
          %3245 = vmatpush1.bf16.msra.mxu0 0
          %3246 = vmatprep.subr.bf16.mxu0 0
          %3247 = vmatpush1.bf16.msra.mxu0 0
          %3248 = vmatprep.subr.bf16.mxu0 0
          %3249 = vmatpush1.bf16.msra.mxu0 0
          %3250 = vmatprep.subr.bf16.mxu0 0
          %3251 = vmatpush1.bf16.msra.mxu0 0
          %3252 = vmatprep.subr.bf16.mxu0 0
          %3253 = vmatpush1.bf16.msra.mxu0 0
          %3254 = vmatprep.subr.bf16.mxu0 0
          %3255 = vmatpush1.bf16.msra.mxu0 0
          %3256 = vmatprep.mubr.bf16.mxu0 0
          %3257 = vmatmul.mubr.bf16.gmra.mrb[0].mxu0 %v3222
          %v3258 = vpop.f32.mrb[0].mxu0
          %v3259 = vadd.f32 0.0, %v3258
          %v3260 = vpop.f32.mrb[0].mxu0
          %v3261 = vadd.f32 0.0, %v3260
          %v3262 = vpop.f32.mrb[0].mxu0
          %v3263 = vpop.f32.mrb[0].mxu0
          %3264 = vdwg.mxu0
          %3265 = vmatprep.subr.bf16.mxu0 %v3216
          %3266 = vmatpush1.bf16.msra.mxu0 %v3215
          %3267 = vmatprep.subr.bf16.mxu0 %v3220
          %3268 = vmatpush1.bf16.msra.mxu0 %v3219
          %3269 = vmatprep.subr.bf16.mxu0 0
          %3270 = vmatpush1.bf16.msra.mxu0 0
          %3271 = vmatprep.subr.bf16.mxu0 0
          %3272 = vmatpush1.bf16.msra.mxu0 0
          %3273 = vmatprep.subr.bf16.mxu0 0
          %3274 = vmatpush1.bf16.msra.mxu0 0
          %3275 = vmatprep.subr.bf16.mxu0 0
          %3276 = vmatpush1.bf16.msra.mxu0 0
          %3277 = vmatprep.subr.bf16.mxu0 0
          %3278 = vmatpush1.bf16.msra.mxu0 0
          %3279 = vmatprep.subr.bf16.mxu0 0
          %3280 = vmatpush1.bf16.msra.mxu0 0
          %3281 = vmatprep.subr.bf16.mxu0 0
          %3282 = vmatpush1.bf16.msra.mxu0 0
          %3283 = vmatprep.subr.bf16.mxu0 0
          %3284 = vmatpush1.bf16.msra.mxu0 0
          %3285 = vmatprep.subr.bf16.mxu0 0
          %3286 = vmatpush1.bf16.msra.mxu0 0
          %3287 = vmatprep.subr.bf16.mxu0 0
          %3288 = vmatpush1.bf16.msra.mxu0 0
          %3289 = vmatprep.subr.bf16.mxu0 0
          %3290 = vmatpush1.bf16.msra.mxu0 0
          %3291 = vmatprep.subr.bf16.mxu0 0
          %3292 = vmatpush1.bf16.msra.mxu0 0
          %3293 = vmatprep.subr.bf16.mxu0 0
          %3294 = vmatpush1.bf16.msra.mxu0 0
          %3295 = vmatprep.subr.bf16.mxu0 0
          %3296 = vmatpush1.bf16.msra.mxu0 0
          %3297 = vmatprep.mubr.bf16.mxu0 0
          %3298 = vmatmul.mubr.bf16.gmra.mrb[0].mxu0 %v3222
          %v3299 = vpop.f32.mrb[0].mxu0
          %v3300 = vadd.f32 0.0, %v3299
          %v3301 = vpop.f32.mrb[0].mxu0
          %v3302 = vadd.f32 0.0, %v3301
          %v3303 = vpop.f32.mrb[0].mxu0
          %v3304 = vpop.f32.mrb[0].mxu0
          %3305 = vdwg.mxu0
          %v3306 = vadd.f32 %v3163, %v3259
          %v3307 = vadd.f32 %v3165, %v3261
          %v3308 = vadd.f32 %v3204, %v3300
          %v3309 = vadd.f32 %v3206, %v3302
          %s3310 = scalar_lea.vmem [#allocation4], 3
          %v3311 = vld [vmem:[%s3310] ss:$8 sm:$0x3]
          %v3312 = vpack.c.bf16 %v3311, %v3311
          %v3313 = vld [vmem:[#allocation5 + $0xc0] sm:$0xff]
          %v3314 = vld [vmem:[#allocation5 + $0xc8] sm:$0xff]
          %v3315 = vld [vmem:[#allocation5 + $0xd0] sm:$0xff]
          %v3316 = vld [vmem:[#allocation5 + $0xd8] sm:$0xff]
          %v3317 = vld [vmem:[#allocation5 + $0xe0] sm:$0xff]
          %v3318 = vld [vmem:[#allocation5 + $0xe8] sm:$0xff]
          %v3319 = vld [vmem:[#allocation5 + $0xf0] sm:$0xff]
          %v3320 = vld [vmem:[#allocation5 + $0xf8] sm:$0xff]
          %v3322 = vsel %vm2498, %v3312, 0
          %3324 = vmatprep.subr.bf16.mxu0 %v3314
          %3325 = vmatpush1.bf16.msra.mxu0 %v3313
          %3326 = vmatprep.subr.bf16.mxu0 %v3318
          %3327 = vmatpush1.bf16.msra.mxu0 %v3317
          %3328 = vmatprep.subr.bf16.mxu0 0
          %3329 = vmatpush1.bf16.msra.mxu0 0
          %3330 = vmatprep.subr.bf16.mxu0 0
          %3331 = vmatpush1.bf16.msra.mxu0 0
          %3332 = vmatprep.subr.bf16.mxu0 0
          %3333 = vmatpush1.bf16.msra.mxu0 0
          %3334 = vmatprep.subr.bf16.mxu0 0
          %3335 = vmatpush1.bf16.msra.mxu0 0
          %3336 = vmatprep.subr.bf16.mxu0 0
          %3337 = vmatpush1.bf16.msra.mxu0 0
          %3338 = vmatprep.subr.bf16.mxu0 0
          %3339 = vmatpush1.bf16.msra.mxu0 0
          %3340 = vmatprep.subr.bf16.mxu0 0
          %3341 = vmatpush1.bf16.msra.mxu0 0
          %3342 = vmatprep.subr.bf16.mxu0 0
          %3343 = vmatpush1.bf16.msra.mxu0 0
          %3344 = vmatprep.subr.bf16.mxu0 0
          %3345 = vmatpush1.bf16.msra.mxu0 0
          %3346 = vmatprep.subr.bf16.mxu0 0
          %3347 = vmatpush1.bf16.msra.mxu0 0
          %3348 = vmatprep.subr.bf16.mxu0 0
          %3349 = vmatpush1.bf16.msra.mxu0 0
          %3350 = vmatprep.subr.bf16.mxu0 0
          %3351 = vmatpush1.bf16.msra.mxu0 0
          %3352 = vmatprep.subr.bf16.mxu0 0
          %3353 = vmatpush1.bf16.msra.mxu0 0
          %3354 = vmatprep.subr.bf16.mxu0 0
          %3355 = vmatpush1.bf16.msra.mxu0 0
          %3356 = vmatprep.mubr.bf16.mxu0 0
          %3357 = vmatmul.mubr.bf16.gmra.mrb[0].mxu0 %v3322
          %v3358 = vpop.f32.mrb[0].mxu0
          %v3359 = vadd.f32 0.0, %v3358
          %v3360 = vpop.f32.mrb[0].mxu0
          %v3361 = vadd.f32 0.0, %v3360
          %v3362 = vpop.f32.mrb[0].mxu0
          %v3363 = vpop.f32.mrb[0].mxu0
          %3364 = vdwg.mxu0
          %3365 = vmatprep.subr.bf16.mxu0 %v3316
          %3366 = vmatpush1.bf16.msra.mxu0 %v3315
          %3367 = vmatprep.subr.bf16.mxu0 %v3320
          %3368 = vmatpush1.bf16.msra.mxu0 %v3319
          %3369 = vmatprep.subr.bf16.mxu0 0
          %3370 = vmatpush1.bf16.msra.mxu0 0
          %3371 = vmatprep.subr.bf16.mxu0 0
          %3372 = vmatpush1.bf16.msra.mxu0 0
          %3373 = vmatprep.subr.bf16.mxu0 0
          %3374 = vmatpush1.bf16.msra.mxu0 0
          %3375 = vmatprep.subr.bf16.mxu0 0
          %3376 = vmatpush1.bf16.msra.mxu0 0
          %3377 = vmatprep.subr.bf16.mxu0 0
          %3378 = vmatpush1.bf16.msra.mxu0 0
          %3379 = vmatprep.subr.bf16.mxu0 0
          %3380 = vmatpush1.bf16.msra.mxu0 0
          %3381 = vmatprep.subr.bf16.mxu0 0
          %3382 = vmatpush1.bf16.msra.mxu0 0
          %3383 = vmatprep.subr.bf16.mxu0 0
          %3384 = vmatpush1.bf16.msra.mxu0 0
          %3385 = vmatprep.subr.bf16.mxu0 0
          %3386 = vmatpush1.bf16.msra.mxu0 0
          %3387 = vmatprep.subr.bf16.mxu0 0
          %3388 = vmatpush1.bf16.msra.mxu0 0
          %3389 = vmatprep.subr.bf16.mxu0 0
          %3390 = vmatpush1.bf16.msra.mxu0 0
          %3391 = vmatprep.subr.bf16.mxu0 0
          %3392 = vmatpush1.bf16.msra.mxu0 0
          %3393 = vmatprep.subr.bf16.mxu0 0
          %3394 = vmatpush1.bf16.msra.mxu0 0
          %3395 = vmatprep.subr.bf16.mxu0 0
          %3396 = vmatpush1.bf16.msra.mxu0 0
          %3397 = vmatprep.mubr.bf16.mxu0 0
          %3398 = vmatmul.mubr.bf16.gmra.mrb[0].mxu0 %v3322
          %v3399 = vpop.f32.mrb[0].mxu0
          %v3400 = vadd.f32 0.0, %v3399
          %v3401 = vpop.f32.mrb[0].mxu0
          %v3402 = vadd.f32 0.0, %v3401
          %v3403 = vpop.f32.mrb[0].mxu0
          %v3404 = vpop.f32.mrb[0].mxu0
          %3405 = vdwg.mxu0
          %v3406 = vadd.f32 %v3306, %v3359
          %v3407 = vadd.f32 %v3307, %v3361
          %v3408 = vadd.f32 %v3308, %v3400
          %v3409 = vadd.f32 %v3309, %v3402
          %s3410 = scalar_lea.vmem [#allocation4], 4
          %v3411 = vld [vmem:[%s3410] ss:$8 sm:$0x3]
          %v3412 = vpack.c.bf16 %v3411, %v3411
          %v3413 = vld [vmem:[#allocation5 + $0x100] sm:$0xff]
          %v3414 = vld [vmem:[#allocation5 + $0x108] sm:$0xff]
          %v3415 = vld [vmem:[#allocation5 + $0x110] sm:$0xff]
          %v3416 = vld [vmem:[#allocation5 + $0x118] sm:$0xff]
          %v3417 = vld [vmem:[#allocation5 + $0x120] sm:$0xff]
          %v3418 = vld [vmem:[#allocation5 + $0x128] sm:$0xff]
          %v3419 = vld [vmem:[#allocation5 + $0x130] sm:$0xff]
          %v3420 = vld [vmem:[#allocation5 + $0x138] sm:$0xff]
          %v3422 = vsel %vm2498, %v3412, 0
          %3424 = vmatprep.subr.bf16.mxu0 %v3414
          %3425 = vmatpush1.bf16.msra.mxu0 %v3413
          %3426 = vmatprep.subr.bf16.mxu0 %v3418
          %3427 = vmatpush1.bf16.msra.mxu0 %v3417
          %3428 = vmatprep.subr.bf16.mxu0 0
          %3429 = vmatpush1.bf16.msra.mxu0 0
          %3430 = vmatprep.subr.bf16.mxu0 0
          %3431 = vmatpush1.bf16.msra.mxu0 0
          %3432 = vmatprep.subr.bf16.mxu0 0
          %3433 = vmatpush1.bf16.msra.mxu0 0
          %3434 = vmatprep.subr.bf16.mxu0 0
          %3435 = vmatpush1.bf16.msra.mxu0 0
          %3436 = vmatprep.subr.bf16.mxu0 0
          %3437 = vmatpush1.bf16.msra.mxu0 0
          %3438 = vmatprep.subr.bf16.mxu0 0
          %3439 = vmatpush1.bf16.msra.mxu0 0
          %3440 = vmatprep.subr.bf16.mxu0 0
          %3441 = vmatpush1.bf16.msra.mxu0 0
          %3442 = vmatprep.subr.bf16.mxu0 0
          %3443 = vmatpush1.bf16.msra.mxu0 0
          %3444 = vmatprep.subr.bf16.mxu0 0
          %3445 = vmatpush1.bf16.msra.mxu0 0
          %3446 = vmatprep.subr.bf16.mxu0 0
          %3447 = vmatpush1.bf16.msra.mxu0 0
          %3448 = vmatprep.subr.bf16.mxu0 0
          %3449 = vmatpush1.bf16.msra.mxu0 0
          %3450 = vmatprep.subr.bf16.mxu0 0
          %3451 = vmatpush1.bf16.msra.mxu0 0
          %3452 = vmatprep.subr.bf16.mxu0 0
          %3453 = vmatpush1.bf16.msra.mxu0 0
          %3454 = vmatprep.subr.bf16.mxu0 0
          %3455 = vmatpush1.bf16.msra.mxu0 0
          %3456 = vmatprep.mubr.bf16.mxu0 0
          %3457 = vmatmul.mubr.bf16.gmra.mrb[0].mxu0 %v3422
          %v3458 = vpop.f32.mrb[0].mxu0
          %v3459 = vadd.f32 0.0, %v3458
          %v3460 = vpop.f32.mrb[0].mxu0
          %v3461 = vadd.f32 0.0, %v3460
          %v3462 = vpop.f32.mrb[0].mxu0
          %v3463 = vpop.f32.mrb[0].mxu0
          %3464 = vdwg.mxu0
          %3465 = vmatprep.subr.bf16.mxu0 %v3416
          %3466 = vmatpush1.bf16.msra.mxu0 %v3415
          %3467 = vmatprep.subr.bf16.mxu0 %v3420
          %3468 = vmatpush1.bf16.msra.mxu0 %v3419
          %3469 = vmatprep.subr.bf16.mxu0 0
          %3470 = vmatpush1.bf16.msra.mxu0 0
          %3471 = vmatprep.subr.bf16.mxu0 0
          %3472 = vmatpush1.bf16.msra.mxu0 0
          %3473 = vmatprep.subr.bf16.mxu0 0
          %3474 = vmatpush1.bf16.msra.mxu0 0
          %3475 = vmatprep.subr.bf16.mxu0 0
          %3476 = vmatpush1.bf16.msra.mxu0 0
          %3477 = vmatprep.subr.bf16.mxu0 0
          %3478 = vmatpush1.bf16.msra.mxu0 0
          %3479 = vmatprep.subr.bf16.mxu0 0
          %3480 = vmatpush1.bf16.msra.mxu0 0
          %3481 = vmatprep.subr.bf16.mxu0 0
          %3482 = vmatpush1.bf16.msra.mxu0 0
          %3483 = vmatprep.subr.bf16.mxu0 0
          %3484 = vmatpush1.bf16.msra.mxu0 0
          %3485 = vmatprep.subr.bf16.mxu0 0
          %3486 = vmatpush1.bf16.msra.mxu0 0
          %3487 = vmatprep.subr.bf16.mxu0 0
          %3488 = vmatpush1.bf16.msra.mxu0 0
          %3489 = vmatprep.subr.bf16.mxu0 0
          %3490 = vmatpush1.bf16.msra.mxu0 0
          %3491 = vmatprep.subr.bf16.mxu0 0
          %3492 = vmatpush1.bf16.msra.mxu0 0
          %3493 = vmatprep.subr.bf16.mxu0 0
          %3494 = vmatpush1.bf16.msra.mxu0 0
          %3495 = vmatprep.subr.bf16.mxu0 0
          %3496 = vmatpush1.bf16.msra.mxu0 0
          %3497 = vmatprep.mubr.bf16.mxu0 0
          %3498 = vmatmul.mubr.bf16.gmra.mrb[0].mxu0 %v3422
          %v3499 = vpop.f32.mrb[0].mxu0
          %v3500 = vadd.f32 0.0, %v3499
          %v3501 = vpop.f32.mrb[0].mxu0
          %v3502 = vadd.f32 0.0, %v3501
          %v3503 = vpop.f32.mrb[0].mxu0
          %v3504 = vpop.f32.mrb[0].mxu0
          %3505 = vdwg.mxu0
          %v3506 = vadd.f32 %v3406, %v3459
          %v3507 = vadd.f32 %v3407, %v3461
          %v3508 = vadd.f32 %v3408, %v3500
          %v3509 = vadd.f32 %v3409, %v3502
          %s3510 = scalar_lea.vmem [#allocation4], 5
          %v3511 = vld [vmem:[%s3510] ss:$8 sm:$0x3]
          %v3512 = vpack.c.bf16 %v3511, %v3511
          %v3513 = vld [vmem:[#allocation5 + $0x140] sm:$0xff]
          %v3514 = vld [vmem:[#allocation5 + $0x148] sm:$0xff]
          %v3515 = vld [vmem:[#allocation5 + $0x150] sm:$0xff]
          %v3516 = vld [vmem:[#allocation5 + $0x158] sm:$0xff]
          %v3517 = vld [vmem:[#allocation5 + $0x160] sm:$0xff]
          %v3518 = vld [vmem:[#allocation5 + $0x168] sm:$0xff]
          %v3519 = vld [vmem:[#allocation5 + $0x170] sm:$0xff]
          %v3520 = vld [vmem:[#allocation5 + $0x178] sm:$0xff]
          %v3522 = vsel %vm2498, %v3512, 0
          %3524 = vmatprep.subr.bf16.mxu0 %v3514
          %3525 = vmatpush1.bf16.msra.mxu0 %v3513
          %3526 = vmatprep.subr.bf16.mxu0 %v3518
          %3527 = vmatpush1.bf16.msra.mxu0 %v3517
          %3528 = vmatprep.subr.bf16.mxu0 0
          %3529 = vmatpush1.bf16.msra.mxu0 0
          %3530 = vmatprep.subr.bf16.mxu0 0
          %3531 = vmatpush1.bf16.msra.mxu0 0
          %3532 = vmatprep.subr.bf16.mxu0 0
          %3533 = vmatpush1.bf16.msra.mxu0 0
          %3534 = vmatprep.subr.bf16.mxu0 0
          %3535 = vmatpush1.bf16.msra.mxu0 0
          %3536 = vmatprep.subr.bf16.mxu0 0
          %3537 = vmatpush1.bf16.msra.mxu0 0
          %3538 = vmatprep.subr.bf16.mxu0 0
          %3539 = vmatpush1.bf16.msra.mxu0 0
          %3540 = vmatprep.subr.bf16.mxu0 0
          %3541 = vmatpush1.bf16.msra.mxu0 0
          %3542 = vmatprep.subr.bf16.mxu0 0
          %3543 = vmatpush1.bf16.msra.mxu0 0
          %3544 = vmatprep.subr.bf16.mxu0 0
          %3545 = vmatpush1.bf16.msra.mxu0 0
          %3546 = vmatprep.subr.bf16.mxu0 0
          %3547 = vmatpush1.bf16.msra.mxu0 0
          %3548 = vmatprep.subr.bf16.mxu0 0
          %3549 = vmatpush1.bf16.msra.mxu0 0
          %3550 = vmatprep.subr.bf16.mxu0 0
          %3551 = vmatpush1.bf16.msra.mxu0 0
          %3552 = vmatprep.subr.bf16.mxu0 0
          %3553 = vmatpush1.bf16.msra.mxu0 0
          %3554 = vmatprep.subr.bf16.mxu0 0
          %3555 = vmatpush1.bf16.msra.mxu0 0
          %3556 = vmatprep.mubr.bf16.mxu0 0
          %3557 = vmatmul.mubr.bf16.gmra.mrb[0].mxu0 %v3522
          %v3558 = vpop.f32.mrb[0].mxu0
          %v3559 = vadd.f32 0.0, %v3558
          %v3560 = vpop.f32.mrb[0].mxu0
          %v3561 = vadd.f32 0.0, %v3560
          %v3562 = vpop.f32.mrb[0].mxu0
          %v3563 = vpop.f32.mrb[0].mxu0
          %3564 = vdwg.mxu0
          %3565 = vmatprep.subr.bf16.mxu0 %v3516
          %3566 = vmatpush1.bf16.msra.mxu0 %v3515
          %3567 = vmatprep.subr.bf16.mxu0 %v3520
          %3568 = vmatpush1.bf16.msra.mxu0 %v3519
          %3569 = vmatprep.subr.bf16.mxu0 0
          %3570 = vmatpush1.bf16.msra.mxu0 0
          %3571 = vmatprep.subr.bf16.mxu0 0
          %3572 = vmatpush1.bf16.msra.mxu0 0
          %3573 = vmatprep.subr.bf16.mxu0 0
          %3574 = vmatpush1.bf16.msra.mxu0 0
          %3575 = vmatprep.subr.bf16.mxu0 0
          %3576 = vmatpush1.bf16.msra.mxu0 0
          %3577 = vmatprep.subr.bf16.mxu0 0
          %3578 = vmatpush1.bf16.msra.mxu0 0
          %3579 = vmatprep.subr.bf16.mxu0 0
          %3580 = vmatpush1.bf16.msra.mxu0 0
          %3581 = vmatprep.subr.bf16.mxu0 0
          %3582 = vmatpush1.bf16.msra.mxu0 0
          %3583 = vmatprep.subr.bf16.mxu0 0
          %3584 = vmatpush1.bf16.msra.mxu0 0
          %3585 = vmatprep.subr.bf16.mxu0 0
          %3586 = vmatpush1.bf16.msra.mxu0 0
          %3587 = vmatprep.subr.bf16.mxu0 0
          %3588 = vmatpush1.bf16.msra.mxu0 0
          %3589 = vmatprep.subr.bf16.mxu0 0
          %3590 = vmatpush1.bf16.msra.mxu0 0
          %3591 = vmatprep.subr.bf16.mxu0 0
          %3592 = vmatpush1.bf16.msra.mxu0 0
          %3593 = vmatprep.subr.bf16.mxu0 0
          %3594 = vmatpush1.bf16.msra.mxu0 0
          %3595 = vmatprep.subr.bf16.mxu0 0
          %3596 = vmatpush1.bf16.msra.mxu0 0
          %3597 = vmatprep.mubr.bf16.mxu0 0
          %3598 = vmatmul.mubr.bf16.gmra.mrb[0].mxu0 %v3522
          %v3599 = vpop.f32.mrb[0].mxu0
          %v3600 = vadd.f32 0.0, %v3599
          %v3601 = vpop.f32.mrb[0].mxu0
          %v3602 = vadd.f32 0.0, %v3601
          %v3603 = vpop.f32.mrb[0].mxu0
          %v3604 = vpop.f32.mrb[0].mxu0
          %3605 = vdwg.mxu0
          %v3606 = vadd.f32 %v3506, %v3559
          %v3607 = vadd.f32 %v3507, %v3561
          %v3608 = vadd.f32 %v3508, %v3600
          %v3609 = vadd.f32 %v3509, %v3602
          %s3610 = scalar_lea.vmem [#allocation4], 6
          %v3611 = vld [vmem:[%s3610] ss:$8 sm:$0x3]
          %v3612 = vpack.c.bf16 %v3611, %v3611
          %v3613 = vld [vmem:[#allocation5 + $0x180] sm:$0xff]
          %v3614 = vld [vmem:[#allocation5 + $0x188] sm:$0xff]
          %v3615 = vld [vmem:[#allocation5 + $0x190] sm:$0xff]
          %v3616 = vld [vmem:[#allocation5 + $0x198] sm:$0xff]
          %v3617 = vld [vmem:[#allocation5 + $0x1a0] sm:$0xff]
          %v3618 = vld [vmem:[#allocation5 + $0x1a8] sm:$0xff]
          %v3619 = vld [vmem:[#allocation5 + $0x1b0] sm:$0xff]
          %v3620 = vld [vmem:[#allocation5 + $0x1b8] sm:$0xff]
          %v3622 = vsel %vm2498, %v3612, 0
          %3624 = vmatprep.subr.bf16.mxu0 %v3614
          %3625 = vmatpush1.bf16.msra.mxu0 %v3613
          %3626 = vmatprep.subr.bf16.mxu0 %v3618
          %3627 = vmatpush1.bf16.msra.mxu0 %v3617
          %3628 = vmatprep.subr.bf16.mxu0 0
          %3629 = vmatpush1.bf16.msra.mxu0 0
          %3630 = vmatprep.subr.bf16.mxu0 0
          %3631 = vmatpush1.bf16.msra.mxu0 0
          %3632 = vmatprep.subr.bf16.mxu0 0
          %3633 = vmatpush1.bf16.msra.mxu0 0
          %3634 = vmatprep.subr.bf16.mxu0 0
          %3635 = vmatpush1.bf16.msra.mxu0 0
          %3636 = vmatprep.subr.bf16.mxu0 0
          %3637 = vmatpush1.bf16.msra.mxu0 0
          %3638 = vmatprep.subr.bf16.mxu0 0
          %3639 = vmatpush1.bf16.msra.mxu0 0
          %3640 = vmatprep.subr.bf16.mxu0 0
          %3641 = vmatpush1.bf16.msra.mxu0 0
          %3642 = vmatprep.subr.bf16.mxu0 0
          %3643 = vmatpush1.bf16.msra.mxu0 0
          %3644 = vmatprep.subr.bf16.mxu0 0
          %3645 = vmatpush1.bf16.msra.mxu0 0
          %3646 = vmatprep.subr.bf16.mxu0 0
          %3647 = vmatpush1.bf16.msra.mxu0 0
          %3648 = vmatprep.subr.bf16.mxu0 0
          %3649 = vmatpush1.bf16.msra.mxu0 0
          %3650 = vmatprep.subr.bf16.mxu0 0
          %3651 = vmatpush1.bf16.msra.mxu0 0
          %3652 = vmatprep.subr.bf16.mxu0 0
          %3653 = vmatpush1.bf16.msra.mxu0 0
          %3654 = vmatprep.subr.bf16.mxu0 0
          %3655 = vmatpush1.bf16.msra.mxu0 0
          %3656 = vmatprep.mubr.bf16.mxu0 0
          %3657 = vmatmul.mubr.bf16.gmra.mrb[0].mxu0 %v3622
          %v3658 = vpop.f32.mrb[0].mxu0
          %v3659 = vadd.f32 0.0, %v3658
          %v3660 = vpop.f32.mrb[0].mxu0
          %v3661 = vadd.f32 0.0, %v3660
          %v3662 = vpop.f32.mrb[0].mxu0
          %v3663 = vpop.f32.mrb[0].mxu0
          %3664 = vdwg.mxu0
          %3665 = vmatprep.subr.bf16.mxu0 %v3616
          %3666 = vmatpush1.bf16.msra.mxu0 %v3615
          %3667 = vmatprep.subr.bf16.mxu0 %v3620
          %3668 = vmatpush1.bf16.msra.mxu0 %v3619
          %3669 = vmatprep.subr.bf16.mxu0 0
          %3670 = vmatpush1.bf16.msra.mxu0 0
          %3671 = vmatprep.subr.bf16.mxu0 0
          %3672 = vmatpush1.bf16.msra.mxu0 0
          %3673 = vmatprep.subr.bf16.mxu0 0
          %3674 = vmatpush1.bf16.msra.mxu0 0
          %3675 = vmatprep.subr.bf16.mxu0 0
          %3676 = vmatpush1.bf16.msra.mxu0 0
          %3677 = vmatprep.subr.bf16.mxu0 0
          %3678 = vmatpush1.bf16.msra.mxu0 0
          %3679 = vmatprep.subr.bf16.mxu0 0
          %3680 = vmatpush1.bf16.msra.mxu0 0
          %3681 = vmatprep.subr.bf16.mxu0 0
          %3682 = vmatpush1.bf16.msra.mxu0 0
          %3683 = vmatprep.subr.bf16.mxu0 0
          %3684 = vmatpush1.bf16.msra.mxu0 0
          %3685 = vmatprep.subr.bf16.mxu0 0
          %3686 = vmatpush1.bf16.msra.mxu0 0
          %3687 = vmatprep.subr.bf16.mxu0 0
          %3688 = vmatpush1.bf16.msra.mxu0 0
          %3689 = vmatprep.subr.bf16.mxu0 0
          %3690 = vmatpush1.bf16.msra.mxu0 0
          %3691 = vmatprep.subr.bf16.mxu0 0
          %3692 = vmatpush1.bf16.msra.mxu0 0
          %3693 = vmatprep.subr.bf16.mxu0 0
          %3694 = vmatpush1.bf16.msra.mxu0 0
          %3695 = vmatprep.subr.bf16.mxu0 0
          %3696 = vmatpush1.bf16.msra.mxu0 0
          %3697 = vmatprep.mubr.bf16.mxu0 0
          %3698 = vmatmul.mubr.bf16.gmra.mrb[0].mxu0 %v3622
          %v3699 = vpop.f32.mrb[0].mxu0
          %v3700 = vadd.f32 0.0, %v3699
          %v3701 = vpop.f32.mrb[0].mxu0
          %v3702 = vadd.f32 0.0, %v3701
          %v3703 = vpop.f32.mrb[0].mxu0
          %v3704 = vpop.f32.mrb[0].mxu0
          %3705 = vdwg.mxu0
          %v3706 = vadd.f32 %v3606, %v3659
          %v3707 = vadd.f32 %v3607, %v3661
          %v3708 = vadd.f32 %v3608, %v3700
          %v3709 = vadd.f32 %v3609, %v3702
          %s3710 = scalar_lea.vmem [#allocation4], 7
          %v3711 = vld [vmem:[%s3710] ss:$8 sm:$0x3]
          %v3712 = vpack.c.bf16 %v3711, %v3711
          %v3713 = vld [vmem:[#allocation5 + $0x1c0] sm:$0xff]
          %v3714 = vld [vmem:[#allocation5 + $0x1c8] sm:$0xff]
          %v3715 = vld [vmem:[#allocation5 + $0x1d0] sm:$0xff]
          %v3716 = vld [vmem:[#allocation5 + $0x1d8] sm:$0xff]
          %v3717 = vld [vmem:[#allocation5 + $0x1e0] sm:$0xff]
          %v3718 = vld [vmem:[#allocation5 + $0x1e8] sm:$0xff]
          %v3719 = vld [vmem:[#allocation5 + $0x1f0] sm:$0xff]
          %v3720 = vld [vmem:[#allocation5 + $0x1f8] sm:$0xff]
          %v3722 = vsel %vm2498, %v3712, 0
          %3724 = vmatprep.subr.bf16.mxu0 %v3714
          %3725 = vmatpush1.bf16.msra.mxu0 %v3713
          %3726 = vmatprep.subr.bf16.mxu0 %v3718
          %3727 = vmatpush1.bf16.msra.mxu0 %v3717
          %3728 = vmatprep.subr.bf16.mxu0 0
          %3729 = vmatpush1.bf16.msra.mxu0 0
          %3730 = vmatprep.subr.bf16.mxu0 0
          %3731 = vmatpush1.bf16.msra.mxu0 0
          %3732 = vmatprep.subr.bf16.mxu0 0
          %3733 = vmatpush1.bf16.msra.mxu0 0
          %3734 = vmatprep.subr.bf16.mxu0 0
          %3735 = vmatpush1.bf16.msra.mxu0 0
          %3736 = vmatprep.subr.bf16.mxu0 0
          %3737 = vmatpush1.bf16.msra.mxu0 0
          %3738 = vmatprep.subr.bf16.mxu0 0
          %3739 = vmatpush1.bf16.msra.mxu0 0
          %3740 = vmatprep.subr.bf16.mxu0 0
          %3741 = vmatpush1.bf16.msra.mxu0 0
          %3742 = vmatprep.subr.bf16.mxu0 0
          %3743 = vmatpush1.bf16.msra.mxu0 0
          %3744 = vmatprep.subr.bf16.mxu0 0
          %3745 = vmatpush1.bf16.msra.mxu0 0
          %3746 = vmatprep.subr.bf16.mxu0 0
          %3747 = vmatpush1.bf16.msra.mxu0 0
          %3748 = vmatprep.subr.bf16.mxu0 0
          %3749 = vmatpush1.bf16.msra.mxu0 0
          %3750 = vmatprep.subr.bf16.mxu0 0
          %3751 = vmatpush1.bf16.msra.mxu0 0
          %3752 = vmatprep.subr.bf16.mxu0 0
          %3753 = vmatpush1.bf16.msra.mxu0 0
          %3754 = vmatprep.subr.bf16.mxu0 0
          %3755 = vmatpush1.bf16.msra.mxu0 0
          %3756 = vmatprep.mubr.bf16.mxu0 0
          %3757 = vmatmul.mubr.bf16.gmra.mrb[0].mxu0 %v3722
          %v3758 = vpop.f32.mrb[0].mxu0
          %v3759 = vadd.f32 0.0, %v3758
          %v3760 = vpop.f32.mrb[0].mxu0
          %v3761 = vadd.f32 0.0, %v3760
          %v3762 = vpop.f32.mrb[0].mxu0
          %v3763 = vpop.f32.mrb[0].mxu0
          %3764 = vdwg.mxu0
          %3765 = vmatprep.subr.bf16.mxu0 %v3716
          %3766 = vmatpush1.bf16.msra.mxu0 %v3715
          %3767 = vmatprep.subr.bf16.mxu0 %v3720
          %3768 = vmatpush1.bf16.msra.mxu0 %v3719
          %3769 = vmatprep.subr.bf16.mxu0 0
          %3770 = vmatpush1.bf16.msra.mxu0 0
          %3771 = vmatprep.subr.bf16.mxu0 0
          %3772 = vmatpush1.bf16.msra.mxu0 0
          %3773 = vmatprep.subr.bf16.mxu0 0
          %3774 = vmatpush1.bf16.msra.mxu0 0
          %3775 = vmatprep.subr.bf16.mxu0 0
          %3776 = vmatpush1.bf16.msra.mxu0 0
          %3777 = vmatprep.subr.bf16.mxu0 0
          %3778 = vmatpush1.bf16.msra.mxu0 0
          %3779 = vmatprep.subr.bf16.mxu0 0
          %3780 = vmatpush1.bf16.msra.mxu0 0
          %3781 = vmatprep.subr.bf16.mxu0 0
          %3782 = vmatpush1.bf16.msra.mxu0 0
          %3783 = vmatprep.subr.bf16.mxu0 0
          %3784 = vmatpush1.bf16.msra.mxu0 0
          %3785 = vmatprep.subr.bf16.mxu0 0
          %3786 = vmatpush1.bf16.msra.mxu0 0
          %3787 = vmatprep.subr.bf16.mxu0 0
          %3788 = vmatpush1.bf16.msra.mxu0 0
          %3789 = vmatprep.subr.bf16.mxu0 0
          %3790 = vmatpush1.bf16.msra.mxu0 0
          %3791 = vmatprep.subr.bf16.mxu0 0
          %3792 = vmatpush1.bf16.msra.mxu0 0
          %3793 = vmatprep.subr.bf16.mxu0 0
          %3794 = vmatpush1.bf16.msra.mxu0 0
          %3795 = vmatprep.subr.bf16.mxu0 0
          %3796 = vmatpush1.bf16.msra.mxu0 0
          %3797 = vmatprep.mubr.bf16.mxu0 0
          %3798 = vmatmul.mubr.bf16.gmra.mrb[0].mxu0 %v3722
          %v3799 = vpop.f32.mrb[0].mxu0
          %v3800 = vadd.f32 0.0, %v3799
          %v3801 = vpop.f32.mrb[0].mxu0
          %v3802 = vadd.f32 0.0, %v3801
          %v3803 = vpop.f32.mrb[0].mxu0
          %v3804 = vpop.f32.mrb[0].mxu0
          %3805 = vdwg.mxu0
          %v3806 = vadd.f32 %v3706, %v3759
          %v3807 = vadd.f32 %v3707, %v3761
          %v3808 = vadd.f32 %v3708, %v3800
          %v3809 = vadd.f32 %v3709, %v3802
          %v3810 = vld [vmem:[%s17] sm:$0xf]
          %v3812 = vlaneseq
          %v3813 = vshrl.u32 %v3812, 7
          %v3814 = vsub.s32 0, %v3813
          %v3815 = vrot.slane %v3810, %v3814
          %v3816 = vlaneseq
          %v3817 = vshrl.u32 %v3816, 7
          %v3818 = vsub.s32 1, %v3817
          %v3819 = vrot.slane %v3810, %v3818
          %v3820 = vlaneseq
          %v3821 = vshrl.u32 %v3820, 7
          %v3822 = vsub.s32 2, %v3821
          %v3823 = vrot.slane %v3810, %v3822
          %v3824 = vlaneseq
          %v3825 = vshrl.u32 %v3824, 7
          %v3826 = vsub.s32 3, %v3825
          %v3827 = vrot.slane %v3810, %v3826
          %v3832 = vadd.f32 %v3806, %v3815
          %v3833 = vadd.f32 %v3807, %v3819
          %v3834 = vadd.f32 %v3808, %v3823
          %v3835 = vadd.f32 %v3809, %v3827
          %v3836 = vmax.f32 %v3832, 0.0
          %v3837 = vmax.f32 %v3833, 0.0
          %v3838 = vmax.f32 %v3834, 0.0
          %v3839 = vmax.f32 %v3835, 0.0
          %v3840 = vpack.c.bf16 %v3836, %v3836
          %v3841 = vpack.c.bf16 %v3837, %v3837
          %v3842 = vpack.c.bf16 %v3838, %v3838
          %v3843 = vpack.c.bf16 %v3839, %v3839
          %v3844 = vld [vmem:[#allocation6] sm:$0xff]
          %v3845 = vld [vmem:[#allocation6 + $0x8] sm:$0xff]
          %v3846 = vld [vmem:[#allocation6 + $0x10] sm:$0xff]
          %v3847 = vld [vmem:[#allocation6 + $0x18] sm:$0xff]
          %v3848 = vld [vmem:[#allocation6 + $0x20] sm:$0xff]
          %v3849 = vld [vmem:[#allocation6 + $0x28] sm:$0xff]
          %v3850 = vld [vmem:[#allocation6 + $0x30] sm:$0xff]
          %v3851 = vld [vmem:[#allocation6 + $0x38] sm:$0xff]
          %v3852 = vld [vmem:[#allocation6 + $0x40] sm:$0xff]
          %v3853 = vld [vmem:[#allocation6 + $0x48] sm:$0xff]
          %v3854 = vld [vmem:[#allocation6 + $0x50] sm:$0xff]
          %v3855 = vld [vmem:[#allocation6 + $0x58] sm:$0xff]
          %v3856 = vld [vmem:[#allocation6 + $0x60] sm:$0xff]
          %v3857 = vld [vmem:[#allocation6 + $0x68] sm:$0xff]
          %v3858 = vld [vmem:[#allocation6 + $0x70] sm:$0xff]
          %v3859 = vld [vmem:[#allocation6 + $0x78] sm:$0xff]
          %v3860 = vld [vmem:[#allocation6 + $0x80] sm:$0xff]
          %v3861 = vld [vmem:[#allocation6 + $0x88] sm:$0xff]
          %v3862 = vld [vmem:[#allocation6 + $0x90] sm:$0xff]
          %v3863 = vld [vmem:[#allocation6 + $0x98] sm:$0xff]
          %v3864 = vld [vmem:[#allocation6 + $0xa0] sm:$0xff]
          %v3865 = vld [vmem:[#allocation6 + $0xa8] sm:$0xff]
          %v3866 = vld [vmem:[#allocation6 + $0xb0] sm:$0xff]
          %v3867 = vld [vmem:[#allocation6 + $0xb8] sm:$0xff]
          %v3868 = vld [vmem:[#allocation6 + $0xc0] sm:$0xff]
          %v3869 = vld [vmem:[#allocation6 + $0xc8] sm:$0xff]
          %v3870 = vld [vmem:[#allocation6 + $0xd0] sm:$0xff]
          %v3871 = vld [vmem:[#allocation6 + $0xd8] sm:$0xff]
          %v3872 = vld [vmem:[#allocation6 + $0xe0] sm:$0xff]
          %v3873 = vld [vmem:[#allocation6 + $0xe8] sm:$0xff]
          %v3874 = vld [vmem:[#allocation6 + $0xf0] sm:$0xff]
          %v3875 = vld [vmem:[#allocation6 + $0xf8] sm:$0xff]
          %v3876 = vld [vmem:[#allocation6 + $0x100] sm:$0xff]
          %v3877 = vld [vmem:[#allocation6 + $0x108] sm:$0xff]
          %v3878 = vld [vmem:[#allocation6 + $0x110] sm:$0xff]
          %v3879 = vld [vmem:[#allocation6 + $0x118] sm:$0xff]
          %v3880 = vld [vmem:[#allocation6 + $0x120] sm:$0xff]
          %v3881 = vld [vmem:[#allocation6 + $0x128] sm:$0xff]
          %v3882 = vld [vmem:[#allocation6 + $0x130] sm:$0xff]
          %v3883 = vld [vmem:[#allocation6 + $0x138] sm:$0xff]
          %v3884 = vld [vmem:[#allocation6 + $0x140] sm:$0xff]
          %v3885 = vld [vmem:[#allocation6 + $0x148] sm:$0xff]
          %v3886 = vld [vmem:[#allocation6 + $0x150] sm:$0xff]
          %v3887 = vld [vmem:[#allocation6 + $0x158] sm:$0xff]
          %v3888 = vld [vmem:[#allocation6 + $0x160] sm:$0xff]
          %v3889 = vld [vmem:[#allocation6 + $0x168] sm:$0xff]
          %v3890 = vld [vmem:[#allocation6 + $0x170] sm:$0xff]
          %v3891 = vld [vmem:[#allocation6 + $0x178] sm:$0xff]
          %v3892 = vld [vmem:[#allocation6 + $0x180] sm:$0xff]
          %v3893 = vld [vmem:[#allocation6 + $0x188] sm:$0xff]
          %v3894 = vld [vmem:[#allocation6 + $0x190] sm:$0xff]
          %v3895 = vld [vmem:[#allocation6 + $0x198] sm:$0xff]
          %v3896 = vld [vmem:[#allocation6 + $0x1a0] sm:$0xff]
          %v3897 = vld [vmem:[#allocation6 + $0x1a8] sm:$0xff]
          %v3898 = vld [vmem:[#allocation6 + $0x1b0] sm:$0xff]
          %v3899 = vld [vmem:[#allocation6 + $0x1b8] sm:$0xff]
          %v3900 = vld [vmem:[#allocation6 + $0x1c0] sm:$0xff]
          %v3901 = vld [vmem:[#allocation6 + $0x1c8] sm:$0xff]
          %v3902 = vld [vmem:[#allocation6 + $0x1d0] sm:$0xff]
          %v3903 = vld [vmem:[#allocation6 + $0x1d8] sm:$0xff]
          %v3904 = vld [vmem:[#allocation6 + $0x1e0] sm:$0xff]
          %v3905 = vld [vmem:[#allocation6 + $0x1e8] sm:$0xff]
          %v3906 = vld [vmem:[#allocation6 + $0x1f0] sm:$0xff]
          %v3907 = vld [vmem:[#allocation6 + $0x1f8] sm:$0xff]
          %v3908 = vld [vmem:[%s19] sm:$0x3]
          %v3910 = vlaneseq
          %v3911 = vshrl.u32 %v3910, 7
          %v3912 = vsub.s32 0, %v3911
          %v3913 = vrot.slane %v3908, %v3912
          %v3914 = vlaneseq
          %v3915 = vshrl.u32 %v3914, 7
          %v3916 = vsub.s32 1, %v3915
          %v3917 = vrot.slane %v3908, %v3916
          %3920 = vmatprep.subr.bf16.mxu0 %v3845
          %3921 = vmatpush1.bf16.msra.mxu0 %v3844
          %3922 = vmatprep.subr.bf16.mxu0 %v3847
          %3923 = vmatpush1.bf16.msra.mxu0 %v3846
          %3924 = vmatprep.subr.bf16.mxu0 %v3849
          %3925 = vmatpush1.bf16.msra.mxu0 %v3848
          %3926 = vmatprep.subr.bf16.mxu0 %v3851
          %3927 = vmatpush1.bf16.msra.mxu0 %v3850
          %3928 = vmatprep.subr.bf16.mxu0 %v3853
          %3929 = vmatpush1.bf16.msra.mxu0 %v3852
          %3930 = vmatprep.subr.bf16.mxu0 %v3855
          %3931 = vmatpush1.bf16.msra.mxu0 %v3854
          %3932 = vmatprep.subr.bf16.mxu0 %v3857
          %3933 = vmatpush1.bf16.msra.mxu0 %v3856
          %3934 = vmatprep.subr.bf16.mxu0 %v3859
          %3935 = vmatpush1.bf16.msra.mxu0 %v3858
          %3936 = vmatprep.subr.bf16.mxu0 %v3861
          %3937 = vmatpush1.bf16.msra.mxu0 %v3860
          %3938 = vmatprep.subr.bf16.mxu0 %v3863
          %3939 = vmatpush1.bf16.msra.mxu0 %v3862
          %3940 = vmatprep.subr.bf16.mxu0 %v3865
          %3941 = vmatpush1.bf16.msra.mxu0 %v3864
          %3942 = vmatprep.subr.bf16.mxu0 %v3867
          %3943 = vmatpush1.bf16.msra.mxu0 %v3866
          %3944 = vmatprep.subr.bf16.mxu0 %v3869
          %3945 = vmatpush1.bf16.msra.mxu0 %v3868
          %3946 = vmatprep.subr.bf16.mxu0 %v3871
          %3947 = vmatpush1.bf16.msra.mxu0 %v3870
          %3948 = vmatprep.subr.bf16.mxu0 %v3873
          %3949 = vmatpush1.bf16.msra.mxu0 %v3872
          %3950 = vmatprep.subr.bf16.mxu0 %v3875
          %3951 = vmatpush1.bf16.msra.mxu0 %v3874
          %3952 = vmatprep.mubr.bf16.mxu0 %v3841
          %3953 = vmatmul.mubr.bf16.gmra.mrb[0].mxu0 %v3840
          %v3954 = vpop.f32.mrb[0].mxu0
          %v3955 = vadd.f32 %v3913, %v3954
          %v3956 = vpop.f32.mrb[0].mxu0
          %v3957 = vadd.f32 %v3917, %v3956
          %v3958 = vpop.f32.mrb[0].mxu0
          %v3959 = vpop.f32.mrb[0].mxu0
          %3960 = vdwg.mxu0
          %3961 = vmatprep.subr.bf16.mxu0 %v3877
          %3962 = vmatpush1.bf16.msra.mxu0 %v3876
          %3963 = vmatprep.subr.bf16.mxu0 %v3879
          %3964 = vmatpush1.bf16.msra.mxu0 %v3878
          %3965 = vmatprep.subr.bf16.mxu0 %v3881
          %3966 = vmatpush1.bf16.msra.mxu0 %v3880
          %3967 = vmatprep.subr.bf16.mxu0 %v3883
          %3968 = vmatpush1.bf16.msra.mxu0 %v3882
          %3969 = vmatprep.subr.bf16.mxu0 %v3885
          %3970 = vmatpush1.bf16.msra.mxu0 %v3884
          %3971 = vmatprep.subr.bf16.mxu0 %v3887
          %3972 = vmatpush1.bf16.msra.mxu0 %v3886
          %3973 = vmatprep.subr.bf16.mxu0 %v3889
          %3974 = vmatpush1.bf16.msra.mxu0 %v3888
          %3975 = vmatprep.subr.bf16.mxu0 %v3891
          %3976 = vmatpush1.bf16.msra.mxu0 %v3890
          %3977 = vmatprep.subr.bf16.mxu0 %v3893
          %3978 = vmatpush1.bf16.msra.mxu0 %v3892
          %3979 = vmatprep.subr.bf16.mxu0 %v3895
          %3980 = vmatpush1.bf16.msra.mxu0 %v3894
          %3981 = vmatprep.subr.bf16.mxu0 %v3897
          %3982 = vmatpush1.bf16.msra.mxu0 %v3896
          %3983 = vmatprep.subr.bf16.mxu0 %v3899
          %3984 = vmatpush1.bf16.msra.mxu0 %v3898
          %3985 = vmatprep.subr.bf16.mxu0 %v3901
          %3986 = vmatpush1.bf16.msra.mxu0 %v3900
          %3987 = vmatprep.subr.bf16.mxu0 %v3903
          %3988 = vmatpush1.bf16.msra.mxu0 %v3902
          %3989 = vmatprep.subr.bf16.mxu0 %v3905
          %3990 = vmatpush1.bf16.msra.mxu0 %v3904
          %3991 = vmatprep.subr.bf16.mxu0 %v3907
          %3992 = vmatpush1.bf16.msra.mxu0 %v3906
          %3993 = vmatprep.mubr.bf16.mxu0 %v3843
          %3994 = vmatmul.mubr.bf16.gmra.mrb[0].mxu0 %v3842
          %v3995 = vpop.f32.mrb[0].mxu0
          %v3996 = vadd.f32 %v3955, %v3995
          %v3997 = vpop.f32.mrb[0].mxu0
          %v3998 = vadd.f32 %v3957, %v3997
          %v3999 = vpop.f32.mrb[0].mxu0
          %v4000 = vpop.f32.mrb[0].mxu0
          %4001 = vdwg.mxu0
          %v4002 = vmax.f32 %v3996, 0.0
          %v4003 = vmax.f32 %v3998, 0.0
          %v4004 = vld [vmem:[%s20] sm:$0xff]
          %v4005 = vld [vmem:[%s20 + $0x8] sm:$0xff]
          %v4006 = vld [vmem:[%s20 + $0x10] sm:$0xff]
          %v4007 = vld [vmem:[%s20 + $0x18] sm:$0xff]
          %v4008 = vld [vmem:[%s20 + $0x20] sm:$0xff]
          %v4009 = vld [vmem:[%s20 + $0x28] sm:$0xff]
          %v4010 = vld [vmem:[%s20 + $0x30] sm:$0xff]
          %v4011 = vld [vmem:[%s20 + $0x38] sm:$0xff]
          %v4012 = vld [vmem:[%s20 + $0x40] sm:$0xff]
          %v4013 = vld [vmem:[%s20 + $0x48] sm:$0xff]
          %v4014 = vld [vmem:[%s20 + $0x50] sm:$0xff]
          %v4015 = vld [vmem:[%s20 + $0x58] sm:$0xff]
          %v4016 = vld [vmem:[%s20 + $0x60] sm:$0xff]
          %v4017 = vld [vmem:[%s20 + $0x68] sm:$0xff]
          %v4018 = vld [vmem:[%s20 + $0x70] sm:$0xff]
          %v4019 = vld [vmem:[%s20 + $0x78] sm:$0xff]
          %v4020 = vld [vmem:[%s20 + $0x80] sm:$0xff]
          %v4021 = vld [vmem:[%s20 + $0x88] sm:$0xff]
          %v4022 = vld [vmem:[%s20 + $0x90] sm:$0xff]
          %v4023 = vld [vmem:[%s20 + $0x98] sm:$0xff]
          %v4024 = vld [vmem:[%s20 + $0xa0] sm:$0xff]
          %v4025 = vld [vmem:[%s20 + $0xa8] sm:$0xff]
          %v4026 = vld [vmem:[%s20 + $0xb0] sm:$0xff]
          %v4027 = vld [vmem:[%s20 + $0xb8] sm:$0xff]
          %v4028 = vld [vmem:[%s20 + $0xc0] sm:$0xff]
          %v4029 = vld [vmem:[%s20 + $0xc8] sm:$0xff]
          %v4030 = vld [vmem:[%s20 + $0xd0] sm:$0xff]
          %v4031 = vld [vmem:[%s20 + $0xd8] sm:$0xff]
          %v4032 = vld [vmem:[%s20 + $0xe0] sm:$0xff]
          %v4033 = vld [vmem:[%s20 + $0xe8] sm:$0xff]
          %v4034 = vld [vmem:[%s20 + $0xf0] sm:$0xff]
          %v4035 = vld [vmem:[%s20 + $0xf8] sm:$0xff]
          %v4036 = vld [vmem:[%s21] sm:$0x1]
          %v4038 = vlaneseq
          %v4039 = vshrl.u32 %v4038, 7
          %v4040 = vsub.s32 0, %v4039
          %v4041 = vrot.slane %v4036, %v4040
          %4043 = vmatprep.subr.mxu0 0.0
          %4044 = vmatpush1.msra.mxu0 %v4004
          %4045 = vmatprep.subr.mxu0 0.0
          %4046 = vmatpush1.msra.mxu0 %v4005
          %4047 = vmatprep.subr.mxu0 0.0
          %4048 = vmatpush1.msra.mxu0 %v4006
          %4049 = vmatprep.subr.mxu0 0.0
          %4050 = vmatpush1.msra.mxu0 %v4007
          %4051 = vmatprep.subr.mxu0 0.0
          %4052 = vmatpush1.msra.mxu0 %v4008
          %4053 = vmatprep.subr.mxu0 0.0
          %4054 = vmatpush1.msra.mxu0 %v4009
          %4055 = vmatprep.subr.mxu0 0.0
          %4056 = vmatpush1.msra.mxu0 %v4010
          %4057 = vmatprep.subr.mxu0 0.0
          %4058 = vmatpush1.msra.mxu0 %v4011
          %4059 = vmatprep.subr.mxu0 0.0
          %4060 = vmatpush1.msra.mxu0 %v4012
          %4061 = vmatprep.subr.mxu0 0.0
          %4062 = vmatpush1.msra.mxu0 %v4013
          %4063 = vmatprep.subr.mxu0 0.0
          %4064 = vmatpush1.msra.mxu0 %v4014
          %4065 = vmatprep.subr.mxu0 0.0
          %4066 = vmatpush1.msra.mxu0 %v4015
          %4067 = vmatprep.subr.mxu0 0.0
          %4068 = vmatpush1.msra.mxu0 %v4016
          %4069 = vmatprep.subr.mxu0 0.0
          %4070 = vmatpush1.msra.mxu0 %v4017
          %4071 = vmatprep.subr.mxu0 0.0
          %4072 = vmatpush1.msra.mxu0 %v4018
          %4073 = vmatprep.subr.mxu0 0.0
          %4074 = vmatpush1.msra.mxu0 %v4019
          %4075 = vmatprep.subr.mxu0 0.0
          %4076 = vmatpush1.msra.mxu0 %v4020
          %4077 = vmatprep.subr.mxu0 0.0
          %4078 = vmatpush1.msra.mxu0 %v4021
          %4079 = vmatprep.subr.mxu0 0.0
          %4080 = vmatpush1.msra.mxu0 %v4022
          %4081 = vmatprep.subr.mxu0 0.0
          %4082 = vmatpush1.msra.mxu0 %v4023
          %4083 = vmatprep.subr.mxu0 0.0
          %4084 = vmatpush1.msra.mxu0 %v4024
          %4085 = vmatprep.subr.mxu0 0.0
          %4086 = vmatpush1.msra.mxu0 %v4025
          %4087 = vmatprep.subr.mxu0 0.0
          %4088 = vmatpush1.msra.mxu0 %v4026
          %4089 = vmatprep.subr.mxu0 0.0
          %4090 = vmatpush1.msra.mxu0 %v4027
          %4091 = vmatprep.subr.mxu0 0.0
          %4092 = vmatpush1.msra.mxu0 %v4028
          %4093 = vmatprep.subr.mxu0 0.0
          %4094 = vmatpush1.msra.mxu0 %v4029
          %4095 = vmatprep.subr.mxu0 0.0
          %4096 = vmatpush1.msra.mxu0 %v4030
          %4097 = vmatprep.subr.mxu0 0.0
          %4098 = vmatpush1.msra.mxu0 %v4031
          %4099 = vmatprep.subr.mxu0 0.0
          %4100 = vmatpush1.msra.mxu0 %v4032
          %4101 = vmatprep.subr.mxu0 0.0
          %4102 = vmatpush1.msra.mxu0 %v4033
          %4103 = vmatprep.subr.mxu0 0.0
          %4104 = vmatpush1.msra.mxu0 %v4034
          %4105 = vmatprep.subr.mxu0 0.0
          %4106 = vmatpush1.msra.mxu0 %v4035
          %4107 = vmatprep.mubr.f32.mxu0 %v4003
          %4108 = vmatmul.mubr.f32.gmra.mrb[0].mxu0 %v4002
          %v4109 = vpop.f32.mrb[0].mxu0
          %v4110 = vadd.f32 %v4041, %v4109
          %v4111 = vpop.f32.mrb[0].mxu0
          %4112 = vdwg.mxu0
          %v4113 = vxor.u32 %v4110, 2147483648
          %v4114 = vmul.f32 %v4113, 1.442695
          %v4115 = vpow.pop %v4114
          %v4116 = vadd.f32 %v4115, 1.0
          %v4117 = vrcp.pop %v4116
          %v4118 = vmul.f32 1.0, %v4117
          %vm4119 = vcmask 41984
          %4120 = vst.msk [vmem:[#allocation9] sm:$0x3] %vm4119, %v4118
        $region205: #{transformer_mlp_forward.1} parent=118 // pred_fallthru
          _
        // Predicated region
        $region206: #{transformer_mlp_forward.1} parent=118 // pred_check
          %p4121 = pneg %p482
        $region207: #{transformer_mlp_forward.1} parent=118 // pred_check_branch
          %4123 = sbr.rel (%p4121) target = $region209
        $region208: #{transformer_mlp_forward.1} parent=118 // pred_region
          %s4125 = ssub.s32 32, 32
          %4126 = vsyncadd [#allocation10], %s4125
          %s4128 = sshll.u32 [#allocation9], 4
          %s4129 = int_to_ptr.vmem [resolvable:$true] %s4128
          %4131 = dma.vmem_to_hbm [thread:$0]  %s4129, 32, %s22, [#allocation10]
        $region209: #{transformer_mlp_forward.1} parent=118 // pred_fallthru
          _
        // Predicated region
        $region210: #{transformer_mlp_forward.1} parent=118 // pred_check
          %p4132 = pneg %p482
        $region211: #{transformer_mlp_forward.1} parent=118 // pred_check_branch
          %4134 = sbr.rel (%p4132) target = $region213
        $region212: #{transformer_mlp_forward.1} parent=118 // pred_region
          %4135 = dma.done [#allocation10], 32
        $region213: #{transformer_mlp_forward.1} parent=118 // pred_fallthru
          _
      $region119: #{transformer_mlp_forward.1} parent=5 // pred_fallthru
        _
      %p4136 = scmp.le.s32.totalorder 2, %s29
      // Predicated region
      $region214: #{transformer_mlp_forward.1} parent=5 // pred_check
        %p4137 = pneg %p4136
      $region215: #{transformer_mlp_forward.1} parent=5 // pred_check_branch
        %4139 = sbr.rel (%p4137) target = $region217
      $region216: #{transformer_mlp_forward.1} parent=5 // pred_region
        %s4140 = ssub.s32 %s29, 2
      $region217: #{transformer_mlp_forward.1} parent=5 // pred_fallthru
        _
    $region6: #{transformer_mlp_forward.1} parent=1 // loop_footer
      %s33 = sadd.s32 1, %s29
    $region7: #{transformer_mlp_forward.1} parent=1 // loop_footer_branch
      %28 = sbr.rel target = $region3
    $region8: #{transformer_mlp_forward.1} parent=1 // loop_exit
      _
    %4141 = vsyncpa [#allocation10], 1
    %s4142 = scalar_lea.sflag [#allocation10], 1
    %4143 = vsyncpa %s4142, 1
  %4144 = vsyncmov [#allocation7]
  %s4145 = vpop.sfrf %4144
  %p4146 = scmp.eq.s32.totalorder %s4145, 0
  %p4147 = pneg %p4146
  %4149 = shalt.err (%p4147)
  %s4150 = scalar_lea.sflag [#allocation7], 1
  %4151 = vsyncmov %s4150
  %s4152 = vpop.sfrf %4151
  %p4153 = scmp.eq.s32.totalorder %s4152, 0
  %p4154 = pneg %p4153
  %4156 = shalt.err (%p4154)

</llo_original>
